<compile_context>
chip_gen: v7x
topology: tpu7x:2x2x1
jax: 0.10.0
libtpu: 0.0.40
codegen_flags: <defaults>
</compile_context>

<pallas_src>
import functools
import math

import jax
import jax.numpy as jnp
from jax.experimental import pallas as pl
from jax.experimental.pallas import tpu as pltpu


def _graph_filter_down_kernel(w_ref, x_ref, spow_ref, y_ref, *, K, mult, mxu_dtype):
    """One grid step = one row tile; row r = t*Fout + fo.

    w_ref    : VMEM (K, mult, r_blk, 1)  per-row tap weights (1/mult folded in), resident
    x_ref    : VMEM (mult, r_blk, N)     the `mult` source channels of each output row
    spow_ref : VMEM (K*N, N)             [S^0; S^1; ...; S^{K-1}] stacked, resident
    y_ref    : VMEM (r_blk, N)           output rows in final (T*Fout, N) layout
    """
    xs = [x_ref[j] for j in range(mult)]              # dense (r_blk, N) tile loads

    # Weighted channel combine per tap k on the VPU, packed along the contraction axis.
    pieces = []
    for k in range(K):
        xw = xs[0] * w_ref[k, 0]                      # (r_blk, N) * (r_blk, 1) lane-broadcast
        for j in range(1, mult):
            xw = xw + xs[j] * w_ref[k, j]
        pieces.append(xw.astype(mxu_dtype))
    xw_packed = jnp.concatenate(pieces, axis=-1)      # (r_blk, K*N), 128-lane aligned pieces

    # Single MXU matmul per row tile, f32 accumulation, straight into the output block.
    y_ref[...] = jnp.dot(xw_packed, spow_ref[...],
                         preferred_element_type=jnp.float32).astype(y_ref.dtype)


def _choose_t_block(T, Fout, max_rows=512):
    """Largest row tile (multiple of Fout, 8-sublane aligned) within max_rows.

    r_blk = t_blk * Fout is the VMEM / arithmetic-intensity knob.  A single
    full-size tile is always layout-legal (block == full array extent), so it
    is the fallback for small problems or awkward divisors.
    """
    best_t, best_rows = T, T * Fout
    for t in range(1, T + 1):
        if T % t:
            continue
        rows = t * Fout
        if rows <= max_rows and rows % 8 == 0 and (best_rows > max_rows or rows > best_rows):
            best_t, best_rows = t, rows
    return best_t


def graph_filter_down(x, weights, spow, Fin, Fout, *, t_block=None, use_bf16_mxu=True):
    """Pallas implementation of GraphFilterDown.forward.

    x       : (T, Fin, N) float32
    weights : (K * Fin,)  float32   -- weights[fi*K + k] is the k-th tap of channel fi
    spow    : (K, N, N)   float32   -- precomputed S powers (module __init__ glue)
    returns : (T, Fout, N) float32
    """
    T, xFin, N = x.shape
    assert xFin == Fin
    assert Fin % Fout == 0
    mult = Fin // Fout
    K = spow.shape[0]
    assert weights.shape == (K * Fin,)
    out_dtype = x.dtype

    # --- lane padding: keep every block an unmasked (8,128)-aligned slab -------
    n_pad = (-N) % 128
    Np = N + n_pad
    if n_pad:
        x = jnp.pad(x, ((0, 0), (0, 0), (0, n_pad)))
        spow = jnp.pad(spow, ((0, 0), (0, n_pad), (0, n_pad)))

    # --- row tiling -------------------------------------------------------------
    t_blk = _choose_t_block(T, Fout) if t_block is None else t_block
    assert T % t_blk == 0
    r_blk = t_blk * Fout                       # rows per grid step; row r = t*Fout + fo
    n_tiles = T // t_blk

    # --- operand layouts (wrapper-side; fused by XLA around the custom call) ----
    # x -> (mult, T*Fout, N): each channel plane is a dense (r_blk, N) tile in VMEM
    # (avoids 2->8 sublane padding of a minor `mult` axis).
    x_t = jnp.transpose(x.reshape(T, Fout, mult, Np), (2, 0, 1, 3)).reshape(mult, T * Fout, Np)

    # S powers stacked along the contraction axis; bf16 in HBM (half the stream,
    # cast is free), made VMEM-resident via a constant block index.
    mxu_dtype = jnp.bfloat16 if use_bf16_mxu else spow.dtype
    spow_packed = spow.astype(mxu_dtype).reshape(K * Np, Np)

    # Per-row tap weights with 1/mult folded in: w_cols[k, j, r, 0] = w[(r%Fout)*mult+j, k]/mult.
    # (Exact for power-of-two mult; otherwise a one-ulp-level difference vs dividing at the end.)
    w3 = weights.reshape(Fout, mult, K)                          # weights[fi*K + k], fi = fo*mult + j
    wk = jnp.transpose(w3, (2, 1, 0)) * (1.0 / mult)             # (K, mult, Fout)
    w_cols = jnp.tile(wk, (1, 1, t_blk))[..., None]              # (K, mult, r_blk, 1), resident

    kernel = functools.partial(_graph_filter_down_kernel, K=K, mult=mult, mxu_dtype=mxu_dtype)

    # --- explicit VMEM budget (blocks double-buffered; size-1 minor dim pads to 128 lanes)
    sp_bytes = jnp.dtype(mxu_dtype).itemsize
    vmem_need = 2 * (mult * r_blk * Np * 4            # x block
                     + K * mult * r_blk * 128 * 4     # resident tap-weight columns (lane-padded)
                     + K * Np * Np * sp_bytes         # resident stacked S powers
                     + r_blk * Np * 4)                # y block
    vmem_limit = int(min(max(vmem_need + (2 << 20), 16 << 20), 64 << 20))

    cost = pl.CostEstimate(
        flops=2 * T * Fout * K * Np * Np,
        transcendentals=0,
        bytes_accessed=(x_t.size * 4 + w_cols.size * 4
                        + spow_packed.size * sp_bytes + T * Fout * Np * 4))

    y2 = pl.pallas_call(
        kernel,
        out_shape=jax.ShapeDtypeStruct((T * Fout, Np), out_dtype),
        grid_spec=pltpu.PrefetchScalarGridSpec(
            num_scalar_prefetch=0,
            grid=(n_tiles,),
            in_specs=[
                # tap weights: constant block index -> DMA'd once for the whole kernel
                pl.BlockSpec((K, mult, r_blk, 1), lambda t: (0, 0, 0, 0)),
                # x rows for this row tile (streams; only moving operand)
                pl.BlockSpec((mult, r_blk, Np), lambda t: (0, t, 0)),
                # stacked S powers: resident (single DMA, no per-tile re-fetch)
                pl.BlockSpec((K * Np, Np), lambda t: (0, 0)),
            ],
            out_specs=pl.BlockSpec((r_blk, Np), lambda t: (t, 0)),
        ),
        compiler_params=pltpu.CompilerParams(
            dimension_semantics=("parallel",),        # >=2 row tiles -> both v7x TCs used
            vmem_limit_bytes=vmem_limit),
        cost_estimate=cost,
    )(w_cols, x_t, spow_packed)

    # Metadata-only reshape back to (T, Fout, N); drop lane padding if any.
    y = y2.reshape(T, Fout, Np)
    return y[..., :N] if n_pad else y


if __name__ == "__main__":
    # Small shapes consistent with the module (Fin % Fout == 0, mult = 2).
    # N = 128 graph nodes keeps every tile a full lane-dense (8,128) slab; T = 256
    # gives two 512-row tiles so the parallel grid axis is actually exercised.
    T, Fin, Fout, K, N = 256, 8, 4, 3, 128
    mult = Fin // Fout

    key = jax.random.PRNGKey(0)
    k_s, k_w, k_x = jax.random.split(key, 3)

    # Graph shift operator S and its powers (the module __init__ precomputes these).
    S = jax.random.normal(k_s, (N, N), dtype=jnp.float32) / N
    spow_list = [jnp.eye(N, dtype=jnp.float32)]
    for _ in range(1, K):
        spow_list.append(spow_list[-1] @ S)
    spow = jnp.stack(spow_list, axis=0)                   # (K, N, N)

    # weights ~ uniform(-stdv, stdv), stdv = 1/sqrt(Fin*K), flat (K*Fin,) like the module.
    stdv = 1.0 / math.sqrt(Fin * K)
    weights = jax.random.uniform(
        k_w, (K * Fin,), dtype=jnp.float32, minval=-stdv, maxval=stdv)

    x = jax.random.normal(k_x, (T, Fin, N), dtype=jnp.float32)

    gfd = jax.jit(functools.partial(graph_filter_down, Fin=Fin, Fout=Fout))
    y = gfd(x, weights, spow)
    y = jax.block_until_ready(y)

    # Pure-JAX reference mirroring the PyTorch forward (HIGHEST precision f32).
    w2 = weights.reshape(Fin, K)                                       # weights.view(Fin, K)
    Hs = (w2[:, :, None, None] * spow[None, :, :, :]).sum(1)           # (Fin, N, N)
    Y_aux = jnp.einsum("tfn,fnm->tfm", x, Hs,
                       precision=jax.lax.Precision.HIGHEST)            # bmm + permutes
    y_ref = Y_aux.reshape(T, Fout, mult, N).sum(2) / mult

    assert y.shape == (T, Fout, N)
    # bf16 MXU inputs with f32 accumulation -> relaxed tolerance vs the f32 reference.
    assert jnp.allclose(y, y_ref, atol=3e-2, rtol=3e-2), float(jnp.max(jnp.abs(y - y_ref)))
    print("KERNEL_OK")
</pallas_src>

<mosaic_0001>
module attributes {stable_mosaic.version = 11 : i64} {
  func.func @_graph_filter_down_kernel(%arg0: i32, %arg1: memref<3x2x512x1xf32, #tpu.memory_space<vmem>>, %arg2: memref<2x512x128xf32, #tpu.memory_space<vmem>>, %arg3: memref<384x128xbf16, #tpu.memory_space<vmem>>, %arg4: memref<512x128xf32, #tpu.memory_space<vmem>>) attributes {dimension_semantics = [#tpu.dimension_semantics<parallel>], iteration_bounds = array<i64: 2>, scalar_prefetch = 0 : i64, scratch_operands = 0 : i64, tpu.core_type = #tpu.core_type<tc>, window_params = [{pipeline_mode = #tpu.pipeline_mode<synchronous>, transform_indices = @transform_0, window_bounds = array<i64: 3, 2, 512, 1>}, {transform_indices = @transform_1, window_bounds = array<i64: 2, 512, 128>}, {pipeline_mode = #tpu.pipeline_mode<synchronous>, transform_indices = @transform_2, window_bounds = array<i64: 384, 128>}, {transform_indices = @transform_3, window_bounds = array<i64: 512, 128>}]} {
    %c0 = arith.constant 0 : index
    %c0_0 = arith.constant 0 : index
    %c0_1 = arith.constant 0 : index
    %0 = vector.load %arg2[%c0, %c0_0, %c0_1] : memref<2x512x128xf32, #tpu.memory_space<vmem>>, vector<1x512x128xf32>
    %1 = vector.shape_cast %0 : vector<1x512x128xf32> to vector<512x128xf32>
    %c1 = arith.constant 1 : index
    %c0_2 = arith.constant 0 : index
    %c0_3 = arith.constant 0 : index
    %2 = vector.load %arg2[%c1, %c0_2, %c0_3] : memref<2x512x128xf32, #tpu.memory_space<vmem>>, vector<1x512x128xf32>
    %3 = vector.shape_cast %2 : vector<1x512x128xf32> to vector<512x128xf32>
    %c0_4 = arith.constant 0 : index
    %c0_5 = arith.constant 0 : index
    %c0_6 = arith.constant 0 : index
    %c0_7 = arith.constant 0 : index
    %4 = vector.load %arg1[%c0_4, %c0_5, %c0_6, %c0_7] : memref<3x2x512x1xf32, #tpu.memory_space<vmem>>, vector<1x1x512x1xf32>
    %5 = vector.shape_cast %4 : vector<1x1x512x1xf32> to vector<512x1xf32>
    %6 = vector.broadcast %5 : vector<512x1xf32> to vector<512x128xf32>
    %7 = arith.mulf %1, %6 : vector<512x128xf32>
    %c0_8 = arith.constant 0 : index
    %c1_9 = arith.constant 1 : index
    %c0_10 = arith.constant 0 : index
    %c0_11 = arith.constant 0 : index
    %8 = vector.load %arg1[%c0_8, %c1_9, %c0_10, %c0_11] : memref<3x2x512x1xf32, #tpu.memory_space<vmem>>, vector<1x1x512x1xf32>
    %9 = vector.shape_cast %8 : vector<1x1x512x1xf32> to vector<512x1xf32>
    %10 = vector.broadcast %9 : vector<512x1xf32> to vector<512x128xf32>
    %11 = arith.mulf %3, %10 : vector<512x128xf32>
    %12 = arith.addf %7, %11 : vector<512x128xf32>
    %13 = arith.truncf %12 : vector<512x128xf32> to vector<512x128xbf16>
    %c1_12 = arith.constant 1 : index
    %c0_13 = arith.constant 0 : index
    %c0_14 = arith.constant 0 : index
    %c0_15 = arith.constant 0 : index
    %14 = vector.load %arg1[%c1_12, %c0_13, %c0_14, %c0_15] : memref<3x2x512x1xf32, #tpu.memory_space<vmem>>, vector<1x1x512x1xf32>
    %15 = vector.shape_cast %14 : vector<1x1x512x1xf32> to vector<512x1xf32>
    %16 = vector.broadcast %15 : vector<512x1xf32> to vector<512x128xf32>
    %17 = arith.mulf %1, %16 : vector<512x128xf32>
    %c1_16 = arith.constant 1 : index
    %c1_17 = arith.constant 1 : index
    %c0_18 = arith.constant 0 : index
    %c0_19 = arith.constant 0 : index
    %18 = vector.load %arg1[%c1_16, %c1_17, %c0_18, %c0_19] : memref<3x2x512x1xf32, #tpu.memory_space<vmem>>, vector<1x1x512x1xf32>
    %19 = vector.shape_cast %18 : vector<1x1x512x1xf32> to vector<512x1xf32>
    %20 = vector.broadcast %19 : vector<512x1xf32> to vector<512x128xf32>
    %21 = arith.mulf %3, %20 : vector<512x128xf32>
    %22 = arith.addf %17, %21 : vector<512x128xf32>
    %23 = arith.truncf %22 : vector<512x128xf32> to vector<512x128xbf16>
    %c2 = arith.constant 2 : index
    %c0_20 = arith.constant 0 : index
    %c0_21 = arith.constant 0 : index
    %c0_22 = arith.constant 0 : index
    %24 = vector.load %arg1[%c2, %c0_20, %c0_21, %c0_22] : memref<3x2x512x1xf32, #tpu.memory_space<vmem>>, vector<1x1x512x1xf32>
    %25 = vector.shape_cast %24 : vector<1x1x512x1xf32> to vector<512x1xf32>
    %26 = vector.broadcast %25 : vector<512x1xf32> to vector<512x128xf32>
    %27 = arith.mulf %1, %26 : vector<512x128xf32>
    %c2_23 = arith.constant 2 : index
    %c1_24 = arith.constant 1 : index
    %c0_25 = arith.constant 0 : index
    %c0_26 = arith.constant 0 : index
    %28 = vector.load %arg1[%c2_23, %c1_24, %c0_25, %c0_26] : memref<3x2x512x1xf32, #tpu.memory_space<vmem>>, vector<1x1x512x1xf32>
    %29 = vector.shape_cast %28 : vector<1x1x512x1xf32> to vector<512x1xf32>
    %30 = vector.broadcast %29 : vector<512x1xf32> to vector<512x128xf32>
    %31 = arith.mulf %3, %30 : vector<512x128xf32>
    %32 = arith.addf %27, %31 : vector<512x128xf32>
    %33 = arith.truncf %32 : vector<512x128xf32> to vector<512x128xbf16>
    %34 = tpu.concatenate %13, %23, %33 in 1 : vector<512x128xbf16>, vector<512x128xbf16>, vector<512x128xbf16> -> vector<512x384xbf16>
    %c0_27 = arith.constant 0 : index
    %c0_28 = arith.constant 0 : index
    %35 = vector.load %arg3[%c0_27, %c0_28] : memref<384x128xbf16, #tpu.memory_space<vmem>>, vector<384x128xbf16>
    %cst = arith.constant dense<0.000000e+00> : vector<512x128xf32>
    %36 = tpu.matmul %34, %35, %cst {dimension_numbers = #tpu.dot_dimension_numbers<[1], [0], [0], [1], [0, 0, 1, 1], [], []>} : vector<512x384xbf16>, vector<384x128xbf16>, vector<512x128xf32> -> vector<512x128xf32>
    %c0_29 = arith.constant 0 : index
    %c0_30 = arith.constant 0 : index
    %37 = vector.load %arg4[%c0_29, %c0_30] : memref<512x128xf32, #tpu.memory_space<vmem>>, vector<512x128xf32>
    tpu.vector_store %arg4[%c0_29, %c0_30], %36 {strides = array<i32>} : memref<512x128xf32, #tpu.memory_space<vmem>>, vector<512x128xf32>,
    return
  }
  func.func @transform_0(%arg0: i32) -> (i32, i32, i32, i32) {
    %c0_i32 = arith.constant 0 : i32
    %c0_i32_0 = arith.constant 0 : i32
    %c0_i32_1 = arith.constant 0 : i32
    %c0_i32_2 = arith.constant 0 : i32
    %c0_i32_3 = arith.constant 0 : i32
    return %c0_i32, %c0_i32_0, %c0_i32_1, %c0_i32_2 : i32, i32, i32, i32
  }
  func.func @transform_1(%arg0: i32) -> (i32, i32, i32) {
    %c0_i32 = arith.constant 0 : i32
    %c0_i32_0 = arith.constant 0 : i32
    %c0_i32_1 = arith.constant 0 : i32
    return %c0_i32, %arg0, %c0_i32_0 : i32, i32, i32
  }
  func.func @transform_2(%arg0: i32) -> (i32, i32) {
    %c0_i32 = arith.constant 0 : i32
    %c0_i32_0 = arith.constant 0 : i32
    %c0_i32_1 = arith.constant 0 : i32
    return %c0_i32, %c0_i32_0 : i32, i32
  }
  func.func @transform_3(%arg0: i32) -> (i32, i32) {
    %c0_i32 = arith.constant 0 : i32
    %c0_i32_0 = arith.constant 0 : i32
    return %arg0, %c0_i32 : i32, i32
  }
}

</mosaic_0001>

<llo_original>
// kernel: graph_filter_down.1
$region0: #{graph_filter_down.1}
  #allocation0 [shape = 'u32[]', space=smem, size = 0x4, offset = 0x4, fixed_abs, tag = 'smem constant byte address 0x4 - core index']
  #allocation1 [shape = 'u32[144,128]{1,0:T(1,128)}', space=vmem, size = 0x12000, scoped, tag = 'internal scratch']
  %s0 = inlined_call_operand.vmem [shape: f32[3,2,512,1], index: 0, kind: input, shape index: {}]
  %s1 = inlined_call_operand.vmem [shape: f32[2,1024,128], index: 1, kind: input, shape index: {}]
  %s2 = inlined_call_operand.vmem [shape: bf16[384,128], index: 2, kind: input, shape index: {}]
  %s3 = inlined_call_operand.hbm [shape: f32[1024,128], index: 3, kind: output, shape index: {}]
  %s4 = sld [smem:[#allocation0]]
  $region83: #{graph_filter_down.1} parent=0
    _
  %s6 = ssub.s32 1, %s4
  %s7 = scalar_select 0, %s6, %s4
  $region1: #{graph_filter_down.1} parent=0
    #allocation2 [shape = 'u8[1048576]{0}', space=vmem, size = 0x100000, scoped, tag = 'input window, operand 1']
    #allocation3 [shape = 'u8[524288]{0}', space=vmem, size = 0x80000, scoped, tag = 'output window, operand 0']
    #allocation4 [shape = 's32[2]{0}', space=sflag, size = 0x8, scoped, tag = 'scoped memory for graph_filter_down.1']
    %8 = vsyncpa [#allocation4], 0
    %s9 = scalar_lea.sflag [#allocation4], 1
    %10 = vsyncpa %s9, 0
    loop: start=0, step=1, limit=4
    $region2: #{graph_filter_down.1} parent=1 // loop_pre_header
      _
    $region3: #{graph_filter_down.1} parent=1 // loop_header
      %s12 = sphi 0, %s16
      %p13 = scmp.ge.s32.totalorder %s12, 4
      %s20 = sphi 0, %s20
      %s22 = sphi 0, %s20
      %s23 = sphi 0, %s22
      %s37 = sphi 0, %s23
      %s43 = sphi 0, %s45
      %s46 = sphi 0, %s43
      %s47 = sphi 0, %s46
      %s63 = sphi 0, %s47
      %s67 = sphi 0, %s67
      %s69 = sphi 0, %s67
      %s70 = sphi 0, %s69
      %s84 = sphi 0, %s70
      %s90 = sphi 0, %s92
      %s93 = sphi 0, %s90
      %s94 = sphi 0, %s93
      %s110 = sphi 0, %s94
    $region4: #{graph_filter_down.1} parent=1 // loop_header_branch
      %15 = sbr.rel (%p13) target = $region8
    $region5: #{graph_filter_down.1} parent=1 // loop_body
      %s17 = ssub.s32 %s12, 1
      %s18 = ssub.s32 %s12, 2
      %s19 = sadd.s32 %s12, 1
      %s21 = sadd.s32 %s20, 1
      %p24 = scmp.eq.s32.totalorder %s12, 1
      %p25 = scmp.ne.s32.totalorder %s20, %s22
      %p26 = scmp.eq.s32.totalorder %s12, 0
      %p27 = por %p25, %p26
      %p28 = scmp.ne.s32.totalorder %s20, %s22
      %p29 = scmp.eq.s32.totalorder %s17, 1
      %p30 = por %p28, %p29
      %p31 = scmp.ne.s32.totalorder %s22, %s23
      %p32 = scmp.eq.s32.totalorder %s17, 0
      %p33 = por %p31, %p32
      %p34 = scmp.ne.s32.totalorder %s22, %s23
      %p35 = scmp.eq.s32.totalorder %s18, 1
      %p36 = por %p34, %p35
      %p38 = scmp.ne.s32.totalorder %s23, %s37
      %p39 = scmp.eq.s32.totalorder %s18, 0
      %p40 = por %p38, %p39
      %s41 = ssub.s32 %s12, %s19
      %p42 = scmp.eq.s32.totalorder %s41, 0
      %s44 = sadd.s32 %s43, 1
      %s45 = scalar_select %p42, %s43, %s44
      %p48 = pneg %p42
      %p49 = scmp.eq.s32.totalorder %s12, 1
      %p50 = por %p48, %p49
      %p51 = scmp.ne.s32.totalorder %s43, %s46
      %p52 = scmp.eq.s32.totalorder %s12, 0
      %p53 = por %p51, %p52
      %p54 = scmp.ne.s32.totalorder %s43, %s46
      %p55 = scmp.eq.s32.totalorder %s17, 1
      %p56 = por %p54, %p55
      %p57 = scmp.ne.s32.totalorder %s46, %s47
      %p58 = scmp.eq.s32.totalorder %s17, 0
      %p59 = por %p57, %p58
      %p60 = scmp.ne.s32.totalorder %s46, %s47
      %p61 = scmp.eq.s32.totalorder %s18, 1
      %p62 = por %p60, %p61
      %p64 = scmp.ne.s32.totalorder %s47, %s63
      %p65 = scmp.eq.s32.totalorder %s18, 0
      %p66 = por %p64, %p65
      %s68 = sadd.s32 %s67, 1
      %p71 = scmp.eq.s32.totalorder %s12, 1
      %p72 = scmp.ne.s32.totalorder %s67, %s69
      %p73 = scmp.eq.s32.totalorder %s12, 0
      %p74 = por %p72, %p73
      %p75 = scmp.ne.s32.totalorder %s67, %s69
      %p76 = scmp.eq.s32.totalorder %s17, 1
      %p77 = por %p75, %p76
      %p78 = scmp.ne.s32.totalorder %s69, %s70
      %p79 = scmp.eq.s32.totalorder %s17, 0
      %p80 = por %p78, %p79
      %p81 = scmp.ne.s32.totalorder %s69, %s70
      %p82 = scmp.eq.s32.totalorder %s18, 1
      %p83 = por %p81, %p82
      %p85 = scmp.ne.s32.totalorder %s70, %s84
      %p86 = scmp.eq.s32.totalorder %s18, 0
      %p87 = por %p85, %p86
      %s88 = ssub.s32 %s12, %s19
      %p89 = scmp.eq.s32.totalorder %s88, 0
      %s91 = sadd.s32 %s90, 1
      %s92 = scalar_select %p89, %s90, %s91
      %p95 = pneg %p89
      %p96 = scmp.eq.s32.totalorder %s12, 1
      %p97 = por %p95, %p96
      %p98 = scmp.ne.s32.totalorder %s90, %s93
      %p99 = scmp.eq.s32.totalorder %s12, 0
      %p100 = por %p98, %p99
      %p101 = scmp.ne.s32.totalorder %s90, %s93
      %p102 = scmp.eq.s32.totalorder %s17, 1
      %p103 = por %p101, %p102
      %p104 = scmp.ne.s32.totalorder %s93, %s94
      %p105 = scmp.eq.s32.totalorder %s17, 0
      %p106 = por %p104, %p105
      %p107 = scmp.ne.s32.totalorder %s93, %s94
      %p108 = scmp.eq.s32.totalorder %s18, 1
      %p109 = por %p107, %p108
      %p111 = scmp.ne.s32.totalorder %s94, %s110
      %p112 = scmp.eq.s32.totalorder %s18, 0
      %p113 = por %p111, %p112
      %p114 = scmp.le.s32.totalorder 1, %s12
      %p115 = scmp.lt.s32.totalorder %s12, 3
      %p116 = pnand %p114, %p115
      %p117 = pneg %p116
      // Predicated region
      $region9: #{graph_filter_down.1} parent=5 // pred_check
        _
      $region10: #{graph_filter_down.1} parent=5 // pred_check_branch
        %119 = sbr.rel (%p116) target = $region12
      $region11: #{graph_filter_down.1} parent=5 // pred_region
        %s120 = ssub.s32 %s12, 1
        // Predicated region
        $region13: #{graph_filter_down.1} parent=11 // pred_check
          %p121 = pneg %p33
        $region14: #{graph_filter_down.1} parent=11 // pred_check_branch
          %123 = sbr.rel (%p121) target = $region16
        $region15: #{graph_filter_down.1} parent=11 // pred_region
          _
        $region16: #{graph_filter_down.1} parent=11 // pred_fallthru
          _
        // Predicated region
        $region17: #{graph_filter_down.1} parent=11 // pred_check
          %p124 = pneg %p80
        $region18: #{graph_filter_down.1} parent=11 // pred_check_branch
          %126 = sbr.rel (%p124) target = $region20
        $region19: #{graph_filter_down.1} parent=11 // pred_region
          _
        $region20: #{graph_filter_down.1} parent=11 // pred_fallthru
          _
      $region12: #{graph_filter_down.1} parent=5 // pred_fallthru
        _
      %p127 = scmp.lt.s32.totalorder %s12, 2
      // Predicated region
      $region21: #{graph_filter_down.1} parent=5 // pred_check
        %p128 = pneg %p127
      $region22: #{graph_filter_down.1} parent=5 // pred_check_branch
        %130 = sbr.rel (%p128) target = $region24
      $region23: #{graph_filter_down.1} parent=5 // pred_region
        // Predicated region
        $region25: #{graph_filter_down.1} parent=23 // pred_check
          %p131 = pneg %p53
        $region26: #{graph_filter_down.1} parent=23 // pred_check_branch
          %133 = sbr.rel (%p131) target = $region28
        $region27: #{graph_filter_down.1} parent=23 // pred_region
          %s134 = sand.u32 %s43, 1
          %s135 = sand.u32 %s43, 1
          %s136 = smul.addr %s135, 1024
          %s137 = scalar_lea.vmem [#allocation2], %s136
          %s138 = smul.u32 64, %s12
          %s139 = smul.addr %s138, 8
          %s140 = scalar_lea.vmem %s1, %s139
          // Predicated region
          $region29: #{graph_filter_down.1} parent=27 // pred_check
            _
          $region30: #{graph_filter_down.1} parent=27 // pred_check_branch
            %142 = sbr.rel (0) target = $region32
          $region31: #{graph_filter_down.1} parent=27 // pred_region
            // Predicated region
            $region33: #{graph_filter_down.1} parent=31 // pred_check
              _
            $region34: #{graph_filter_down.1} parent=31 // pred_check_branch
              %144 = sbr.rel (0) target = $region36
            $region35: #{graph_filter_down.1} parent=31 // pred_region
              // Predicated region
              $region48: #{graph_filter_down.1} parent=35 // pred_check
                _
              $region49: #{graph_filter_down.1} parent=35 // pred_check_branch
                %413 = sbr.rel (0) target = $region51
              $region50: #{graph_filter_down.1} parent=35 // pred_region
                loop: start=0, step=1, limit=1
                $region52: #{graph_filter_down.1} parent=50 // loop_pre_header
                  _
                $region53: #{graph_filter_down.1} parent=50 // loop_header
                  %s415 = sphi 0, %s419
                  %p416 = scmp.ge.s32.totalorder %s415, 1
                  %s420 = sphi %s140, %s140
                  %s421 = sphi %s137, %s137
                $region54: #{graph_filter_down.1} parent=50 // loop_header_branch
                  %418 = sbr.rel (%p416) target = $region58
                $region55: #{graph_filter_down.1} parent=50 // loop_body
                  %v422 = vld [vmem:[%s420] sm:$0xff]
                  %423 = vst [vmem:[%s421] sm:$0xff] %v422
                  %v424 = vld [vmem:[%s420 + $0x8] sm:$0xff]
                  %425 = vst [vmem:[%s421 + $0x8] sm:$0xff] %v424
                  %v426 = vld [vmem:[%s420 + $0x10] sm:$0xff]
                  %427 = vst [vmem:[%s421 + $0x10] sm:$0xff] %v426
                  %v428 = vld [vmem:[%s420 + $0x18] sm:$0xff]
                  %429 = vst [vmem:[%s421 + $0x18] sm:$0xff] %v428
                  %v430 = vld [vmem:[%s420 + $0x20] sm:$0xff]
                  %431 = vst [vmem:[%s421 + $0x20] sm:$0xff] %v430
                  %v432 = vld [vmem:[%s420 + $0x28] sm:$0xff]
                  %433 = vst [vmem:[%s421 + $0x28] sm:$0xff] %v432
                  %v434 = vld [vmem:[%s420 + $0x30] sm:$0xff]
                  %435 = vst [vmem:[%s421 + $0x30] sm:$0xff] %v434
                  %v436 = vld [vmem:[%s420 + $0x38] sm:$0xff]
                  %437 = vst [vmem:[%s421 + $0x38] sm:$0xff] %v436
                  %v438 = vld [vmem:[%s420 + $0x40] sm:$0xff]
                  %439 = vst [vmem:[%s421 + $0x40] sm:$0xff] %v438
                  %v440 = vld [vmem:[%s420 + $0x48] sm:$0xff]
                  %441 = vst [vmem:[%s421 + $0x48] sm:$0xff] %v440
                  %v442 = vld [vmem:[%s420 + $0x50] sm:$0xff]
                  %443 = vst [vmem:[%s421 + $0x50] sm:$0xff] %v442
                  %v444 = vld [vmem:[%s420 + $0x58] sm:$0xff]
                  %445 = vst [vmem:[%s421 + $0x58] sm:$0xff] %v444
                  %v446 = vld [vmem:[%s420 + $0x60] sm:$0xff]
                  %447 = vst [vmem:[%s421 + $0x60] sm:$0xff] %v446
                  %v448 = vld [vmem:[%s420 + $0x68] sm:$0xff]
                  %449 = vst [vmem:[%s421 + $0x68] sm:$0xff] %v448
                  %v450 = vld [vmem:[%s420 + $0x70] sm:$0xff]
                  %451 = vst [vmem:[%s421 + $0x70] sm:$0xff] %v450
                  %v452 = vld [vmem:[%s420 + $0x78] sm:$0xff]
                  %453 = vst [vmem:[%s421 + $0x78] sm:$0xff] %v452
                  %v454 = vld [vmem:[%s420 + $0x80] sm:$0xff]
                  %455 = vst [vmem:[%s421 + $0x80] sm:$0xff] %v454
                  %v456 = vld [vmem:[%s420 + $0x88] sm:$0xff]
                  %457 = vst [vmem:[%s421 + $0x88] sm:$0xff] %v456
                  %v458 = vld [vmem:[%s420 + $0x90] sm:$0xff]
                  %459 = vst [vmem:[%s421 + $0x90] sm:$0xff] %v458
                  %v460 = vld [vmem:[%s420 + $0x98] sm:$0xff]
                  %461 = vst [vmem:[%s421 + $0x98] sm:$0xff] %v460
                  %v462 = vld [vmem:[%s420 + $0xa0] sm:$0xff]
                  %463 = vst [vmem:[%s421 + $0xa0] sm:$0xff] %v462
                  %v464 = vld [vmem:[%s420 + $0xa8] sm:$0xff]
                  %465 = vst [vmem:[%s421 + $0xa8] sm:$0xff] %v464
                  %v466 = vld [vmem:[%s420 + $0xb0] sm:$0xff]
                  %467 = vst [vmem:[%s421 + $0xb0] sm:$0xff] %v466
                  %v468 = vld [vmem:[%s420 + $0xb8] sm:$0xff]
                  %469 = vst [vmem:[%s421 + $0xb8] sm:$0xff] %v468
                  %v470 = vld [vmem:[%s420 + $0xc0] sm:$0xff]
                  %471 = vst [vmem:[%s421 + $0xc0] sm:$0xff] %v470
                  %v472 = vld [vmem:[%s420 + $0xc8] sm:$0xff]
                  %473 = vst [vmem:[%s421 + $0xc8] sm:$0xff] %v472
                  %v474 = vld [vmem:[%s420 + $0xd0] sm:$0xff]
                  %475 = vst [vmem:[%s421 + $0xd0] sm:$0xff] %v474
                  %v476 = vld [vmem:[%s420 + $0xd8] sm:$0xff]
                  %477 = vst [vmem:[%s421 + $0xd8] sm:$0xff] %v476
                  %v478 = vld [vmem:[%s420 + $0xe0] sm:$0xff]
                  %479 = vst [vmem:[%s421 + $0xe0] sm:$0xff] %v478
                  %v480 = vld [vmem:[%s420 + $0xe8] sm:$0xff]
                  %481 = vst [vmem:[%s421 + $0xe8] sm:$0xff] %v480
                  %v482 = vld [vmem:[%s420 + $0xf0] sm:$0xff]
                  %483 = vst [vmem:[%s421 + $0xf0] sm:$0xff] %v482
                  %v484 = vld [vmem:[%s420 + $0xf8] sm:$0xff]
                  %485 = vst [vmem:[%s421 + $0xf8] sm:$0xff] %v484
                  %v486 = vld [vmem:[%s420 + $0x100] sm:$0xff]
                  %487 = vst [vmem:[%s421 + $0x100] sm:$0xff] %v486
                  %v488 = vld [vmem:[%s420 + $0x108] sm:$0xff]
                  %489 = vst [vmem:[%s421 + $0x108] sm:$0xff] %v488
                  %v490 = vld [vmem:[%s420 + $0x110] sm:$0xff]
                  %491 = vst [vmem:[%s421 + $0x110] sm:$0xff] %v490
                  %v492 = vld [vmem:[%s420 + $0x118] sm:$0xff]
                  %493 = vst [vmem:[%s421 + $0x118] sm:$0xff] %v492
                  %v494 = vld [vmem:[%s420 + $0x120] sm:$0xff]
                  %495 = vst [vmem:[%s421 + $0x120] sm:$0xff] %v494
                  %v496 = vld [vmem:[%s420 + $0x128] sm:$0xff]
                  %497 = vst [vmem:[%s421 + $0x128] sm:$0xff] %v496
                  %v498 = vld [vmem:[%s420 + $0x130] sm:$0xff]
                  %499 = vst [vmem:[%s421 + $0x130] sm:$0xff] %v498
                  %v500 = vld [vmem:[%s420 + $0x138] sm:$0xff]
                  %501 = vst [vmem:[%s421 + $0x138] sm:$0xff] %v500
                  %v502 = vld [vmem:[%s420 + $0x140] sm:$0xff]
                  %503 = vst [vmem:[%s421 + $0x140] sm:$0xff] %v502
                  %v504 = vld [vmem:[%s420 + $0x148] sm:$0xff]
                  %505 = vst [vmem:[%s421 + $0x148] sm:$0xff] %v504
                  %v506 = vld [vmem:[%s420 + $0x150] sm:$0xff]
                  %507 = vst [vmem:[%s421 + $0x150] sm:$0xff] %v506
                  %v508 = vld [vmem:[%s420 + $0x158] sm:$0xff]
                  %509 = vst [vmem:[%s421 + $0x158] sm:$0xff] %v508
                  %v510 = vld [vmem:[%s420 + $0x160] sm:$0xff]
                  %511 = vst [vmem:[%s421 + $0x160] sm:$0xff] %v510
                  %v512 = vld [vmem:[%s420 + $0x168] sm:$0xff]
                  %513 = vst [vmem:[%s421 + $0x168] sm:$0xff] %v512
                  %v514 = vld [vmem:[%s420 + $0x170] sm:$0xff]
                  %515 = vst [vmem:[%s421 + $0x170] sm:$0xff] %v514
                  %v516 = vld [vmem:[%s420 + $0x178] sm:$0xff]
                  %517 = vst [vmem:[%s421 + $0x178] sm:$0xff] %v516
                  %v518 = vld [vmem:[%s420 + $0x180] sm:$0xff]
                  %519 = vst [vmem:[%s421 + $0x180] sm:$0xff] %v518
                  %v520 = vld [vmem:[%s420 + $0x188] sm:$0xff]
                  %521 = vst [vmem:[%s421 + $0x188] sm:$0xff] %v520
                  %v522 = vld [vmem:[%s420 + $0x190] sm:$0xff]
                  %523 = vst [vmem:[%s421 + $0x190] sm:$0xff] %v522
                  %v524 = vld [vmem:[%s420 + $0x198] sm:$0xff]
                  %525 = vst [vmem:[%s421 + $0x198] sm:$0xff] %v524
                  %v526 = vld [vmem:[%s420 + $0x1a0] sm:$0xff]
                  %527 = vst [vmem:[%s421 + $0x1a0] sm:$0xff] %v526
                  %v528 = vld [vmem:[%s420 + $0x1a8] sm:$0xff]
                  %529 = vst [vmem:[%s421 + $0x1a8] sm:$0xff] %v528
                  %v530 = vld [vmem:[%s420 + $0x1b0] sm:$0xff]
                  %531 = vst [vmem:[%s421 + $0x1b0] sm:$0xff] %v530
                  %v532 = vld [vmem:[%s420 + $0x1b8] sm:$0xff]
                  %533 = vst [vmem:[%s421 + $0x1b8] sm:$0xff] %v532
                  %v534 = vld [vmem:[%s420 + $0x1c0] sm:$0xff]
                  %535 = vst [vmem:[%s421 + $0x1c0] sm:$0xff] %v534
                  %v536 = vld [vmem:[%s420 + $0x1c8] sm:$0xff]
                  %537 = vst [vmem:[%s421 + $0x1c8] sm:$0xff] %v536
                  %v538 = vld [vmem:[%s420 + $0x1d0] sm:$0xff]
                  %539 = vst [vmem:[%s421 + $0x1d0] sm:$0xff] %v538
                  %v540 = vld [vmem:[%s420 + $0x1d8] sm:$0xff]
                  %541 = vst [vmem:[%s421 + $0x1d8] sm:$0xff] %v540
                  %v542 = vld [vmem:[%s420 + $0x1e0] sm:$0xff]
                  %543 = vst [vmem:[%s421 + $0x1e0] sm:$0xff] %v542
                  %v544 = vld [vmem:[%s420 + $0x1e8] sm:$0xff]
                  %545 = vst [vmem:[%s421 + $0x1e8] sm:$0xff] %v544
                  %v546 = vld [vmem:[%s420 + $0x1f0] sm:$0xff]
                  %547 = vst [vmem:[%s421 + $0x1f0] sm:$0xff] %v546
                  %v548 = vld [vmem:[%s420 + $0x1f8] sm:$0xff]
                  %549 = vst [vmem:[%s421 + $0x1f8] sm:$0xff] %v548
                  %v550 = vld [vmem:[%s420 + $0x400] sm:$0xff]
                  %551 = vst [vmem:[%s421 + $0x200] sm:$0xff] %v550
                  %v552 = vld [vmem:[%s420 + $0x408] sm:$0xff]
                  %553 = vst [vmem:[%s421 + $0x208] sm:$0xff] %v552
                  %v554 = vld [vmem:[%s420 + $0x410] sm:$0xff]
                  %555 = vst [vmem:[%s421 + $0x210] sm:$0xff] %v554
                  %v556 = vld [vmem:[%s420 + $0x418] sm:$0xff]
                  %557 = vst [vmem:[%s421 + $0x218] sm:$0xff] %v556
                  %v558 = vld [vmem:[%s420 + $0x420] sm:$0xff]
                  %559 = vst [vmem:[%s421 + $0x220] sm:$0xff] %v558
                  %v560 = vld [vmem:[%s420 + $0x428] sm:$0xff]
                  %561 = vst [vmem:[%s421 + $0x228] sm:$0xff] %v560
                  %v562 = vld [vmem:[%s420 + $0x430] sm:$0xff]
                  %563 = vst [vmem:[%s421 + $0x230] sm:$0xff] %v562
                  %v564 = vld [vmem:[%s420 + $0x438] sm:$0xff]
                  %565 = vst [vmem:[%s421 + $0x238] sm:$0xff] %v564
                  %v566 = vld [vmem:[%s420 + $0x440] sm:$0xff]
                  %567 = vst [vmem:[%s421 + $0x240] sm:$0xff] %v566
                  %v568 = vld [vmem:[%s420 + $0x448] sm:$0xff]
                  %569 = vst [vmem:[%s421 + $0x248] sm:$0xff] %v568
                  %v570 = vld [vmem:[%s420 + $0x450] sm:$0xff]
                  %571 = vst [vmem:[%s421 + $0x250] sm:$0xff] %v570
                  %v572 = vld [vmem:[%s420 + $0x458] sm:$0xff]
                  %573 = vst [vmem:[%s421 + $0x258] sm:$0xff] %v572
                  %v574 = vld [vmem:[%s420 + $0x460] sm:$0xff]
                  %575 = vst [vmem:[%s421 + $0x260] sm:$0xff] %v574
                  %v576 = vld [vmem:[%s420 + $0x468] sm:$0xff]
                  %577 = vst [vmem:[%s421 + $0x268] sm:$0xff] %v576
                  %v578 = vld [vmem:[%s420 + $0x470] sm:$0xff]
                  %579 = vst [vmem:[%s421 + $0x270] sm:$0xff] %v578
                  %v580 = vld [vmem:[%s420 + $0x478] sm:$0xff]
                  %581 = vst [vmem:[%s421 + $0x278] sm:$0xff] %v580
                  %v582 = vld [vmem:[%s420 + $0x480] sm:$0xff]
                  %583 = vst [vmem:[%s421 + $0x280] sm:$0xff] %v582
                  %v584 = vld [vmem:[%s420 + $0x488] sm:$0xff]
                  %585 = vst [vmem:[%s421 + $0x288] sm:$0xff] %v584
                  %v586 = vld [vmem:[%s420 + $0x490] sm:$0xff]
                  %587 = vst [vmem:[%s421 + $0x290] sm:$0xff] %v586
                  %v588 = vld [vmem:[%s420 + $0x498] sm:$0xff]
                  %589 = vst [vmem:[%s421 + $0x298] sm:$0xff] %v588
                  %v590 = vld [vmem:[%s420 + $0x4a0] sm:$0xff]
                  %591 = vst [vmem:[%s421 + $0x2a0] sm:$0xff] %v590
                  %v592 = vld [vmem:[%s420 + $0x4a8] sm:$0xff]
                  %593 = vst [vmem:[%s421 + $0x2a8] sm:$0xff] %v592
                  %v594 = vld [vmem:[%s420 + $0x4b0] sm:$0xff]
                  %595 = vst [vmem:[%s421 + $0x2b0] sm:$0xff] %v594
                  %v596 = vld [vmem:[%s420 + $0x4b8] sm:$0xff]
                  %597 = vst [vmem:[%s421 + $0x2b8] sm:$0xff] %v596
                  %v598 = vld [vmem:[%s420 + $0x4c0] sm:$0xff]
                  %599 = vst [vmem:[%s421 + $0x2c0] sm:$0xff] %v598
                  %v600 = vld [vmem:[%s420 + $0x4c8] sm:$0xff]
                  %601 = vst [vmem:[%s421 + $0x2c8] sm:$0xff] %v600
                  %v602 = vld [vmem:[%s420 + $0x4d0] sm:$0xff]
                  %603 = vst [vmem:[%s421 + $0x2d0] sm:$0xff] %v602
                  %v604 = vld [vmem:[%s420 + $0x4d8] sm:$0xff]
                  %605 = vst [vmem:[%s421 + $0x2d8] sm:$0xff] %v604
                  %v606 = vld [vmem:[%s420 + $0x4e0] sm:$0xff]
                  %607 = vst [vmem:[%s421 + $0x2e0] sm:$0xff] %v606
                  %v608 = vld [vmem:[%s420 + $0x4e8] sm:$0xff]
                  %609 = vst [vmem:[%s421 + $0x2e8] sm:$0xff] %v608
                  %v610 = vld [vmem:[%s420 + $0x4f0] sm:$0xff]
                  %611 = vst [vmem:[%s421 + $0x2f0] sm:$0xff] %v610
                  %v612 = vld [vmem:[%s420 + $0x4f8] sm:$0xff]
                  %613 = vst [vmem:[%s421 + $0x2f8] sm:$0xff] %v612
                  %v614 = vld [vmem:[%s420 + $0x500] sm:$0xff]
                  %615 = vst [vmem:[%s421 + $0x300] sm:$0xff] %v614
                  %v616 = vld [vmem:[%s420 + $0x508] sm:$0xff]
                  %617 = vst [vmem:[%s421 + $0x308] sm:$0xff] %v616
                  %v618 = vld [vmem:[%s420 + $0x510] sm:$0xff]
                  %619 = vst [vmem:[%s421 + $0x310] sm:$0xff] %v618
                  %v620 = vld [vmem:[%s420 + $0x518] sm:$0xff]
                  %621 = vst [vmem:[%s421 + $0x318] sm:$0xff] %v620
                  %v622 = vld [vmem:[%s420 + $0x520] sm:$0xff]
                  %623 = vst [vmem:[%s421 + $0x320] sm:$0xff] %v622
                  %v624 = vld [vmem:[%s420 + $0x528] sm:$0xff]
                  %625 = vst [vmem:[%s421 + $0x328] sm:$0xff] %v624
                  %v626 = vld [vmem:[%s420 + $0x530] sm:$0xff]
                  %627 = vst [vmem:[%s421 + $0x330] sm:$0xff] %v626
                  %v628 = vld [vmem:[%s420 + $0x538] sm:$0xff]
                  %629 = vst [vmem:[%s421 + $0x338] sm:$0xff] %v628
                  %v630 = vld [vmem:[%s420 + $0x540] sm:$0xff]
                  %631 = vst [vmem:[%s421 + $0x340] sm:$0xff] %v630
                  %v632 = vld [vmem:[%s420 + $0x548] sm:$0xff]
                  %633 = vst [vmem:[%s421 + $0x348] sm:$0xff] %v632
                  %v634 = vld [vmem:[%s420 + $0x550] sm:$0xff]
                  %635 = vst [vmem:[%s421 + $0x350] sm:$0xff] %v634
                  %v636 = vld [vmem:[%s420 + $0x558] sm:$0xff]
                  %637 = vst [vmem:[%s421 + $0x358] sm:$0xff] %v636
                  %v638 = vld [vmem:[%s420 + $0x560] sm:$0xff]
                  %639 = vst [vmem:[%s421 + $0x360] sm:$0xff] %v638
                  %v640 = vld [vmem:[%s420 + $0x568] sm:$0xff]
                  %641 = vst [vmem:[%s421 + $0x368] sm:$0xff] %v640
                  %v642 = vld [vmem:[%s420 + $0x570] sm:$0xff]
                  %643 = vst [vmem:[%s421 + $0x370] sm:$0xff] %v642
                  %v644 = vld [vmem:[%s420 + $0x578] sm:$0xff]
                  %645 = vst [vmem:[%s421 + $0x378] sm:$0xff] %v644
                  %v646 = vld [vmem:[%s420 + $0x580] sm:$0xff]
                  %647 = vst [vmem:[%s421 + $0x380] sm:$0xff] %v646
                  %v648 = vld [vmem:[%s420 + $0x588] sm:$0xff]
                  %649 = vst [vmem:[%s421 + $0x388] sm:$0xff] %v648
                  %v650 = vld [vmem:[%s420 + $0x590] sm:$0xff]
                  %651 = vst [vmem:[%s421 + $0x390] sm:$0xff] %v650
                  %v652 = vld [vmem:[%s420 + $0x598] sm:$0xff]
                  %653 = vst [vmem:[%s421 + $0x398] sm:$0xff] %v652
                  %v654 = vld [vmem:[%s420 + $0x5a0] sm:$0xff]
                  %655 = vst [vmem:[%s421 + $0x3a0] sm:$0xff] %v654
                  %v656 = vld [vmem:[%s420 + $0x5a8] sm:$0xff]
                  %657 = vst [vmem:[%s421 + $0x3a8] sm:$0xff] %v656
                  %v658 = vld [vmem:[%s420 + $0x5b0] sm:$0xff]
                  %659 = vst [vmem:[%s421 + $0x3b0] sm:$0xff] %v658
                  %v660 = vld [vmem:[%s420 + $0x5b8] sm:$0xff]
                  %661 = vst [vmem:[%s421 + $0x3b8] sm:$0xff] %v660
                  %v662 = vld [vmem:[%s420 + $0x5c0] sm:$0xff]
                  %663 = vst [vmem:[%s421 + $0x3c0] sm:$0xff] %v662
                  %v664 = vld [vmem:[%s420 + $0x5c8] sm:$0xff]
                  %665 = vst [vmem:[%s421 + $0x3c8] sm:$0xff] %v664
                  %v666 = vld [vmem:[%s420 + $0x5d0] sm:$0xff]
                  %667 = vst [vmem:[%s421 + $0x3d0] sm:$0xff] %v666
                  %v668 = vld [vmem:[%s420 + $0x5d8] sm:$0xff]
                  %669 = vst [vmem:[%s421 + $0x3d8] sm:$0xff] %v668
                  %v670 = vld [vmem:[%s420 + $0x5e0] sm:$0xff]
                  %671 = vst [vmem:[%s421 + $0x3e0] sm:$0xff] %v670
                  %v672 = vld [vmem:[%s420 + $0x5e8] sm:$0xff]
                  %673 = vst [vmem:[%s421 + $0x3e8] sm:$0xff] %v672
                  %v674 = vld [vmem:[%s420 + $0x5f0] sm:$0xff]
                  %675 = vst [vmem:[%s421 + $0x3f0] sm:$0xff] %v674
                  %v676 = vld [vmem:[%s420 + $0x5f8] sm:$0xff]
                  %677 = vst [vmem:[%s421 + $0x3f8] sm:$0xff] %v676
                $region56: #{graph_filter_down.1} parent=50 // loop_footer
                  %s419 = sadd.s32 1, %s415
                $region57: #{graph_filter_down.1} parent=50 // loop_footer_branch
                  %414 = sbr.rel target = $region53
                $region58: #{graph_filter_down.1} parent=50 // loop_exit
                  _
              $region51: #{graph_filter_down.1} parent=35 // pred_fallthru
                _
              // Predicated region
              $region59: #{graph_filter_down.1} parent=35 // pred_check
                _
              $region60: #{graph_filter_down.1} parent=35 // pred_check_branch
                %679 = sbr.rel target = $region62
              $region61: #{graph_filter_down.1} parent=35 // pred_region
                _
              $region62: #{graph_filter_down.1} parent=35 // pred_fallthru
                _
            $region36: #{graph_filter_down.1} parent=31 // pred_fallthru
              _
            // Predicated region
            $region37: #{graph_filter_down.1} parent=31 // pred_check
              _
            $region38: #{graph_filter_down.1} parent=31 // pred_check_branch
              %146 = sbr.rel target = $region40
            $region39: #{graph_filter_down.1} parent=31 // pred_region
              loop: start=0, step=1, limit=1
              $region41: #{graph_filter_down.1} parent=39 // loop_pre_header
                _
              $region42: #{graph_filter_down.1} parent=39 // loop_header
                %s149 = sphi 0, %s153
                %p150 = scmp.ge.s32.totalorder %s149, 1
                %s154 = sphi %s140, %s140
                %s155 = sphi %s137, %s137
              $region43: #{graph_filter_down.1} parent=39 // loop_header_branch
                %152 = sbr.rel (%p150) target = $region47
              $region44: #{graph_filter_down.1} parent=39 // loop_body
                %v156 = vld [vmem:[%s154] sm:$0xff]
                %157 = vst [vmem:[%s155] sm:$0xff] %v156
                %v158 = vld [vmem:[%s154 + $0x8] sm:$0xff]
                %159 = vst [vmem:[%s155 + $0x8] sm:$0xff] %v158
                %v160 = vld [vmem:[%s154 + $0x10] sm:$0xff]
                %161 = vst [vmem:[%s155 + $0x10] sm:$0xff] %v160
                %v162 = vld [vmem:[%s154 + $0x18] sm:$0xff]
                %163 = vst [vmem:[%s155 + $0x18] sm:$0xff] %v162
                %v164 = vld [vmem:[%s154 + $0x20] sm:$0xff]
                %165 = vst [vmem:[%s155 + $0x20] sm:$0xff] %v164
                %v166 = vld [vmem:[%s154 + $0x28] sm:$0xff]
                %167 = vst [vmem:[%s155 + $0x28] sm:$0xff] %v166
                %v168 = vld [vmem:[%s154 + $0x30] sm:$0xff]
                %169 = vst [vmem:[%s155 + $0x30] sm:$0xff] %v168
                %v170 = vld [vmem:[%s154 + $0x38] sm:$0xff]
                %171 = vst [vmem:[%s155 + $0x38] sm:$0xff] %v170
                %v172 = vld [vmem:[%s154 + $0x40] sm:$0xff]
                %173 = vst [vmem:[%s155 + $0x40] sm:$0xff] %v172
                %v174 = vld [vmem:[%s154 + $0x48] sm:$0xff]
                %175 = vst [vmem:[%s155 + $0x48] sm:$0xff] %v174
                %v176 = vld [vmem:[%s154 + $0x50] sm:$0xff]
                %177 = vst [vmem:[%s155 + $0x50] sm:$0xff] %v176
                %v178 = vld [vmem:[%s154 + $0x58] sm:$0xff]
                %179 = vst [vmem:[%s155 + $0x58] sm:$0xff] %v178
                %v180 = vld [vmem:[%s154 + $0x60] sm:$0xff]
                %181 = vst [vmem:[%s155 + $0x60] sm:$0xff] %v180
                %v182 = vld [vmem:[%s154 + $0x68] sm:$0xff]
                %183 = vst [vmem:[%s155 + $0x68] sm:$0xff] %v182
                %v184 = vld [vmem:[%s154 + $0x70] sm:$0xff]
                %185 = vst [vmem:[%s155 + $0x70] sm:$0xff] %v184
                %v186 = vld [vmem:[%s154 + $0x78] sm:$0xff]
                %187 = vst [vmem:[%s155 + $0x78] sm:$0xff] %v186
                %v188 = vld [vmem:[%s154 + $0x80] sm:$0xff]
                %189 = vst [vmem:[%s155 + $0x80] sm:$0xff] %v188
                %v190 = vld [vmem:[%s154 + $0x88] sm:$0xff]
                %191 = vst [vmem:[%s155 + $0x88] sm:$0xff] %v190
                %v192 = vld [vmem:[%s154 + $0x90] sm:$0xff]
                %193 = vst [vmem:[%s155 + $0x90] sm:$0xff] %v192
                %v194 = vld [vmem:[%s154 + $0x98] sm:$0xff]
                %195 = vst [vmem:[%s155 + $0x98] sm:$0xff] %v194
                %v196 = vld [vmem:[%s154 + $0xa0] sm:$0xff]
                %197 = vst [vmem:[%s155 + $0xa0] sm:$0xff] %v196
                %v198 = vld [vmem:[%s154 + $0xa8] sm:$0xff]
                %199 = vst [vmem:[%s155 + $0xa8] sm:$0xff] %v198
                %v200 = vld [vmem:[%s154 + $0xb0] sm:$0xff]
                %201 = vst [vmem:[%s155 + $0xb0] sm:$0xff] %v200
                %v202 = vld [vmem:[%s154 + $0xb8] sm:$0xff]
                %203 = vst [vmem:[%s155 + $0xb8] sm:$0xff] %v202
                %v204 = vld [vmem:[%s154 + $0xc0] sm:$0xff]
                %205 = vst [vmem:[%s155 + $0xc0] sm:$0xff] %v204
                %v206 = vld [vmem:[%s154 + $0xc8] sm:$0xff]
                %207 = vst [vmem:[%s155 + $0xc8] sm:$0xff] %v206
                %v208 = vld [vmem:[%s154 + $0xd0] sm:$0xff]
                %209 = vst [vmem:[%s155 + $0xd0] sm:$0xff] %v208
                %v210 = vld [vmem:[%s154 + $0xd8] sm:$0xff]
                %211 = vst [vmem:[%s155 + $0xd8] sm:$0xff] %v210
                %v212 = vld [vmem:[%s154 + $0xe0] sm:$0xff]
                %213 = vst [vmem:[%s155 + $0xe0] sm:$0xff] %v212
                %v214 = vld [vmem:[%s154 + $0xe8] sm:$0xff]
                %215 = vst [vmem:[%s155 + $0xe8] sm:$0xff] %v214
                %v216 = vld [vmem:[%s154 + $0xf0] sm:$0xff]
                %217 = vst [vmem:[%s155 + $0xf0] sm:$0xff] %v216
                %v218 = vld [vmem:[%s154 + $0xf8] sm:$0xff]
                %219 = vst [vmem:[%s155 + $0xf8] sm:$0xff] %v218
                %v220 = vld [vmem:[%s154 + $0x100] sm:$0xff]
                %221 = vst [vmem:[%s155 + $0x100] sm:$0xff] %v220
                %v222 = vld [vmem:[%s154 + $0x108] sm:$0xff]
                %223 = vst [vmem:[%s155 + $0x108] sm:$0xff] %v222
                %v224 = vld [vmem:[%s154 + $0x110] sm:$0xff]
                %225 = vst [vmem:[%s155 + $0x110] sm:$0xff] %v224
                %v226 = vld [vmem:[%s154 + $0x118] sm:$0xff]
                %227 = vst [vmem:[%s155 + $0x118] sm:$0xff] %v226
                %v228 = vld [vmem:[%s154 + $0x120] sm:$0xff]
                %229 = vst [vmem:[%s155 + $0x120] sm:$0xff] %v228
                %v230 = vld [vmem:[%s154 + $0x128] sm:$0xff]
                %231 = vst [vmem:[%s155 + $0x128] sm:$0xff] %v230
                %v232 = vld [vmem:[%s154 + $0x130] sm:$0xff]
                %233 = vst [vmem:[%s155 + $0x130] sm:$0xff] %v232
                %v234 = vld [vmem:[%s154 + $0x138] sm:$0xff]
                %235 = vst [vmem:[%s155 + $0x138] sm:$0xff] %v234
                %v236 = vld [vmem:[%s154 + $0x140] sm:$0xff]
                %237 = vst [vmem:[%s155 + $0x140] sm:$0xff] %v236
                %v238 = vld [vmem:[%s154 + $0x148] sm:$0xff]
                %239 = vst [vmem:[%s155 + $0x148] sm:$0xff] %v238
                %v240 = vld [vmem:[%s154 + $0x150] sm:$0xff]
                %241 = vst [vmem:[%s155 + $0x150] sm:$0xff] %v240
                %v242 = vld [vmem:[%s154 + $0x158] sm:$0xff]
                %243 = vst [vmem:[%s155 + $0x158] sm:$0xff] %v242
                %v244 = vld [vmem:[%s154 + $0x160] sm:$0xff]
                %245 = vst [vmem:[%s155 + $0x160] sm:$0xff] %v244
                %v246 = vld [vmem:[%s154 + $0x168] sm:$0xff]
                %247 = vst [vmem:[%s155 + $0x168] sm:$0xff] %v246
                %v248 = vld [vmem:[%s154 + $0x170] sm:$0xff]
                %249 = vst [vmem:[%s155 + $0x170] sm:$0xff] %v248
                %v250 = vld [vmem:[%s154 + $0x178] sm:$0xff]
                %251 = vst [vmem:[%s155 + $0x178] sm:$0xff] %v250
                %v252 = vld [vmem:[%s154 + $0x180] sm:$0xff]
                %253 = vst [vmem:[%s155 + $0x180] sm:$0xff] %v252
                %v254 = vld [vmem:[%s154 + $0x188] sm:$0xff]
                %255 = vst [vmem:[%s155 + $0x188] sm:$0xff] %v254
                %v256 = vld [vmem:[%s154 + $0x190] sm:$0xff]
                %257 = vst [vmem:[%s155 + $0x190] sm:$0xff] %v256
                %v258 = vld [vmem:[%s154 + $0x198] sm:$0xff]
                %259 = vst [vmem:[%s155 + $0x198] sm:$0xff] %v258
                %v260 = vld [vmem:[%s154 + $0x1a0] sm:$0xff]
                %261 = vst [vmem:[%s155 + $0x1a0] sm:$0xff] %v260
                %v262 = vld [vmem:[%s154 + $0x1a8] sm:$0xff]
                %263 = vst [vmem:[%s155 + $0x1a8] sm:$0xff] %v262
                %v264 = vld [vmem:[%s154 + $0x1b0] sm:$0xff]
                %265 = vst [vmem:[%s155 + $0x1b0] sm:$0xff] %v264
                %v266 = vld [vmem:[%s154 + $0x1b8] sm:$0xff]
                %267 = vst [vmem:[%s155 + $0x1b8] sm:$0xff] %v266
                %v268 = vld [vmem:[%s154 + $0x1c0] sm:$0xff]
                %269 = vst [vmem:[%s155 + $0x1c0] sm:$0xff] %v268
                %v270 = vld [vmem:[%s154 + $0x1c8] sm:$0xff]
                %271 = vst [vmem:[%s155 + $0x1c8] sm:$0xff] %v270
                %v272 = vld [vmem:[%s154 + $0x1d0] sm:$0xff]
                %273 = vst [vmem:[%s155 + $0x1d0] sm:$0xff] %v272
                %v274 = vld [vmem:[%s154 + $0x1d8] sm:$0xff]
                %275 = vst [vmem:[%s155 + $0x1d8] sm:$0xff] %v274
                %v276 = vld [vmem:[%s154 + $0x1e0] sm:$0xff]
                %277 = vst [vmem:[%s155 + $0x1e0] sm:$0xff] %v276
                %v278 = vld [vmem:[%s154 + $0x1e8] sm:$0xff]
                %279 = vst [vmem:[%s155 + $0x1e8] sm:$0xff] %v278
                %v280 = vld [vmem:[%s154 + $0x1f0] sm:$0xff]
                %281 = vst [vmem:[%s155 + $0x1f0] sm:$0xff] %v280
                %v282 = vld [vmem:[%s154 + $0x1f8] sm:$0xff]
                %283 = vst [vmem:[%s155 + $0x1f8] sm:$0xff] %v282
                %v284 = vld [vmem:[%s154 + $0x400] sm:$0xff]
                %285 = vst [vmem:[%s155 + $0x200] sm:$0xff] %v284
                %v286 = vld [vmem:[%s154 + $0x408] sm:$0xff]
                %287 = vst [vmem:[%s155 + $0x208] sm:$0xff] %v286
                %v288 = vld [vmem:[%s154 + $0x410] sm:$0xff]
                %289 = vst [vmem:[%s155 + $0x210] sm:$0xff] %v288
                %v290 = vld [vmem:[%s154 + $0x418] sm:$0xff]
                %291 = vst [vmem:[%s155 + $0x218] sm:$0xff] %v290
                %v292 = vld [vmem:[%s154 + $0x420] sm:$0xff]
                %293 = vst [vmem:[%s155 + $0x220] sm:$0xff] %v292
                %v294 = vld [vmem:[%s154 + $0x428] sm:$0xff]
                %295 = vst [vmem:[%s155 + $0x228] sm:$0xff] %v294
                %v296 = vld [vmem:[%s154 + $0x430] sm:$0xff]
                %297 = vst [vmem:[%s155 + $0x230] sm:$0xff] %v296
                %v298 = vld [vmem:[%s154 + $0x438] sm:$0xff]
                %299 = vst [vmem:[%s155 + $0x238] sm:$0xff] %v298
                %v300 = vld [vmem:[%s154 + $0x440] sm:$0xff]
                %301 = vst [vmem:[%s155 + $0x240] sm:$0xff] %v300
                %v302 = vld [vmem:[%s154 + $0x448] sm:$0xff]
                %303 = vst [vmem:[%s155 + $0x248] sm:$0xff] %v302
                %v304 = vld [vmem:[%s154 + $0x450] sm:$0xff]
                %305 = vst [vmem:[%s155 + $0x250] sm:$0xff] %v304
                %v306 = vld [vmem:[%s154 + $0x458] sm:$0xff]
                %307 = vst [vmem:[%s155 + $0x258] sm:$0xff] %v306
                %v308 = vld [vmem:[%s154 + $0x460] sm:$0xff]
                %309 = vst [vmem:[%s155 + $0x260] sm:$0xff] %v308
                %v310 = vld [vmem:[%s154 + $0x468] sm:$0xff]
                %311 = vst [vmem:[%s155 + $0x268] sm:$0xff] %v310
                %v312 = vld [vmem:[%s154 + $0x470] sm:$0xff]
                %313 = vst [vmem:[%s155 + $0x270] sm:$0xff] %v312
                %v314 = vld [vmem:[%s154 + $0x478] sm:$0xff]
                %315 = vst [vmem:[%s155 + $0x278] sm:$0xff] %v314
                %v316 = vld [vmem:[%s154 + $0x480] sm:$0xff]
                %317 = vst [vmem:[%s155 + $0x280] sm:$0xff] %v316
                %v318 = vld [vmem:[%s154 + $0x488] sm:$0xff]
                %319 = vst [vmem:[%s155 + $0x288] sm:$0xff] %v318
                %v320 = vld [vmem:[%s154 + $0x490] sm:$0xff]
                %321 = vst [vmem:[%s155 + $0x290] sm:$0xff] %v320
                %v322 = vld [vmem:[%s154 + $0x498] sm:$0xff]
                %323 = vst [vmem:[%s155 + $0x298] sm:$0xff] %v322
                %v324 = vld [vmem:[%s154 + $0x4a0] sm:$0xff]
                %325 = vst [vmem:[%s155 + $0x2a0] sm:$0xff] %v324
                %v326 = vld [vmem:[%s154 + $0x4a8] sm:$0xff]
                %327 = vst [vmem:[%s155 + $0x2a8] sm:$0xff] %v326
                %v328 = vld [vmem:[%s154 + $0x4b0] sm:$0xff]
                %329 = vst [vmem:[%s155 + $0x2b0] sm:$0xff] %v328
                %v330 = vld [vmem:[%s154 + $0x4b8] sm:$0xff]
                %331 = vst [vmem:[%s155 + $0x2b8] sm:$0xff] %v330
                %v332 = vld [vmem:[%s154 + $0x4c0] sm:$0xff]
                %333 = vst [vmem:[%s155 + $0x2c0] sm:$0xff] %v332
                %v334 = vld [vmem:[%s154 + $0x4c8] sm:$0xff]
                %335 = vst [vmem:[%s155 + $0x2c8] sm:$0xff] %v334
                %v336 = vld [vmem:[%s154 + $0x4d0] sm:$0xff]
                %337 = vst [vmem:[%s155 + $0x2d0] sm:$0xff] %v336
                %v338 = vld [vmem:[%s154 + $0x4d8] sm:$0xff]
                %339 = vst [vmem:[%s155 + $0x2d8] sm:$0xff] %v338
                %v340 = vld [vmem:[%s154 + $0x4e0] sm:$0xff]
                %341 = vst [vmem:[%s155 + $0x2e0] sm:$0xff] %v340
                %v342 = vld [vmem:[%s154 + $0x4e8] sm:$0xff]
                %343 = vst [vmem:[%s155 + $0x2e8] sm:$0xff] %v342
                %v344 = vld [vmem:[%s154 + $0x4f0] sm:$0xff]
                %345 = vst [vmem:[%s155 + $0x2f0] sm:$0xff] %v344
                %v346 = vld [vmem:[%s154 + $0x4f8] sm:$0xff]
                %347 = vst [vmem:[%s155 + $0x2f8] sm:$0xff] %v346
                %v348 = vld [vmem:[%s154 + $0x500] sm:$0xff]
                %349 = vst [vmem:[%s155 + $0x300] sm:$0xff] %v348
                %v350 = vld [vmem:[%s154 + $0x508] sm:$0xff]
                %351 = vst [vmem:[%s155 + $0x308] sm:$0xff] %v350
                %v352 = vld [vmem:[%s154 + $0x510] sm:$0xff]
                %353 = vst [vmem:[%s155 + $0x310] sm:$0xff] %v352
                %v354 = vld [vmem:[%s154 + $0x518] sm:$0xff]
                %355 = vst [vmem:[%s155 + $0x318] sm:$0xff] %v354
                %v356 = vld [vmem:[%s154 + $0x520] sm:$0xff]
                %357 = vst [vmem:[%s155 + $0x320] sm:$0xff] %v356
                %v358 = vld [vmem:[%s154 + $0x528] sm:$0xff]
                %359 = vst [vmem:[%s155 + $0x328] sm:$0xff] %v358
                %v360 = vld [vmem:[%s154 + $0x530] sm:$0xff]
                %361 = vst [vmem:[%s155 + $0x330] sm:$0xff] %v360
                %v362 = vld [vmem:[%s154 + $0x538] sm:$0xff]
                %363 = vst [vmem:[%s155 + $0x338] sm:$0xff] %v362
                %v364 = vld [vmem:[%s154 + $0x540] sm:$0xff]
                %365 = vst [vmem:[%s155 + $0x340] sm:$0xff] %v364
                %v366 = vld [vmem:[%s154 + $0x548] sm:$0xff]
                %367 = vst [vmem:[%s155 + $0x348] sm:$0xff] %v366
                %v368 = vld [vmem:[%s154 + $0x550] sm:$0xff]
                %369 = vst [vmem:[%s155 + $0x350] sm:$0xff] %v368
                %v370 = vld [vmem:[%s154 + $0x558] sm:$0xff]
                %371 = vst [vmem:[%s155 + $0x358] sm:$0xff] %v370
                %v372 = vld [vmem:[%s154 + $0x560] sm:$0xff]
                %373 = vst [vmem:[%s155 + $0x360] sm:$0xff] %v372
                %v374 = vld [vmem:[%s154 + $0x568] sm:$0xff]
                %375 = vst [vmem:[%s155 + $0x368] sm:$0xff] %v374
                %v376 = vld [vmem:[%s154 + $0x570] sm:$0xff]
                %377 = vst [vmem:[%s155 + $0x370] sm:$0xff] %v376
                %v378 = vld [vmem:[%s154 + $0x578] sm:$0xff]
                %379 = vst [vmem:[%s155 + $0x378] sm:$0xff] %v378
                %v380 = vld [vmem:[%s154 + $0x580] sm:$0xff]
                %381 = vst [vmem:[%s155 + $0x380] sm:$0xff] %v380
                %v382 = vld [vmem:[%s154 + $0x588] sm:$0xff]
                %383 = vst [vmem:[%s155 + $0x388] sm:$0xff] %v382
                %v384 = vld [vmem:[%s154 + $0x590] sm:$0xff]
                %385 = vst [vmem:[%s155 + $0x390] sm:$0xff] %v384
                %v386 = vld [vmem:[%s154 + $0x598] sm:$0xff]
                %387 = vst [vmem:[%s155 + $0x398] sm:$0xff] %v386
                %v388 = vld [vmem:[%s154 + $0x5a0] sm:$0xff]
                %389 = vst [vmem:[%s155 + $0x3a0] sm:$0xff] %v388
                %v390 = vld [vmem:[%s154 + $0x5a8] sm:$0xff]
                %391 = vst [vmem:[%s155 + $0x3a8] sm:$0xff] %v390
                %v392 = vld [vmem:[%s154 + $0x5b0] sm:$0xff]
                %393 = vst [vmem:[%s155 + $0x3b0] sm:$0xff] %v392
                %v394 = vld [vmem:[%s154 + $0x5b8] sm:$0xff]
                %395 = vst [vmem:[%s155 + $0x3b8] sm:$0xff] %v394
                %v396 = vld [vmem:[%s154 + $0x5c0] sm:$0xff]
                %397 = vst [vmem:[%s155 + $0x3c0] sm:$0xff] %v396
                %v398 = vld [vmem:[%s154 + $0x5c8] sm:$0xff]
                %399 = vst [vmem:[%s155 + $0x3c8] sm:$0xff] %v398
                %v400 = vld [vmem:[%s154 + $0x5d0] sm:$0xff]
                %401 = vst [vmem:[%s155 + $0x3d0] sm:$0xff] %v400
                %v402 = vld [vmem:[%s154 + $0x5d8] sm:$0xff]
                %403 = vst [vmem:[%s155 + $0x3d8] sm:$0xff] %v402
                %v404 = vld [vmem:[%s154 + $0x5e0] sm:$0xff]
                %405 = vst [vmem:[%s155 + $0x3e0] sm:$0xff] %v404
                %v406 = vld [vmem:[%s154 + $0x5e8] sm:$0xff]
                %407 = vst [vmem:[%s155 + $0x3e8] sm:$0xff] %v406
                %v408 = vld [vmem:[%s154 + $0x5f0] sm:$0xff]
                %409 = vst [vmem:[%s155 + $0x3f0] sm:$0xff] %v408
                %v410 = vld [vmem:[%s154 + $0x5f8] sm:$0xff]
                %411 = vst [vmem:[%s155 + $0x3f8] sm:$0xff] %v410
              $region45: #{graph_filter_down.1} parent=39 // loop_footer
                %s153 = sadd.s32 1, %s149
              $region46: #{graph_filter_down.1} parent=39 // loop_footer_branch
                %148 = sbr.rel target = $region42
              $region47: #{graph_filter_down.1} parent=39 // loop_exit
                _
            $region40: #{graph_filter_down.1} parent=31 // pred_fallthru
              _
          $region32: #{graph_filter_down.1} parent=27 // pred_fallthru
            _
          %680 = vnop
        $region28: #{graph_filter_down.1} parent=23 // pred_fallthru
          _
      $region24: #{graph_filter_down.1} parent=5 // pred_fallthru
        _
      %p681 = scmp.le.s32.totalorder 1, %s12
      %p682 = scmp.lt.s32.totalorder %s12, 3
      %p683 = pnand %p681, %p682
      %p684 = pneg %p683
      // Predicated region
      $region63: #{graph_filter_down.1} parent=5 // pred_check
        _
      $region64: #{graph_filter_down.1} parent=5 // pred_check_branch
        %686 = sbr.rel (%p683) target = $region66
      $region65: #{graph_filter_down.1} parent=5 // pred_region
        %s687 = ssub.s32 %s12, 1
        %s688 = sand.u32 %s46, 1
        %s689 = sand.u32 %s46, 1
        %s690 = smul.addr %s689, 1024
        %s691 = scalar_lea.vmem [#allocation2], %s690
        // Predicated region
        $region67: #{graph_filter_down.1} parent=65 // pred_check
          %p692 = pneg %p59
        $region68: #{graph_filter_down.1} parent=65 // pred_check_branch
          %694 = sbr.rel (%p692) target = $region70
        $region69: #{graph_filter_down.1} parent=65 // pred_region
          _
        $region70: #{graph_filter_down.1} parent=65 // pred_fallthru
          _
        %p695 = pneg %p33
        %p696 = pneg %p30
        %s697 = sand.u32 %s46, 1
        %s698 = sand.u32 %s46, 1
        %s699 = smul.addr %s698, 1024
        %s700 = scalar_lea.vmem [#allocation2], %s699
        %p701 = pneg %p59
        %p702 = pneg %p56
        %p703 = pneg %p80
        %p704 = pneg %p77
        %p705 = pneg %p106
        %p706 = pneg %p103
        %s707 = sand.u32 %s93, 1
        %s708 = scalar_lea.sflag [#allocation4], %s707
        %s709 = sand.u32 %s93, 1
        %s710 = smul.addr %s709, 512
        %s711 = scalar_lea.vmem [#allocation3], %s710
        %s712 = smul.u32 64, %s17
        %s713 = smul.u32 64, %s17
        %v715 = vld [vmem:[%s691] sm:$0xff]
        %v716 = vld [vmem:[%s691 + $0x8] sm:$0xff]
        %v717 = vld [vmem:[%s691 + $0x10] sm:$0xff]
        %v718 = vld [vmem:[%s691 + $0x18] sm:$0xff]
        %v719 = vld [vmem:[%s691 + $0x20] sm:$0xff]
        %v720 = vld [vmem:[%s691 + $0x28] sm:$0xff]
        %v721 = vld [vmem:[%s691 + $0x30] sm:$0xff]
        %v722 = vld [vmem:[%s691 + $0x38] sm:$0xff]
        %v723 = vld [vmem:[%s691 + $0x40] sm:$0xff]
        %v724 = vld [vmem:[%s691 + $0x48] sm:$0xff]
        %v725 = vld [vmem:[%s691 + $0x50] sm:$0xff]
        %v726 = vld [vmem:[%s691 + $0x58] sm:$0xff]
        %v727 = vld [vmem:[%s691 + $0x60] sm:$0xff]
        %v728 = vld [vmem:[%s691 + $0x68] sm:$0xff]
        %v729 = vld [vmem:[%s691 + $0x70] sm:$0xff]
        %v730 = vld [vmem:[%s691 + $0x78] sm:$0xff]
        %v731 = vld [vmem:[%s691 + $0x80] sm:$0xff]
        %v732 = vld [vmem:[%s691 + $0x88] sm:$0xff]
        %v733 = vld [vmem:[%s691 + $0x90] sm:$0xff]
        %v734 = vld [vmem:[%s691 + $0x98] sm:$0xff]
        %v735 = vld [vmem:[%s691 + $0xa0] sm:$0xff]
        %v736 = vld [vmem:[%s691 + $0xa8] sm:$0xff]
        %v737 = vld [vmem:[%s691 + $0xb0] sm:$0xff]
        %v738 = vld [vmem:[%s691 + $0xb8] sm:$0xff]
        %v739 = vld [vmem:[%s691 + $0xc0] sm:$0xff]
        %v740 = vld [vmem:[%s691 + $0xc8] sm:$0xff]
        %v741 = vld [vmem:[%s691 + $0xd0] sm:$0xff]
        %v742 = vld [vmem:[%s691 + $0xd8] sm:$0xff]
        %v743 = vld [vmem:[%s691 + $0xe0] sm:$0xff]
        %v744 = vld [vmem:[%s691 + $0xe8] sm:$0xff]
        %v745 = vld [vmem:[%s691 + $0xf0] sm:$0xff]
        %v746 = vld [vmem:[%s691 + $0xf8] sm:$0xff]
        %v747 = vld [vmem:[%s691 + $0x100] sm:$0xff]
        %v748 = vld [vmem:[%s691 + $0x108] sm:$0xff]
        %v749 = vld [vmem:[%s691 + $0x110] sm:$0xff]
        %v750 = vld [vmem:[%s691 + $0x118] sm:$0xff]
        %v751 = vld [vmem:[%s691 + $0x120] sm:$0xff]
        %v752 = vld [vmem:[%s691 + $0x128] sm:$0xff]
        %v753 = vld [vmem:[%s691 + $0x130] sm:$0xff]
        %v754 = vld [vmem:[%s691 + $0x138] sm:$0xff]
        %v755 = vld [vmem:[%s691 + $0x140] sm:$0xff]
        %v756 = vld [vmem:[%s691 + $0x148] sm:$0xff]
        %v757 = vld [vmem:[%s691 + $0x150] sm:$0xff]
        %v758 = vld [vmem:[%s691 + $0x158] sm:$0xff]
        %v759 = vld [vmem:[%s691 + $0x160] sm:$0xff]
        %v760 = vld [vmem:[%s691 + $0x168] sm:$0xff]
        %v761 = vld [vmem:[%s691 + $0x170] sm:$0xff]
        %v762 = vld [vmem:[%s691 + $0x178] sm:$0xff]
        %v763 = vld [vmem:[%s691 + $0x180] sm:$0xff]
        %v764 = vld [vmem:[%s691 + $0x188] sm:$0xff]
        %v765 = vld [vmem:[%s691 + $0x190] sm:$0xff]
        %v766 = vld [vmem:[%s691 + $0x198] sm:$0xff]
        %v767 = vld [vmem:[%s691 + $0x1a0] sm:$0xff]
        %v768 = vld [vmem:[%s691 + $0x1a8] sm:$0xff]
        %v769 = vld [vmem:[%s691 + $0x1b0] sm:$0xff]
        %v770 = vld [vmem:[%s691 + $0x1b8] sm:$0xff]
        %v771 = vld [vmem:[%s691 + $0x1c0] sm:$0xff]
        %v772 = vld [vmem:[%s691 + $0x1c8] sm:$0xff]
        %v773 = vld [vmem:[%s691 + $0x1d0] sm:$0xff]
        %v774 = vld [vmem:[%s691 + $0x1d8] sm:$0xff]
        %v775 = vld [vmem:[%s691 + $0x1e0] sm:$0xff]
        %v776 = vld [vmem:[%s691 + $0x1e8] sm:$0xff]
        %v777 = vld [vmem:[%s691 + $0x1f0] sm:$0xff]
        %v778 = vld [vmem:[%s691 + $0x1f8] sm:$0xff]
        %s779 = scalar_lea.vmem %s691, 512 [#allocation2]
        %v780 = vld [vmem:[%s779] sm:$0xff]
        %v781 = vld [vmem:[%s779 + $0x8] sm:$0xff]
        %v782 = vld [vmem:[%s779 + $0x10] sm:$0xff]
        %v783 = vld [vmem:[%s779 + $0x18] sm:$0xff]
        %v784 = vld [vmem:[%s779 + $0x20] sm:$0xff]
        %v785 = vld [vmem:[%s779 + $0x28] sm:$0xff]
        %v786 = vld [vmem:[%s779 + $0x30] sm:$0xff]
        %v787 = vld [vmem:[%s779 + $0x38] sm:$0xff]
        %v788 = vld [vmem:[%s779 + $0x40] sm:$0xff]
        %v789 = vld [vmem:[%s779 + $0x48] sm:$0xff]
        %v790 = vld [vmem:[%s779 + $0x50] sm:$0xff]
        %v791 = vld [vmem:[%s779 + $0x58] sm:$0xff]
        %v792 = vld [vmem:[%s779 + $0x60] sm:$0xff]
        %v793 = vld [vmem:[%s779 + $0x68] sm:$0xff]
        %v794 = vld [vmem:[%s779 + $0x70] sm:$0xff]
        %v795 = vld [vmem:[%s779 + $0x78] sm:$0xff]
        %v796 = vld [vmem:[%s779 + $0x80] sm:$0xff]
        %v797 = vld [vmem:[%s779 + $0x88] sm:$0xff]
        %v798 = vld [vmem:[%s779 + $0x90] sm:$0xff]
        %v799 = vld [vmem:[%s779 + $0x98] sm:$0xff]
        %v800 = vld [vmem:[%s779 + $0xa0] sm:$0xff]
        %v801 = vld [vmem:[%s779 + $0xa8] sm:$0xff]
        %v802 = vld [vmem:[%s779 + $0xb0] sm:$0xff]
        %v803 = vld [vmem:[%s779 + $0xb8] sm:$0xff]
        %v804 = vld [vmem:[%s779 + $0xc0] sm:$0xff]
        %v805 = vld [vmem:[%s779 + $0xc8] sm:$0xff]
        %v806 = vld [vmem:[%s779 + $0xd0] sm:$0xff]
        %v807 = vld [vmem:[%s779 + $0xd8] sm:$0xff]
        %v808 = vld [vmem:[%s779 + $0xe0] sm:$0xff]
        %v809 = vld [vmem:[%s779 + $0xe8] sm:$0xff]
        %v810 = vld [vmem:[%s779 + $0xf0] sm:$0xff]
        %v811 = vld [vmem:[%s779 + $0xf8] sm:$0xff]
        %v812 = vld [vmem:[%s779 + $0x100] sm:$0xff]
        %v813 = vld [vmem:[%s779 + $0x108] sm:$0xff]
        %v814 = vld [vmem:[%s779 + $0x110] sm:$0xff]
        %v815 = vld [vmem:[%s779 + $0x118] sm:$0xff]
        %v816 = vld [vmem:[%s779 + $0x120] sm:$0xff]
        %v817 = vld [vmem:[%s779 + $0x128] sm:$0xff]
        %v818 = vld [vmem:[%s779 + $0x130] sm:$0xff]
        %v819 = vld [vmem:[%s779 + $0x138] sm:$0xff]
        %v820 = vld [vmem:[%s779 + $0x140] sm:$0xff]
        %v821 = vld [vmem:[%s779 + $0x148] sm:$0xff]
        %v822 = vld [vmem:[%s779 + $0x150] sm:$0xff]
        %v823 = vld [vmem:[%s779 + $0x158] sm:$0xff]
        %v824 = vld [vmem:[%s779 + $0x160] sm:$0xff]
        %v825 = vld [vmem:[%s779 + $0x168] sm:$0xff]
        %v826 = vld [vmem:[%s779 + $0x170] sm:$0xff]
        %v827 = vld [vmem:[%s779 + $0x178] sm:$0xff]
        %v828 = vld [vmem:[%s779 + $0x180] sm:$0xff]
        %v829 = vld [vmem:[%s779 + $0x188] sm:$0xff]
        %v830 = vld [vmem:[%s779 + $0x190] sm:$0xff]
        %v831 = vld [vmem:[%s779 + $0x198] sm:$0xff]
        %v832 = vld [vmem:[%s779 + $0x1a0] sm:$0xff]
        %v833 = vld [vmem:[%s779 + $0x1a8] sm:$0xff]
        %v834 = vld [vmem:[%s779 + $0x1b0] sm:$0xff]
        %v835 = vld [vmem:[%s779 + $0x1b8] sm:$0xff]
        %v836 = vld [vmem:[%s779 + $0x1c0] sm:$0xff]
        %v837 = vld [vmem:[%s779 + $0x1c8] sm:$0xff]
        %v838 = vld [vmem:[%s779 + $0x1d0] sm:$0xff]
        %v839 = vld [vmem:[%s779 + $0x1d8] sm:$0xff]
        %v840 = vld [vmem:[%s779 + $0x1e0] sm:$0xff]
        %v841 = vld [vmem:[%s779 + $0x1e8] sm:$0xff]
        %v842 = vld [vmem:[%s779 + $0x1f0] sm:$0xff]
        %v843 = vld [vmem:[%s779 + $0x1f8] sm:$0xff]
        %v844 = vld [vmem:[%s0] sm:$0xff]
        %v845 = vld [vmem:[%s0 + $0x8] sm:$0xff]
        %v846 = vld [vmem:[%s0 + $0x10] sm:$0xff]
        %v847 = vld [vmem:[%s0 + $0x18] sm:$0xff]
        %v848 = vld [vmem:[%s0 + $0x20] sm:$0xff]
        %v849 = vld [vmem:[%s0 + $0x28] sm:$0xff]
        %v850 = vld [vmem:[%s0 + $0x30] sm:$0xff]
        %v851 = vld [vmem:[%s0 + $0x38] sm:$0xff]
        %v852 = vld [vmem:[%s0 + $0x40] sm:$0xff]
        %v853 = vld [vmem:[%s0 + $0x48] sm:$0xff]
        %v854 = vld [vmem:[%s0 + $0x50] sm:$0xff]
        %v855 = vld [vmem:[%s0 + $0x58] sm:$0xff]
        %v856 = vld [vmem:[%s0 + $0x60] sm:$0xff]
        %v857 = vld [vmem:[%s0 + $0x68] sm:$0xff]
        %v858 = vld [vmem:[%s0 + $0x70] sm:$0xff]
        %v859 = vld [vmem:[%s0 + $0x78] sm:$0xff]
        %v860 = vld [vmem:[%s0 + $0x80] sm:$0xff]
        %v861 = vld [vmem:[%s0 + $0x88] sm:$0xff]
        %v862 = vld [vmem:[%s0 + $0x90] sm:$0xff]
        %v863 = vld [vmem:[%s0 + $0x98] sm:$0xff]
        %v864 = vld [vmem:[%s0 + $0xa0] sm:$0xff]
        %v865 = vld [vmem:[%s0 + $0xa8] sm:$0xff]
        %v866 = vld [vmem:[%s0 + $0xb0] sm:$0xff]
        %v867 = vld [vmem:[%s0 + $0xb8] sm:$0xff]
        %v868 = vld [vmem:[%s0 + $0xc0] sm:$0xff]
        %v869 = vld [vmem:[%s0 + $0xc8] sm:$0xff]
        %v870 = vld [vmem:[%s0 + $0xd0] sm:$0xff]
        %v871 = vld [vmem:[%s0 + $0xd8] sm:$0xff]
        %v872 = vld [vmem:[%s0 + $0xe0] sm:$0xff]
        %v873 = vld [vmem:[%s0 + $0xe8] sm:$0xff]
        %v874 = vld [vmem:[%s0 + $0xf0] sm:$0xff]
        %v875 = vld [vmem:[%s0 + $0xf8] sm:$0xff]
        %v876 = vld [vmem:[%s0 + $0x100] sm:$0xff]
        %v877 = vld [vmem:[%s0 + $0x108] sm:$0xff]
        %v878 = vld [vmem:[%s0 + $0x110] sm:$0xff]
        %v879 = vld [vmem:[%s0 + $0x118] sm:$0xff]
        %v880 = vld [vmem:[%s0 + $0x120] sm:$0xff]
        %v881 = vld [vmem:[%s0 + $0x128] sm:$0xff]
        %v882 = vld [vmem:[%s0 + $0x130] sm:$0xff]
        %v883 = vld [vmem:[%s0 + $0x138] sm:$0xff]
        %v884 = vld [vmem:[%s0 + $0x140] sm:$0xff]
        %v885 = vld [vmem:[%s0 + $0x148] sm:$0xff]
        %v886 = vld [vmem:[%s0 + $0x150] sm:$0xff]
        %v887 = vld [vmem:[%s0 + $0x158] sm:$0xff]
        %v888 = vld [vmem:[%s0 + $0x160] sm:$0xff]
        %v889 = vld [vmem:[%s0 + $0x168] sm:$0xff]
        %v890 = vld [vmem:[%s0 + $0x170] sm:$0xff]
        %v891 = vld [vmem:[%s0 + $0x178] sm:$0xff]
        %v892 = vld [vmem:[%s0 + $0x180] sm:$0xff]
        %v893 = vld [vmem:[%s0 + $0x188] sm:$0xff]
        %v894 = vld [vmem:[%s0 + $0x190] sm:$0xff]
        %v895 = vld [vmem:[%s0 + $0x198] sm:$0xff]
        %v896 = vld [vmem:[%s0 + $0x1a0] sm:$0xff]
        %v897 = vld [vmem:[%s0 + $0x1a8] sm:$0xff]
        %v898 = vld [vmem:[%s0 + $0x1b0] sm:$0xff]
        %v899 = vld [vmem:[%s0 + $0x1b8] sm:$0xff]
        %v900 = vld [vmem:[%s0 + $0x1c0] sm:$0xff]
        %v901 = vld [vmem:[%s0 + $0x1c8] sm:$0xff]
        %v902 = vld [vmem:[%s0 + $0x1d0] sm:$0xff]
        %v903 = vld [vmem:[%s0 + $0x1d8] sm:$0xff]
        %v904 = vld [vmem:[%s0 + $0x1e0] sm:$0xff]
        %v905 = vld [vmem:[%s0 + $0x1e8] sm:$0xff]
        %v906 = vld [vmem:[%s0 + $0x1f0] sm:$0xff]
        %v907 = vld [vmem:[%s0 + $0x1f8] sm:$0xff]
        %909 = vset.pattern.permute.xlu0 0
        %910 = vperm.xlu0 %909, %v844
        %v911 = vpop.permute.xlu0 %910
        %914 = vset.pattern.permute.xlu0 0
        %915 = vperm.xlu0 %914, %v845
        %v916 = vpop.permute.xlu0 %915
        %919 = vset.pattern.permute.xlu0 0
        %920 = vperm.xlu0 %919, %v846
        %v921 = vpop.permute.xlu0 %920
        %924 = vset.pattern.permute.xlu0 0
        %925 = vperm.xlu0 %924, %v847
        %v926 = vpop.permute.xlu0 %925
        %929 = vset.pattern.permute.xlu0 0
        %930 = vperm.xlu0 %929, %v848
        %v931 = vpop.permute.xlu0 %930
        %934 = vset.pattern.permute.xlu0 0
        %935 = vperm.xlu0 %934, %v849
        %v936 = vpop.permute.xlu0 %935
        %939 = vset.pattern.permute.xlu0 0
        %940 = vperm.xlu0 %939, %v850
        %v941 = vpop.permute.xlu0 %940
        %944 = vset.pattern.permute.xlu0 0
        %945 = vperm.xlu0 %944, %v851
        %v946 = vpop.permute.xlu0 %945
        %949 = vset.pattern.permute.xlu0 0
        %950 = vperm.xlu0 %949, %v852
        %v951 = vpop.permute.xlu0 %950
        %954 = vset.pattern.permute.xlu0 0
        %955 = vperm.xlu0 %954, %v853
        %v956 = vpop.permute.xlu0 %955
        %959 = vset.pattern.permute.xlu0 0
        %960 = vperm.xlu0 %959, %v854
        %v961 = vpop.permute.xlu0 %960
        %964 = vset.pattern.permute.xlu0 0
        %965 = vperm.xlu0 %964, %v855
        %v966 = vpop.permute.xlu0 %965
        %969 = vset.pattern.permute.xlu0 0
        %970 = vperm.xlu0 %969, %v856
        %v971 = vpop.permute.xlu0 %970
        %974 = vset.pattern.permute.xlu0 0
        %975 = vperm.xlu0 %974, %v857
        %v976 = vpop.permute.xlu0 %975
        %979 = vset.pattern.permute.xlu0 0
        %980 = vperm.xlu0 %979, %v858
        %v981 = vpop.permute.xlu0 %980
        %984 = vset.pattern.permute.xlu0 0
        %985 = vperm.xlu0 %984, %v859
        %v986 = vpop.permute.xlu0 %985
        %989 = vset.pattern.permute.xlu0 0
        %990 = vperm.xlu0 %989, %v860
        %v991 = vpop.permute.xlu0 %990
        %994 = vset.pattern.permute.xlu0 0
        %995 = vperm.xlu0 %994, %v861
        %v996 = vpop.permute.xlu0 %995
        %999 = vset.pattern.permute.xlu0 0
        %1000 = vperm.xlu0 %999, %v862
        %v1001 = vpop.permute.xlu0 %1000
        %1004 = vset.pattern.permute.xlu0 0
        %1005 = vperm.xlu0 %1004, %v863
        %v1006 = vpop.permute.xlu0 %1005
        %1009 = vset.pattern.permute.xlu0 0
        %1010 = vperm.xlu0 %1009, %v864
        %v1011 = vpop.permute.xlu0 %1010
        %1014 = vset.pattern.permute.xlu0 0
        %1015 = vperm.xlu0 %1014, %v865
        %v1016 = vpop.permute.xlu0 %1015
        %1019 = vset.pattern.permute.xlu0 0
        %1020 = vperm.xlu0 %1019, %v866
        %v1021 = vpop.permute.xlu0 %1020
        %1024 = vset.pattern.permute.xlu0 0
        %1025 = vperm.xlu0 %1024, %v867
        %v1026 = vpop.permute.xlu0 %1025
        %1029 = vset.pattern.permute.xlu0 0
        %1030 = vperm.xlu0 %1029, %v868
        %v1031 = vpop.permute.xlu0 %1030
        %1034 = vset.pattern.permute.xlu0 0
        %1035 = vperm.xlu0 %1034, %v869
        %v1036 = vpop.permute.xlu0 %1035
        %1039 = vset.pattern.permute.xlu0 0
        %1040 = vperm.xlu0 %1039, %v870
        %v1041 = vpop.permute.xlu0 %1040
        %1044 = vset.pattern.permute.xlu0 0
        %1045 = vperm.xlu0 %1044, %v871
        %v1046 = vpop.permute.xlu0 %1045
        %1049 = vset.pattern.permute.xlu0 0
        %1050 = vperm.xlu0 %1049, %v872
        %v1051 = vpop.permute.xlu0 %1050
        %1054 = vset.pattern.permute.xlu0 0
        %1055 = vperm.xlu0 %1054, %v873
        %v1056 = vpop.permute.xlu0 %1055
        %1059 = vset.pattern.permute.xlu0 0
        %1060 = vperm.xlu0 %1059, %v874
        %v1061 = vpop.permute.xlu0 %1060
        %1064 = vset.pattern.permute.xlu0 0
        %1065 = vperm.xlu0 %1064, %v875
        %v1066 = vpop.permute.xlu0 %1065
        %1069 = vset.pattern.permute.xlu0 0
        %1070 = vperm.xlu0 %1069, %v876
        %v1071 = vpop.permute.xlu0 %1070
        %1074 = vset.pattern.permute.xlu0 0
        %1075 = vperm.xlu0 %1074, %v877
        %v1076 = vpop.permute.xlu0 %1075
        %1079 = vset.pattern.permute.xlu0 0
        %1080 = vperm.xlu0 %1079, %v878
        %v1081 = vpop.permute.xlu0 %1080
        %1084 = vset.pattern.permute.xlu0 0
        %1085 = vperm.xlu0 %1084, %v879
        %v1086 = vpop.permute.xlu0 %1085
        %1089 = vset.pattern.permute.xlu0 0
        %1090 = vperm.xlu0 %1089, %v880
        %v1091 = vpop.permute.xlu0 %1090
        %1094 = vset.pattern.permute.xlu0 0
        %1095 = vperm.xlu0 %1094, %v881
        %v1096 = vpop.permute.xlu0 %1095
        %1099 = vset.pattern.permute.xlu0 0
        %1100 = vperm.xlu0 %1099, %v882
        %v1101 = vpop.permute.xlu0 %1100
        %1104 = vset.pattern.permute.xlu0 0
        %1105 = vperm.xlu0 %1104, %v883
        %v1106 = vpop.permute.xlu0 %1105
        %1109 = vset.pattern.permute.xlu0 0
        %1110 = vperm.xlu0 %1109, %v884
        %v1111 = vpop.permute.xlu0 %1110
        %1114 = vset.pattern.permute.xlu0 0
        %1115 = vperm.xlu0 %1114, %v885
        %v1116 = vpop.permute.xlu0 %1115
        %1119 = vset.pattern.permute.xlu0 0
        %1120 = vperm.xlu0 %1119, %v886
        %v1121 = vpop.permute.xlu0 %1120
        %1124 = vset.pattern.permute.xlu0 0
        %1125 = vperm.xlu0 %1124, %v887
        %v1126 = vpop.permute.xlu0 %1125
        %1129 = vset.pattern.permute.xlu0 0
        %1130 = vperm.xlu0 %1129, %v888
        %v1131 = vpop.permute.xlu0 %1130
        %1134 = vset.pattern.permute.xlu0 0
        %1135 = vperm.xlu0 %1134, %v889
        %v1136 = vpop.permute.xlu0 %1135
        %1139 = vset.pattern.permute.xlu0 0
        %1140 = vperm.xlu0 %1139, %v890
        %v1141 = vpop.permute.xlu0 %1140
        %1144 = vset.pattern.permute.xlu0 0
        %1145 = vperm.xlu0 %1144, %v891
        %v1146 = vpop.permute.xlu0 %1145
        %1149 = vset.pattern.permute.xlu0 0
        %1150 = vperm.xlu0 %1149, %v892
        %v1151 = vpop.permute.xlu0 %1150
        %1154 = vset.pattern.permute.xlu0 0
        %1155 = vperm.xlu0 %1154, %v893
        %v1156 = vpop.permute.xlu0 %1155
        %1159 = vset.pattern.permute.xlu0 0
        %1160 = vperm.xlu0 %1159, %v894
        %v1161 = vpop.permute.xlu0 %1160
        %1164 = vset.pattern.permute.xlu0 0
        %1165 = vperm.xlu0 %1164, %v895
        %v1166 = vpop.permute.xlu0 %1165
        %1169 = vset.pattern.permute.xlu0 0
        %1170 = vperm.xlu0 %1169, %v896
        %v1171 = vpop.permute.xlu0 %1170
        %1174 = vset.pattern.permute.xlu0 0
        %1175 = vperm.xlu0 %1174, %v897
        %v1176 = vpop.permute.xlu0 %1175
        %1179 = vset.pattern.permute.xlu0 0
        %1180 = vperm.xlu0 %1179, %v898
        %v1181 = vpop.permute.xlu0 %1180
        %1184 = vset.pattern.permute.xlu0 0
        %1185 = vperm.xlu0 %1184, %v899
        %v1186 = vpop.permute.xlu0 %1185
        %1189 = vset.pattern.permute.xlu0 0
        %1190 = vperm.xlu0 %1189, %v900
        %v1191 = vpop.permute.xlu0 %1190
        %1194 = vset.pattern.permute.xlu0 0
        %1195 = vperm.xlu0 %1194, %v901
        %v1196 = vpop.permute.xlu0 %1195
        %1199 = vset.pattern.permute.xlu0 0
        %1200 = vperm.xlu0 %1199, %v902
        %v1201 = vpop.permute.xlu0 %1200
        %1204 = vset.pattern.permute.xlu0 0
        %1205 = vperm.xlu0 %1204, %v903
        %v1206 = vpop.permute.xlu0 %1205
        %1209 = vset.pattern.permute.xlu0 0
        %1210 = vperm.xlu0 %1209, %v904
        %v1211 = vpop.permute.xlu0 %1210
        %1214 = vset.pattern.permute.xlu0 0
        %1215 = vperm.xlu0 %1214, %v905
        %v1216 = vpop.permute.xlu0 %1215
        %1219 = vset.pattern.permute.xlu0 0
        %1220 = vperm.xlu0 %1219, %v906
        %v1221 = vpop.permute.xlu0 %1220
        %1224 = vset.pattern.permute.xlu0 0
        %1225 = vperm.xlu0 %1224, %v907
        %v1226 = vpop.permute.xlu0 %1225
        %v1228 = vmul.f32 %v715, %v911
        %v1229 = vmul.f32 %v716, %v916
        %v1230 = vmul.f32 %v717, %v921
        %v1231 = vmul.f32 %v718, %v926
        %v1232 = vmul.f32 %v719, %v931
        %v1233 = vmul.f32 %v720, %v936
        %v1234 = vmul.f32 %v721, %v941
        %v1235 = vmul.f32 %v722, %v946
        %v1236 = vmul.f32 %v723, %v951
        %v1237 = vmul.f32 %v724, %v956
        %v1238 = vmul.f32 %v725, %v961
        %v1239 = vmul.f32 %v726, %v966
        %v1240 = vmul.f32 %v727, %v971
        %v1241 = vmul.f32 %v728, %v976
        %v1242 = vmul.f32 %v729, %v981
        %v1243 = vmul.f32 %v730, %v986
        %v1244 = vmul.f32 %v731, %v991
        %v1245 = vmul.f32 %v732, %v996
        %v1246 = vmul.f32 %v733, %v1001
        %v1247 = vmul.f32 %v734, %v1006
        %v1248 = vmul.f32 %v735, %v1011
        %v1249 = vmul.f32 %v736, %v1016
        %v1250 = vmul.f32 %v737, %v1021
        %v1251 = vmul.f32 %v738, %v1026
        %v1252 = vmul.f32 %v739, %v1031
        %v1253 = vmul.f32 %v740, %v1036
        %v1254 = vmul.f32 %v741, %v1041
        %v1255 = vmul.f32 %v742, %v1046
        %v1256 = vmul.f32 %v743, %v1051
        %v1257 = vmul.f32 %v744, %v1056
        %v1258 = vmul.f32 %v745, %v1061
        %v1259 = vmul.f32 %v746, %v1066
        %v1260 = vmul.f32 %v747, %v1071
        %v1261 = vmul.f32 %v748, %v1076
        %v1262 = vmul.f32 %v749, %v1081
        %v1263 = vmul.f32 %v750, %v1086
        %v1264 = vmul.f32 %v751, %v1091
        %v1265 = vmul.f32 %v752, %v1096
        %v1266 = vmul.f32 %v753, %v1101
        %v1267 = vmul.f32 %v754, %v1106
        %v1268 = vmul.f32 %v755, %v1111
        %v1269 = vmul.f32 %v756, %v1116
        %v1270 = vmul.f32 %v757, %v1121
        %v1271 = vmul.f32 %v758, %v1126
        %v1272 = vmul.f32 %v759, %v1131
        %v1273 = vmul.f32 %v760, %v1136
        %v1274 = vmul.f32 %v761, %v1141
        %v1275 = vmul.f32 %v762, %v1146
        %v1276 = vmul.f32 %v763, %v1151
        %v1277 = vmul.f32 %v764, %v1156
        %v1278 = vmul.f32 %v765, %v1161
        %v1279 = vmul.f32 %v766, %v1166
        %v1280 = vmul.f32 %v767, %v1171
        %v1281 = vmul.f32 %v768, %v1176
        %v1282 = vmul.f32 %v769, %v1181
        %v1283 = vmul.f32 %v770, %v1186
        %v1284 = vmul.f32 %v771, %v1191
        %v1285 = vmul.f32 %v772, %v1196
        %v1286 = vmul.f32 %v773, %v1201
        %v1287 = vmul.f32 %v774, %v1206
        %v1288 = vmul.f32 %v775, %v1211
        %v1289 = vmul.f32 %v776, %v1216
        %v1290 = vmul.f32 %v777, %v1221
        %v1291 = vmul.f32 %v778, %v1226
        %s1292 = scalar_lea.vmem %s0, 512
        %v1293 = vld [vmem:[%s1292] sm:$0xff]
        %v1294 = vld [vmem:[%s1292 + $0x8] sm:$0xff]
        %v1295 = vld [vmem:[%s1292 + $0x10] sm:$0xff]
        %v1296 = vld [vmem:[%s1292 + $0x18] sm:$0xff]
        %v1297 = vld [vmem:[%s1292 + $0x20] sm:$0xff]
        %v1298 = vld [vmem:[%s1292 + $0x28] sm:$0xff]
        %v1299 = vld [vmem:[%s1292 + $0x30] sm:$0xff]
        %v1300 = vld [vmem:[%s1292 + $0x38] sm:$0xff]
        %v1301 = vld [vmem:[%s1292 + $0x40] sm:$0xff]
        %v1302 = vld [vmem:[%s1292 + $0x48] sm:$0xff]
        %v1303 = vld [vmem:[%s1292 + $0x50] sm:$0xff]
        %v1304 = vld [vmem:[%s1292 + $0x58] sm:$0xff]
        %v1305 = vld [vmem:[%s1292 + $0x60] sm:$0xff]
        %v1306 = vld [vmem:[%s1292 + $0x68] sm:$0xff]
        %v1307 = vld [vmem:[%s1292 + $0x70] sm:$0xff]
        %v1308 = vld [vmem:[%s1292 + $0x78] sm:$0xff]
        %v1309 = vld [vmem:[%s1292 + $0x80] sm:$0xff]
        %v1310 = vld [vmem:[%s1292 + $0x88] sm:$0xff]
        %v1311 = vld [vmem:[%s1292 + $0x90] sm:$0xff]
        %v1312 = vld [vmem:[%s1292 + $0x98] sm:$0xff]
        %v1313 = vld [vmem:[%s1292 + $0xa0] sm:$0xff]
        %v1314 = vld [vmem:[%s1292 + $0xa8] sm:$0xff]
        %v1315 = vld [vmem:[%s1292 + $0xb0] sm:$0xff]
        %v1316 = vld [vmem:[%s1292 + $0xb8] sm:$0xff]
        %v1317 = vld [vmem:[%s1292 + $0xc0] sm:$0xff]
        %v1318 = vld [vmem:[%s1292 + $0xc8] sm:$0xff]
        %v1319 = vld [vmem:[%s1292 + $0xd0] sm:$0xff]
        %v1320 = vld [vmem:[%s1292 + $0xd8] sm:$0xff]
        %v1321 = vld [vmem:[%s1292 + $0xe0] sm:$0xff]
        %v1322 = vld [vmem:[%s1292 + $0xe8] sm:$0xff]
        %v1323 = vld [vmem:[%s1292 + $0xf0] sm:$0xff]
        %v1324 = vld [vmem:[%s1292 + $0xf8] sm:$0xff]
        %v1325 = vld [vmem:[%s1292 + $0x100] sm:$0xff]
        %v1326 = vld [vmem:[%s1292 + $0x108] sm:$0xff]
        %v1327 = vld [vmem:[%s1292 + $0x110] sm:$0xff]
        %v1328 = vld [vmem:[%s1292 + $0x118] sm:$0xff]
        %v1329 = vld [vmem:[%s1292 + $0x120] sm:$0xff]
        %v1330 = vld [vmem:[%s1292 + $0x128] sm:$0xff]
        %v1331 = vld [vmem:[%s1292 + $0x130] sm:$0xff]
        %v1332 = vld [vmem:[%s1292 + $0x138] sm:$0xff]
        %v1333 = vld [vmem:[%s1292 + $0x140] sm:$0xff]
        %v1334 = vld [vmem:[%s1292 + $0x148] sm:$0xff]
        %v1335 = vld [vmem:[%s1292 + $0x150] sm:$0xff]
        %v1336 = vld [vmem:[%s1292 + $0x158] sm:$0xff]
        %v1337 = vld [vmem:[%s1292 + $0x160] sm:$0xff]
        %v1338 = vld [vmem:[%s1292 + $0x168] sm:$0xff]
        %v1339 = vld [vmem:[%s1292 + $0x170] sm:$0xff]
        %v1340 = vld [vmem:[%s1292 + $0x178] sm:$0xff]
        %v1341 = vld [vmem:[%s1292 + $0x180] sm:$0xff]
        %v1342 = vld [vmem:[%s1292 + $0x188] sm:$0xff]
        %v1343 = vld [vmem:[%s1292 + $0x190] sm:$0xff]
        %v1344 = vld [vmem:[%s1292 + $0x198] sm:$0xff]
        %v1345 = vld [vmem:[%s1292 + $0x1a0] sm:$0xff]
        %v1346 = vld [vmem:[%s1292 + $0x1a8] sm:$0xff]
        %v1347 = vld [vmem:[%s1292 + $0x1b0] sm:$0xff]
        %v1348 = vld [vmem:[%s1292 + $0x1b8] sm:$0xff]
        %v1349 = vld [vmem:[%s1292 + $0x1c0] sm:$0xff]
        %v1350 = vld [vmem:[%s1292 + $0x1c8] sm:$0xff]
        %v1351 = vld [vmem:[%s1292 + $0x1d0] sm:$0xff]
        %v1352 = vld [vmem:[%s1292 + $0x1d8] sm:$0xff]
        %v1353 = vld [vmem:[%s1292 + $0x1e0] sm:$0xff]
        %v1354 = vld [vmem:[%s1292 + $0x1e8] sm:$0xff]
        %v1355 = vld [vmem:[%s1292 + $0x1f0] sm:$0xff]
        %v1356 = vld [vmem:[%s1292 + $0x1f8] sm:$0xff]
        %1358 = vset.pattern.permute.xlu0 0
        %1359 = vperm.xlu0 %1358, %v1293
        %v1360 = vpop.permute.xlu0 %1359
        %1363 = vset.pattern.permute.xlu0 0
        %1364 = vperm.xlu0 %1363, %v1294
        %v1365 = vpop.permute.xlu0 %1364
        %1368 = vset.pattern.permute.xlu0 0
        %1369 = vperm.xlu0 %1368, %v1295
        %v1370 = vpop.permute.xlu0 %1369
        %1373 = vset.pattern.permute.xlu0 0
        %1374 = vperm.xlu0 %1373, %v1296
        %v1375 = vpop.permute.xlu0 %1374
        %1378 = vset.pattern.permute.xlu0 0
        %1379 = vperm.xlu0 %1378, %v1297
        %v1380 = vpop.permute.xlu0 %1379
        %1383 = vset.pattern.permute.xlu0 0
        %1384 = vperm.xlu0 %1383, %v1298
        %v1385 = vpop.permute.xlu0 %1384
        %1388 = vset.pattern.permute.xlu0 0
        %1389 = vperm.xlu0 %1388, %v1299
        %v1390 = vpop.permute.xlu0 %1389
        %1393 = vset.pattern.permute.xlu0 0
        %1394 = vperm.xlu0 %1393, %v1300
        %v1395 = vpop.permute.xlu0 %1394
        %1398 = vset.pattern.permute.xlu0 0
        %1399 = vperm.xlu0 %1398, %v1301
        %v1400 = vpop.permute.xlu0 %1399
        %1403 = vset.pattern.permute.xlu0 0
        %1404 = vperm.xlu0 %1403, %v1302
        %v1405 = vpop.permute.xlu0 %1404
        %1408 = vset.pattern.permute.xlu0 0
        %1409 = vperm.xlu0 %1408, %v1303
        %v1410 = vpop.permute.xlu0 %1409
        %1413 = vset.pattern.permute.xlu0 0
        %1414 = vperm.xlu0 %1413, %v1304
        %v1415 = vpop.permute.xlu0 %1414
        %1418 = vset.pattern.permute.xlu0 0
        %1419 = vperm.xlu0 %1418, %v1305
        %v1420 = vpop.permute.xlu0 %1419
        %1423 = vset.pattern.permute.xlu0 0
        %1424 = vperm.xlu0 %1423, %v1306
        %v1425 = vpop.permute.xlu0 %1424
        %1428 = vset.pattern.permute.xlu0 0
        %1429 = vperm.xlu0 %1428, %v1307
        %v1430 = vpop.permute.xlu0 %1429
        %1433 = vset.pattern.permute.xlu0 0
        %1434 = vperm.xlu0 %1433, %v1308
        %v1435 = vpop.permute.xlu0 %1434
        %1438 = vset.pattern.permute.xlu0 0
        %1439 = vperm.xlu0 %1438, %v1309
        %v1440 = vpop.permute.xlu0 %1439
        %1443 = vset.pattern.permute.xlu0 0
        %1444 = vperm.xlu0 %1443, %v1310
        %v1445 = vpop.permute.xlu0 %1444
        %1448 = vset.pattern.permute.xlu0 0
        %1449 = vperm.xlu0 %1448, %v1311
        %v1450 = vpop.permute.xlu0 %1449
        %1453 = vset.pattern.permute.xlu0 0
        %1454 = vperm.xlu0 %1453, %v1312
        %v1455 = vpop.permute.xlu0 %1454
        %1458 = vset.pattern.permute.xlu0 0
        %1459 = vperm.xlu0 %1458, %v1313
        %v1460 = vpop.permute.xlu0 %1459
        %1463 = vset.pattern.permute.xlu0 0
        %1464 = vperm.xlu0 %1463, %v1314
        %v1465 = vpop.permute.xlu0 %1464
        %1468 = vset.pattern.permute.xlu0 0
        %1469 = vperm.xlu0 %1468, %v1315
        %v1470 = vpop.permute.xlu0 %1469
        %1473 = vset.pattern.permute.xlu0 0
        %1474 = vperm.xlu0 %1473, %v1316
        %v1475 = vpop.permute.xlu0 %1474
        %1478 = vset.pattern.permute.xlu0 0
        %1479 = vperm.xlu0 %1478, %v1317
        %v1480 = vpop.permute.xlu0 %1479
        %1483 = vset.pattern.permute.xlu0 0
        %1484 = vperm.xlu0 %1483, %v1318
        %v1485 = vpop.permute.xlu0 %1484
        %1488 = vset.pattern.permute.xlu0 0
        %1489 = vperm.xlu0 %1488, %v1319
        %v1490 = vpop.permute.xlu0 %1489
        %1493 = vset.pattern.permute.xlu0 0
        %1494 = vperm.xlu0 %1493, %v1320
        %v1495 = vpop.permute.xlu0 %1494
        %1498 = vset.pattern.permute.xlu0 0
        %1499 = vperm.xlu0 %1498, %v1321
        %v1500 = vpop.permute.xlu0 %1499
        %1503 = vset.pattern.permute.xlu0 0
        %1504 = vperm.xlu0 %1503, %v1322
        %v1505 = vpop.permute.xlu0 %1504
        %1508 = vset.pattern.permute.xlu0 0
        %1509 = vperm.xlu0 %1508, %v1323
        %v1510 = vpop.permute.xlu0 %1509
        %1513 = vset.pattern.permute.xlu0 0
        %1514 = vperm.xlu0 %1513, %v1324
        %v1515 = vpop.permute.xlu0 %1514
        %1518 = vset.pattern.permute.xlu0 0
        %1519 = vperm.xlu0 %1518, %v1325
        %v1520 = vpop.permute.xlu0 %1519
        %1523 = vset.pattern.permute.xlu0 0
        %1524 = vperm.xlu0 %1523, %v1326
        %v1525 = vpop.permute.xlu0 %1524
        %1528 = vset.pattern.permute.xlu0 0
        %1529 = vperm.xlu0 %1528, %v1327
        %v1530 = vpop.permute.xlu0 %1529
        %1533 = vset.pattern.permute.xlu0 0
        %1534 = vperm.xlu0 %1533, %v1328
        %v1535 = vpop.permute.xlu0 %1534
        %1538 = vset.pattern.permute.xlu0 0
        %1539 = vperm.xlu0 %1538, %v1329
        %v1540 = vpop.permute.xlu0 %1539
        %1543 = vset.pattern.permute.xlu0 0
        %1544 = vperm.xlu0 %1543, %v1330
        %v1545 = vpop.permute.xlu0 %1544
        %1548 = vset.pattern.permute.xlu0 0
        %1549 = vperm.xlu0 %1548, %v1331
        %v1550 = vpop.permute.xlu0 %1549
        %1553 = vset.pattern.permute.xlu0 0
        %1554 = vperm.xlu0 %1553, %v1332
        %v1555 = vpop.permute.xlu0 %1554
        %1558 = vset.pattern.permute.xlu0 0
        %1559 = vperm.xlu0 %1558, %v1333
        %v1560 = vpop.permute.xlu0 %1559
        %1563 = vset.pattern.permute.xlu0 0
        %1564 = vperm.xlu0 %1563, %v1334
        %v1565 = vpop.permute.xlu0 %1564
        %1568 = vset.pattern.permute.xlu0 0
        %1569 = vperm.xlu0 %1568, %v1335
        %v1570 = vpop.permute.xlu0 %1569
        %1573 = vset.pattern.permute.xlu0 0
        %1574 = vperm.xlu0 %1573, %v1336
        %v1575 = vpop.permute.xlu0 %1574
        %1578 = vset.pattern.permute.xlu0 0
        %1579 = vperm.xlu0 %1578, %v1337
        %v1580 = vpop.permute.xlu0 %1579
        %1583 = vset.pattern.permute.xlu0 0
        %1584 = vperm.xlu0 %1583, %v1338
        %v1585 = vpop.permute.xlu0 %1584
        %1588 = vset.pattern.permute.xlu0 0
        %1589 = vperm.xlu0 %1588, %v1339
        %v1590 = vpop.permute.xlu0 %1589
        %1593 = vset.pattern.permute.xlu0 0
        %1594 = vperm.xlu0 %1593, %v1340
        %v1595 = vpop.permute.xlu0 %1594
        %1598 = vset.pattern.permute.xlu0 0
        %1599 = vperm.xlu0 %1598, %v1341
        %v1600 = vpop.permute.xlu0 %1599
        %1603 = vset.pattern.permute.xlu0 0
        %1604 = vperm.xlu0 %1603, %v1342
        %v1605 = vpop.permute.xlu0 %1604
        %1608 = vset.pattern.permute.xlu0 0
        %1609 = vperm.xlu0 %1608, %v1343
        %v1610 = vpop.permute.xlu0 %1609
        %1613 = vset.pattern.permute.xlu0 0
        %1614 = vperm.xlu0 %1613, %v1344
        %v1615 = vpop.permute.xlu0 %1614
        %1618 = vset.pattern.permute.xlu0 0
        %1619 = vperm.xlu0 %1618, %v1345
        %v1620 = vpop.permute.xlu0 %1619
        %1623 = vset.pattern.permute.xlu0 0
        %1624 = vperm.xlu0 %1623, %v1346
        %v1625 = vpop.permute.xlu0 %1624
        %1628 = vset.pattern.permute.xlu0 0
        %1629 = vperm.xlu0 %1628, %v1347
        %v1630 = vpop.permute.xlu0 %1629
        %1633 = vset.pattern.permute.xlu0 0
        %1634 = vperm.xlu0 %1633, %v1348
        %v1635 = vpop.permute.xlu0 %1634
        %1638 = vset.pattern.permute.xlu0 0
        %1639 = vperm.xlu0 %1638, %v1349
        %v1640 = vpop.permute.xlu0 %1639
        %1643 = vset.pattern.permute.xlu0 0
        %1644 = vperm.xlu0 %1643, %v1350
        %v1645 = vpop.permute.xlu0 %1644
        %1648 = vset.pattern.permute.xlu0 0
        %1649 = vperm.xlu0 %1648, %v1351
        %v1650 = vpop.permute.xlu0 %1649
        %1653 = vset.pattern.permute.xlu0 0
        %1654 = vperm.xlu0 %1653, %v1352
        %v1655 = vpop.permute.xlu0 %1654
        %1658 = vset.pattern.permute.xlu0 0
        %1659 = vperm.xlu0 %1658, %v1353
        %v1660 = vpop.permute.xlu0 %1659
        %1663 = vset.pattern.permute.xlu0 0
        %1664 = vperm.xlu0 %1663, %v1354
        %v1665 = vpop.permute.xlu0 %1664
        %1668 = vset.pattern.permute.xlu0 0
        %1669 = vperm.xlu0 %1668, %v1355
        %v1670 = vpop.permute.xlu0 %1669
        %1673 = vset.pattern.permute.xlu0 0
        %1674 = vperm.xlu0 %1673, %v1356
        %v1675 = vpop.permute.xlu0 %1674
        %v1677 = vmul.f32 %v780, %v1360
        %v1678 = vmul.f32 %v781, %v1365
        %v1679 = vmul.f32 %v782, %v1370
        %v1680 = vmul.f32 %v783, %v1375
        %v1681 = vmul.f32 %v784, %v1380
        %v1682 = vmul.f32 %v785, %v1385
        %v1683 = vmul.f32 %v786, %v1390
        %v1684 = vmul.f32 %v787, %v1395
        %v1685 = vmul.f32 %v788, %v1400
        %v1686 = vmul.f32 %v789, %v1405
        %v1687 = vmul.f32 %v790, %v1410
        %v1688 = vmul.f32 %v791, %v1415
        %v1689 = vmul.f32 %v792, %v1420
        %v1690 = vmul.f32 %v793, %v1425
        %v1691 = vmul.f32 %v794, %v1430
        %v1692 = vmul.f32 %v795, %v1435
        %v1693 = vmul.f32 %v796, %v1440
        %v1694 = vmul.f32 %v797, %v1445
        %v1695 = vmul.f32 %v798, %v1450
        %v1696 = vmul.f32 %v799, %v1455
        %v1697 = vmul.f32 %v800, %v1460
        %v1698 = vmul.f32 %v801, %v1465
        %v1699 = vmul.f32 %v802, %v1470
        %v1700 = vmul.f32 %v803, %v1475
        %v1701 = vmul.f32 %v804, %v1480
        %v1702 = vmul.f32 %v805, %v1485
        %v1703 = vmul.f32 %v806, %v1490
        %v1704 = vmul.f32 %v807, %v1495
        %v1705 = vmul.f32 %v808, %v1500
        %v1706 = vmul.f32 %v809, %v1505
        %v1707 = vmul.f32 %v810, %v1510
        %v1708 = vmul.f32 %v811, %v1515
        %v1709 = vmul.f32 %v812, %v1520
        %v1710 = vmul.f32 %v813, %v1525
        %v1711 = vmul.f32 %v814, %v1530
        %v1712 = vmul.f32 %v815, %v1535
        %v1713 = vmul.f32 %v816, %v1540
        %v1714 = vmul.f32 %v817, %v1545
        %v1715 = vmul.f32 %v818, %v1550
        %v1716 = vmul.f32 %v819, %v1555
        %v1717 = vmul.f32 %v820, %v1560
        %v1718 = vmul.f32 %v821, %v1565
        %v1719 = vmul.f32 %v822, %v1570
        %v1720 = vmul.f32 %v823, %v1575
        %v1721 = vmul.f32 %v824, %v1580
        %v1722 = vmul.f32 %v825, %v1585
        %v1723 = vmul.f32 %v826, %v1590
        %v1724 = vmul.f32 %v827, %v1595
        %v1725 = vmul.f32 %v828, %v1600
        %v1726 = vmul.f32 %v829, %v1605
        %v1727 = vmul.f32 %v830, %v1610
        %v1728 = vmul.f32 %v831, %v1615
        %v1729 = vmul.f32 %v832, %v1620
        %v1730 = vmul.f32 %v833, %v1625
        %v1731 = vmul.f32 %v834, %v1630
        %v1732 = vmul.f32 %v835, %v1635
        %v1733 = vmul.f32 %v836, %v1640
        %v1734 = vmul.f32 %v837, %v1645
        %v1735 = vmul.f32 %v838, %v1650
        %v1736 = vmul.f32 %v839, %v1655
        %v1737 = vmul.f32 %v840, %v1660
        %v1738 = vmul.f32 %v841, %v1665
        %v1739 = vmul.f32 %v842, %v1670
        %v1740 = vmul.f32 %v843, %v1675
        %v1741 = vadd.f32 %v1228, %v1677
        %v1742 = vadd.f32 %v1229, %v1678
        %v1743 = vadd.f32 %v1230, %v1679
        %v1744 = vadd.f32 %v1231, %v1680
        %v1745 = vadd.f32 %v1232, %v1681
        %v1746 = vadd.f32 %v1233, %v1682
        %v1747 = vadd.f32 %v1234, %v1683
        %v1748 = vadd.f32 %v1235, %v1684
        %v1749 = vadd.f32 %v1236, %v1685
        %v1750 = vadd.f32 %v1237, %v1686
        %v1751 = vadd.f32 %v1238, %v1687
        %v1752 = vadd.f32 %v1239, %v1688
        %v1753 = vadd.f32 %v1240, %v1689
        %v1754 = vadd.f32 %v1241, %v1690
        %v1755 = vadd.f32 %v1242, %v1691
        %v1756 = vadd.f32 %v1243, %v1692
        %v1757 = vadd.f32 %v1244, %v1693
        %v1758 = vadd.f32 %v1245, %v1694
        %v1759 = vadd.f32 %v1246, %v1695
        %v1760 = vadd.f32 %v1247, %v1696
        %v1761 = vadd.f32 %v1248, %v1697
        %v1762 = vadd.f32 %v1249, %v1698
        %v1763 = vadd.f32 %v1250, %v1699
        %v1764 = vadd.f32 %v1251, %v1700
        %v1765 = vadd.f32 %v1252, %v1701
        %v1766 = vadd.f32 %v1253, %v1702
        %v1767 = vadd.f32 %v1254, %v1703
        %v1768 = vadd.f32 %v1255, %v1704
        %v1769 = vadd.f32 %v1256, %v1705
        %v1770 = vadd.f32 %v1257, %v1706
        %v1771 = vadd.f32 %v1258, %v1707
        %v1772 = vadd.f32 %v1259, %v1708
        %v1773 = vadd.f32 %v1260, %v1709
        %v1774 = vadd.f32 %v1261, %v1710
        %v1775 = vadd.f32 %v1262, %v1711
        %v1776 = vadd.f32 %v1263, %v1712
        %v1777 = vadd.f32 %v1264, %v1713
        %v1778 = vadd.f32 %v1265, %v1714
        %v1779 = vadd.f32 %v1266, %v1715
        %v1780 = vadd.f32 %v1267, %v1716
        %v1781 = vadd.f32 %v1268, %v1717
        %v1782 = vadd.f32 %v1269, %v1718
        %v1783 = vadd.f32 %v1270, %v1719
        %v1784 = vadd.f32 %v1271, %v1720
        %v1785 = vadd.f32 %v1272, %v1721
        %v1786 = vadd.f32 %v1273, %v1722
        %v1787 = vadd.f32 %v1274, %v1723
        %v1788 = vadd.f32 %v1275, %v1724
        %v1789 = vadd.f32 %v1276, %v1725
        %v1790 = vadd.f32 %v1277, %v1726
        %v1791 = vadd.f32 %v1278, %v1727
        %v1792 = vadd.f32 %v1279, %v1728
        %v1793 = vadd.f32 %v1280, %v1729
        %v1794 = vadd.f32 %v1281, %v1730
        %v1795 = vadd.f32 %v1282, %v1731
        %v1796 = vadd.f32 %v1283, %v1732
        %v1797 = vadd.f32 %v1284, %v1733
        %v1798 = vadd.f32 %v1285, %v1734
        %v1799 = vadd.f32 %v1286, %v1735
        %v1800 = vadd.f32 %v1287, %v1736
        %v1801 = vadd.f32 %v1288, %v1737
        %v1802 = vadd.f32 %v1289, %v1738
        %v1803 = vadd.f32 %v1290, %v1739
        %v1804 = vadd.f32 %v1291, %v1740
        %v1805 = vpack.c.bf16 %v1742, %v1741
        %v1806 = vpack.c.bf16 %v1744, %v1743
        %v1807 = vpack.c.bf16 %v1746, %v1745
        %v1808 = vpack.c.bf16 %v1748, %v1747
        %v1809 = vpack.c.bf16 %v1750, %v1749
        %v1810 = vpack.c.bf16 %v1752, %v1751
        %v1811 = vpack.c.bf16 %v1754, %v1753
        %v1812 = vpack.c.bf16 %v1756, %v1755
        %v1813 = vpack.c.bf16 %v1758, %v1757
        %v1814 = vpack.c.bf16 %v1760, %v1759
        %v1815 = vpack.c.bf16 %v1762, %v1761
        %v1816 = vpack.c.bf16 %v1764, %v1763
        %v1817 = vpack.c.bf16 %v1766, %v1765
        %v1818 = vpack.c.bf16 %v1768, %v1767
        %v1819 = vpack.c.bf16 %v1770, %v1769
        %v1820 = vpack.c.bf16 %v1772, %v1771
        %v1821 = vpack.c.bf16 %v1774, %v1773
        %v1822 = vpack.c.bf16 %v1776, %v1775
        %v1823 = vpack.c.bf16 %v1778, %v1777
        %v1824 = vpack.c.bf16 %v1780, %v1779
        %v1825 = vpack.c.bf16 %v1782, %v1781
        %v1826 = vpack.c.bf16 %v1784, %v1783
        %v1827 = vpack.c.bf16 %v1786, %v1785
        %v1828 = vpack.c.bf16 %v1788, %v1787
        %v1829 = vpack.c.bf16 %v1790, %v1789
        %v1830 = vpack.c.bf16 %v1792, %v1791
        %v1831 = vpack.c.bf16 %v1794, %v1793
        %v1832 = vpack.c.bf16 %v1796, %v1795
        %v1833 = vpack.c.bf16 %v1798, %v1797
        %v1834 = vpack.c.bf16 %v1800, %v1799
        %v1835 = vpack.c.bf16 %v1802, %v1801
        %v1836 = vpack.c.bf16 %v1804, %v1803
        %s1837 = scalar_lea.vmem %s0, 1024
        %v1838 = vld [vmem:[%s1837] sm:$0xff]
        %v1839 = vld [vmem:[%s1837 + $0x8] sm:$0xff]
        %v1840 = vld [vmem:[%s1837 + $0x10] sm:$0xff]
        %v1841 = vld [vmem:[%s1837 + $0x18] sm:$0xff]
        %v1842 = vld [vmem:[%s1837 + $0x20] sm:$0xff]
        %v1843 = vld [vmem:[%s1837 + $0x28] sm:$0xff]
        %v1844 = vld [vmem:[%s1837 + $0x30] sm:$0xff]
        %v1845 = vld [vmem:[%s1837 + $0x38] sm:$0xff]
        %v1846 = vld [vmem:[%s1837 + $0x40] sm:$0xff]
        %v1847 = vld [vmem:[%s1837 + $0x48] sm:$0xff]
        %v1848 = vld [vmem:[%s1837 + $0x50] sm:$0xff]
        %v1849 = vld [vmem:[%s1837 + $0x58] sm:$0xff]
        %v1850 = vld [vmem:[%s1837 + $0x60] sm:$0xff]
        %v1851 = vld [vmem:[%s1837 + $0x68] sm:$0xff]
        %v1852 = vld [vmem:[%s1837 + $0x70] sm:$0xff]
        %v1853 = vld [vmem:[%s1837 + $0x78] sm:$0xff]
        %v1854 = vld [vmem:[%s1837 + $0x80] sm:$0xff]
        %v1855 = vld [vmem:[%s1837 + $0x88] sm:$0xff]
        %v1856 = vld [vmem:[%s1837 + $0x90] sm:$0xff]
        %v1857 = vld [vmem:[%s1837 + $0x98] sm:$0xff]
        %v1858 = vld [vmem:[%s1837 + $0xa0] sm:$0xff]
        %v1859 = vld [vmem:[%s1837 + $0xa8] sm:$0xff]
        %v1860 = vld [vmem:[%s1837 + $0xb0] sm:$0xff]
        %v1861 = vld [vmem:[%s1837 + $0xb8] sm:$0xff]
        %v1862 = vld [vmem:[%s1837 + $0xc0] sm:$0xff]
        %v1863 = vld [vmem:[%s1837 + $0xc8] sm:$0xff]
        %v1864 = vld [vmem:[%s1837 + $0xd0] sm:$0xff]
        %v1865 = vld [vmem:[%s1837 + $0xd8] sm:$0xff]
        %v1866 = vld [vmem:[%s1837 + $0xe0] sm:$0xff]
        %v1867 = vld [vmem:[%s1837 + $0xe8] sm:$0xff]
        %v1868 = vld [vmem:[%s1837 + $0xf0] sm:$0xff]
        %v1869 = vld [vmem:[%s1837 + $0xf8] sm:$0xff]
        %v1870 = vld [vmem:[%s1837 + $0x100] sm:$0xff]
        %v1871 = vld [vmem:[%s1837 + $0x108] sm:$0xff]
        %v1872 = vld [vmem:[%s1837 + $0x110] sm:$0xff]
        %v1873 = vld [vmem:[%s1837 + $0x118] sm:$0xff]
        %v1874 = vld [vmem:[%s1837 + $0x120] sm:$0xff]
        %v1875 = vld [vmem:[%s1837 + $0x128] sm:$0xff]
        %v1876 = vld [vmem:[%s1837 + $0x130] sm:$0xff]
        %v1877 = vld [vmem:[%s1837 + $0x138] sm:$0xff]
        %v1878 = vld [vmem:[%s1837 + $0x140] sm:$0xff]
        %v1879 = vld [vmem:[%s1837 + $0x148] sm:$0xff]
        %v1880 = vld [vmem:[%s1837 + $0x150] sm:$0xff]
        %v1881 = vld [vmem:[%s1837 + $0x158] sm:$0xff]
        %v1882 = vld [vmem:[%s1837 + $0x160] sm:$0xff]
        %v1883 = vld [vmem:[%s1837 + $0x168] sm:$0xff]
        %v1884 = vld [vmem:[%s1837 + $0x170] sm:$0xff]
        %v1885 = vld [vmem:[%s1837 + $0x178] sm:$0xff]
        %v1886 = vld [vmem:[%s1837 + $0x180] sm:$0xff]
        %v1887 = vld [vmem:[%s1837 + $0x188] sm:$0xff]
        %v1888 = vld [vmem:[%s1837 + $0x190] sm:$0xff]
        %v1889 = vld [vmem:[%s1837 + $0x198] sm:$0xff]
        %v1890 = vld [vmem:[%s1837 + $0x1a0] sm:$0xff]
        %v1891 = vld [vmem:[%s1837 + $0x1a8] sm:$0xff]
        %v1892 = vld [vmem:[%s1837 + $0x1b0] sm:$0xff]
        %v1893 = vld [vmem:[%s1837 + $0x1b8] sm:$0xff]
        %v1894 = vld [vmem:[%s1837 + $0x1c0] sm:$0xff]
        %v1895 = vld [vmem:[%s1837 + $0x1c8] sm:$0xff]
        %v1896 = vld [vmem:[%s1837 + $0x1d0] sm:$0xff]
        %v1897 = vld [vmem:[%s1837 + $0x1d8] sm:$0xff]
        %v1898 = vld [vmem:[%s1837 + $0x1e0] sm:$0xff]
        %v1899 = vld [vmem:[%s1837 + $0x1e8] sm:$0xff]
        %v1900 = vld [vmem:[%s1837 + $0x1f0] sm:$0xff]
        %v1901 = vld [vmem:[%s1837 + $0x1f8] sm:$0xff]
        %1903 = vset.pattern.permute.xlu0 0
        %1904 = vperm.xlu0 %1903, %v1838
        %v1905 = vpop.permute.xlu0 %1904
        %1908 = vset.pattern.permute.xlu0 0
        %1909 = vperm.xlu0 %1908, %v1839
        %v1910 = vpop.permute.xlu0 %1909
        %1913 = vset.pattern.permute.xlu0 0
        %1914 = vperm.xlu0 %1913, %v1840
        %v1915 = vpop.permute.xlu0 %1914
        %1918 = vset.pattern.permute.xlu0 0
        %1919 = vperm.xlu0 %1918, %v1841
        %v1920 = vpop.permute.xlu0 %1919
        %1923 = vset.pattern.permute.xlu0 0
        %1924 = vperm.xlu0 %1923, %v1842
        %v1925 = vpop.permute.xlu0 %1924
        %1928 = vset.pattern.permute.xlu0 0
        %1929 = vperm.xlu0 %1928, %v1843
        %v1930 = vpop.permute.xlu0 %1929
        %1933 = vset.pattern.permute.xlu0 0
        %1934 = vperm.xlu0 %1933, %v1844
        %v1935 = vpop.permute.xlu0 %1934
        %1938 = vset.pattern.permute.xlu0 0
        %1939 = vperm.xlu0 %1938, %v1845
        %v1940 = vpop.permute.xlu0 %1939
        %1943 = vset.pattern.permute.xlu0 0
        %1944 = vperm.xlu0 %1943, %v1846
        %v1945 = vpop.permute.xlu0 %1944
        %1948 = vset.pattern.permute.xlu0 0
        %1949 = vperm.xlu0 %1948, %v1847
        %v1950 = vpop.permute.xlu0 %1949
        %1953 = vset.pattern.permute.xlu0 0
        %1954 = vperm.xlu0 %1953, %v1848
        %v1955 = vpop.permute.xlu0 %1954
        %1958 = vset.pattern.permute.xlu0 0
        %1959 = vperm.xlu0 %1958, %v1849
        %v1960 = vpop.permute.xlu0 %1959
        %1963 = vset.pattern.permute.xlu0 0
        %1964 = vperm.xlu0 %1963, %v1850
        %v1965 = vpop.permute.xlu0 %1964
        %1968 = vset.pattern.permute.xlu0 0
        %1969 = vperm.xlu0 %1968, %v1851
        %v1970 = vpop.permute.xlu0 %1969
        %1973 = vset.pattern.permute.xlu0 0
        %1974 = vperm.xlu0 %1973, %v1852
        %v1975 = vpop.permute.xlu0 %1974
        %1978 = vset.pattern.permute.xlu0 0
        %1979 = vperm.xlu0 %1978, %v1853
        %v1980 = vpop.permute.xlu0 %1979
        %1983 = vset.pattern.permute.xlu0 0
        %1984 = vperm.xlu0 %1983, %v1854
        %v1985 = vpop.permute.xlu0 %1984
        %1988 = vset.pattern.permute.xlu0 0
        %1989 = vperm.xlu0 %1988, %v1855
        %v1990 = vpop.permute.xlu0 %1989
        %1993 = vset.pattern.permute.xlu0 0
        %1994 = vperm.xlu0 %1993, %v1856
        %v1995 = vpop.permute.xlu0 %1994
        %1998 = vset.pattern.permute.xlu0 0
        %1999 = vperm.xlu0 %1998, %v1857
        %v2000 = vpop.permute.xlu0 %1999
        %2003 = vset.pattern.permute.xlu0 0
        %2004 = vperm.xlu0 %2003, %v1858
        %v2005 = vpop.permute.xlu0 %2004
        %2008 = vset.pattern.permute.xlu0 0
        %2009 = vperm.xlu0 %2008, %v1859
        %v2010 = vpop.permute.xlu0 %2009
        %2013 = vset.pattern.permute.xlu0 0
        %2014 = vperm.xlu0 %2013, %v1860
        %v2015 = vpop.permute.xlu0 %2014
        %2018 = vset.pattern.permute.xlu0 0
        %2019 = vperm.xlu0 %2018, %v1861
        %v2020 = vpop.permute.xlu0 %2019
        %2023 = vset.pattern.permute.xlu0 0
        %2024 = vperm.xlu0 %2023, %v1862
        %v2025 = vpop.permute.xlu0 %2024
        %2028 = vset.pattern.permute.xlu0 0
        %2029 = vperm.xlu0 %2028, %v1863
        %v2030 = vpop.permute.xlu0 %2029
        %2033 = vset.pattern.permute.xlu0 0
        %2034 = vperm.xlu0 %2033, %v1864
        %v2035 = vpop.permute.xlu0 %2034
        %2038 = vset.pattern.permute.xlu0 0
        %2039 = vperm.xlu0 %2038, %v1865
        %v2040 = vpop.permute.xlu0 %2039
        %2043 = vset.pattern.permute.xlu0 0
        %2044 = vperm.xlu0 %2043, %v1866
        %v2045 = vpop.permute.xlu0 %2044
        %2048 = vset.pattern.permute.xlu0 0
        %2049 = vperm.xlu0 %2048, %v1867
        %v2050 = vpop.permute.xlu0 %2049
        %2053 = vset.pattern.permute.xlu0 0
        %2054 = vperm.xlu0 %2053, %v1868
        %v2055 = vpop.permute.xlu0 %2054
        %2058 = vset.pattern.permute.xlu0 0
        %2059 = vperm.xlu0 %2058, %v1869
        %v2060 = vpop.permute.xlu0 %2059
        %2063 = vset.pattern.permute.xlu0 0
        %2064 = vperm.xlu0 %2063, %v1870
        %v2065 = vpop.permute.xlu0 %2064
        %2068 = vset.pattern.permute.xlu0 0
        %2069 = vperm.xlu0 %2068, %v1871
        %v2070 = vpop.permute.xlu0 %2069
        %2073 = vset.pattern.permute.xlu0 0
        %2074 = vperm.xlu0 %2073, %v1872
        %v2075 = vpop.permute.xlu0 %2074
        %2078 = vset.pattern.permute.xlu0 0
        %2079 = vperm.xlu0 %2078, %v1873
        %v2080 = vpop.permute.xlu0 %2079
        %2083 = vset.pattern.permute.xlu0 0
        %2084 = vperm.xlu0 %2083, %v1874
        %v2085 = vpop.permute.xlu0 %2084
        %2088 = vset.pattern.permute.xlu0 0
        %2089 = vperm.xlu0 %2088, %v1875
        %v2090 = vpop.permute.xlu0 %2089
        %2093 = vset.pattern.permute.xlu0 0
        %2094 = vperm.xlu0 %2093, %v1876
        %v2095 = vpop.permute.xlu0 %2094
        %2098 = vset.pattern.permute.xlu0 0
        %2099 = vperm.xlu0 %2098, %v1877
        %v2100 = vpop.permute.xlu0 %2099
        %2103 = vset.pattern.permute.xlu0 0
        %2104 = vperm.xlu0 %2103, %v1878
        %v2105 = vpop.permute.xlu0 %2104
        %2108 = vset.pattern.permute.xlu0 0
        %2109 = vperm.xlu0 %2108, %v1879
        %v2110 = vpop.permute.xlu0 %2109
        %2113 = vset.pattern.permute.xlu0 0
        %2114 = vperm.xlu0 %2113, %v1880
        %v2115 = vpop.permute.xlu0 %2114
        %2118 = vset.pattern.permute.xlu0 0
        %2119 = vperm.xlu0 %2118, %v1881
        %v2120 = vpop.permute.xlu0 %2119
        %2123 = vset.pattern.permute.xlu0 0
        %2124 = vperm.xlu0 %2123, %v1882
        %v2125 = vpop.permute.xlu0 %2124
        %2128 = vset.pattern.permute.xlu0 0
        %2129 = vperm.xlu0 %2128, %v1883
        %v2130 = vpop.permute.xlu0 %2129
        %2133 = vset.pattern.permute.xlu0 0
        %2134 = vperm.xlu0 %2133, %v1884
        %v2135 = vpop.permute.xlu0 %2134
        %2138 = vset.pattern.permute.xlu0 0
        %2139 = vperm.xlu0 %2138, %v1885
        %v2140 = vpop.permute.xlu0 %2139
        %2143 = vset.pattern.permute.xlu0 0
        %2144 = vperm.xlu0 %2143, %v1886
        %v2145 = vpop.permute.xlu0 %2144
        %2148 = vset.pattern.permute.xlu0 0
        %2149 = vperm.xlu0 %2148, %v1887
        %v2150 = vpop.permute.xlu0 %2149
        %2153 = vset.pattern.permute.xlu0 0
        %2154 = vperm.xlu0 %2153, %v1888
        %v2155 = vpop.permute.xlu0 %2154
        %2158 = vset.pattern.permute.xlu0 0
        %2159 = vperm.xlu0 %2158, %v1889
        %v2160 = vpop.permute.xlu0 %2159
        %2163 = vset.pattern.permute.xlu0 0
        %2164 = vperm.xlu0 %2163, %v1890
        %v2165 = vpop.permute.xlu0 %2164
        %2168 = vset.pattern.permute.xlu0 0
        %2169 = vperm.xlu0 %2168, %v1891
        %v2170 = vpop.permute.xlu0 %2169
        %2173 = vset.pattern.permute.xlu0 0
        %2174 = vperm.xlu0 %2173, %v1892
        %v2175 = vpop.permute.xlu0 %2174
        %2178 = vset.pattern.permute.xlu0 0
        %2179 = vperm.xlu0 %2178, %v1893
        %v2180 = vpop.permute.xlu0 %2179
        %2183 = vset.pattern.permute.xlu0 0
        %2184 = vperm.xlu0 %2183, %v1894
        %v2185 = vpop.permute.xlu0 %2184
        %2188 = vset.pattern.permute.xlu0 0
        %2189 = vperm.xlu0 %2188, %v1895
        %v2190 = vpop.permute.xlu0 %2189
        %2193 = vset.pattern.permute.xlu0 0
        %2194 = vperm.xlu0 %2193, %v1896
        %v2195 = vpop.permute.xlu0 %2194
        %2198 = vset.pattern.permute.xlu0 0
        %2199 = vperm.xlu0 %2198, %v1897
        %v2200 = vpop.permute.xlu0 %2199
        %2203 = vset.pattern.permute.xlu0 0
        %2204 = vperm.xlu0 %2203, %v1898
        %v2205 = vpop.permute.xlu0 %2204
        %2208 = vset.pattern.permute.xlu0 0
        %2209 = vperm.xlu0 %2208, %v1899
        %v2210 = vpop.permute.xlu0 %2209
        %2213 = vset.pattern.permute.xlu0 0
        %2214 = vperm.xlu0 %2213, %v1900
        %v2215 = vpop.permute.xlu0 %2214
        %2218 = vset.pattern.permute.xlu0 0
        %2219 = vperm.xlu0 %2218, %v1901
        %v2220 = vpop.permute.xlu0 %2219
        %v2222 = vmul.f32 %v715, %v1905
        %v2223 = vmul.f32 %v716, %v1910
        %v2224 = vmul.f32 %v717, %v1915
        %v2225 = vmul.f32 %v718, %v1920
        %v2226 = vmul.f32 %v719, %v1925
        %v2227 = vmul.f32 %v720, %v1930
        %v2228 = vmul.f32 %v721, %v1935
        %v2229 = vmul.f32 %v722, %v1940
        %v2230 = vmul.f32 %v723, %v1945
        %v2231 = vmul.f32 %v724, %v1950
        %v2232 = vmul.f32 %v725, %v1955
        %v2233 = vmul.f32 %v726, %v1960
        %v2234 = vmul.f32 %v727, %v1965
        %v2235 = vmul.f32 %v728, %v1970
        %v2236 = vmul.f32 %v729, %v1975
        %v2237 = vmul.f32 %v730, %v1980
        %v2238 = vmul.f32 %v731, %v1985
        %v2239 = vmul.f32 %v732, %v1990
        %v2240 = vmul.f32 %v733, %v1995
        %v2241 = vmul.f32 %v734, %v2000
        %v2242 = vmul.f32 %v735, %v2005
        %v2243 = vmul.f32 %v736, %v2010
        %v2244 = vmul.f32 %v737, %v2015
        %v2245 = vmul.f32 %v738, %v2020
        %v2246 = vmul.f32 %v739, %v2025
        %v2247 = vmul.f32 %v740, %v2030
        %v2248 = vmul.f32 %v741, %v2035
        %v2249 = vmul.f32 %v742, %v2040
        %v2250 = vmul.f32 %v743, %v2045
        %v2251 = vmul.f32 %v744, %v2050
        %v2252 = vmul.f32 %v745, %v2055
        %v2253 = vmul.f32 %v746, %v2060
        %v2254 = vmul.f32 %v747, %v2065
        %v2255 = vmul.f32 %v748, %v2070
        %v2256 = vmul.f32 %v749, %v2075
        %v2257 = vmul.f32 %v750, %v2080
        %v2258 = vmul.f32 %v751, %v2085
        %v2259 = vmul.f32 %v752, %v2090
        %v2260 = vmul.f32 %v753, %v2095
        %v2261 = vmul.f32 %v754, %v2100
        %v2262 = vmul.f32 %v755, %v2105
        %v2263 = vmul.f32 %v756, %v2110
        %v2264 = vmul.f32 %v757, %v2115
        %v2265 = vmul.f32 %v758, %v2120
        %v2266 = vmul.f32 %v759, %v2125
        %v2267 = vmul.f32 %v760, %v2130
        %v2268 = vmul.f32 %v761, %v2135
        %v2269 = vmul.f32 %v762, %v2140
        %v2270 = vmul.f32 %v763, %v2145
        %v2271 = vmul.f32 %v764, %v2150
        %v2272 = vmul.f32 %v765, %v2155
        %v2273 = vmul.f32 %v766, %v2160
        %v2274 = vmul.f32 %v767, %v2165
        %v2275 = vmul.f32 %v768, %v2170
        %v2276 = vmul.f32 %v769, %v2175
        %v2277 = vmul.f32 %v770, %v2180
        %v2278 = vmul.f32 %v771, %v2185
        %v2279 = vmul.f32 %v772, %v2190
        %v2280 = vmul.f32 %v773, %v2195
        %v2281 = vmul.f32 %v774, %v2200
        %v2282 = vmul.f32 %v775, %v2205
        %v2283 = vmul.f32 %v776, %v2210
        %v2284 = vmul.f32 %v777, %v2215
        %v2285 = vmul.f32 %v778, %v2220
        %s2286 = scalar_lea.vmem %s0, 1536
        %v2287 = vld [vmem:[%s2286] sm:$0xff]
        %v2288 = vld [vmem:[%s2286 + $0x8] sm:$0xff]
        %v2289 = vld [vmem:[%s2286 + $0x10] sm:$0xff]
        %v2290 = vld [vmem:[%s2286 + $0x18] sm:$0xff]
        %v2291 = vld [vmem:[%s2286 + $0x20] sm:$0xff]
        %v2292 = vld [vmem:[%s2286 + $0x28] sm:$0xff]
        %v2293 = vld [vmem:[%s2286 + $0x30] sm:$0xff]
        %v2294 = vld [vmem:[%s2286 + $0x38] sm:$0xff]
        %v2295 = vld [vmem:[%s2286 + $0x40] sm:$0xff]
        %v2296 = vld [vmem:[%s2286 + $0x48] sm:$0xff]
        %v2297 = vld [vmem:[%s2286 + $0x50] sm:$0xff]
        %v2298 = vld [vmem:[%s2286 + $0x58] sm:$0xff]
        %v2299 = vld [vmem:[%s2286 + $0x60] sm:$0xff]
        %v2300 = vld [vmem:[%s2286 + $0x68] sm:$0xff]
        %v2301 = vld [vmem:[%s2286 + $0x70] sm:$0xff]
        %v2302 = vld [vmem:[%s2286 + $0x78] sm:$0xff]
        %v2303 = vld [vmem:[%s2286 + $0x80] sm:$0xff]
        %v2304 = vld [vmem:[%s2286 + $0x88] sm:$0xff]
        %v2305 = vld [vmem:[%s2286 + $0x90] sm:$0xff]
        %v2306 = vld [vmem:[%s2286 + $0x98] sm:$0xff]
        %v2307 = vld [vmem:[%s2286 + $0xa0] sm:$0xff]
        %v2308 = vld [vmem:[%s2286 + $0xa8] sm:$0xff]
        %v2309 = vld [vmem:[%s2286 + $0xb0] sm:$0xff]
        %v2310 = vld [vmem:[%s2286 + $0xb8] sm:$0xff]
        %v2311 = vld [vmem:[%s2286 + $0xc0] sm:$0xff]
        %v2312 = vld [vmem:[%s2286 + $0xc8] sm:$0xff]
        %v2313 = vld [vmem:[%s2286 + $0xd0] sm:$0xff]
        %v2314 = vld [vmem:[%s2286 + $0xd8] sm:$0xff]
        %v2315 = vld [vmem:[%s2286 + $0xe0] sm:$0xff]
        %v2316 = vld [vmem:[%s2286 + $0xe8] sm:$0xff]
        %v2317 = vld [vmem:[%s2286 + $0xf0] sm:$0xff]
        %v2318 = vld [vmem:[%s2286 + $0xf8] sm:$0xff]
        %v2319 = vld [vmem:[%s2286 + $0x100] sm:$0xff]
        %v2320 = vld [vmem:[%s2286 + $0x108] sm:$0xff]
        %v2321 = vld [vmem:[%s2286 + $0x110] sm:$0xff]
        %v2322 = vld [vmem:[%s2286 + $0x118] sm:$0xff]
        %v2323 = vld [vmem:[%s2286 + $0x120] sm:$0xff]
        %v2324 = vld [vmem:[%s2286 + $0x128] sm:$0xff]
        %v2325 = vld [vmem:[%s2286 + $0x130] sm:$0xff]
        %v2326 = vld [vmem:[%s2286 + $0x138] sm:$0xff]
        %v2327 = vld [vmem:[%s2286 + $0x140] sm:$0xff]
        %v2328 = vld [vmem:[%s2286 + $0x148] sm:$0xff]
        %v2329 = vld [vmem:[%s2286 + $0x150] sm:$0xff]
        %v2330 = vld [vmem:[%s2286 + $0x158] sm:$0xff]
        %v2331 = vld [vmem:[%s2286 + $0x160] sm:$0xff]
        %v2332 = vld [vmem:[%s2286 + $0x168] sm:$0xff]
        %v2333 = vld [vmem:[%s2286 + $0x170] sm:$0xff]
        %v2334 = vld [vmem:[%s2286 + $0x178] sm:$0xff]
        %v2335 = vld [vmem:[%s2286 + $0x180] sm:$0xff]
        %v2336 = vld [vmem:[%s2286 + $0x188] sm:$0xff]
        %v2337 = vld [vmem:[%s2286 + $0x190] sm:$0xff]
        %v2338 = vld [vmem:[%s2286 + $0x198] sm:$0xff]
        %v2339 = vld [vmem:[%s2286 + $0x1a0] sm:$0xff]
        %v2340 = vld [vmem:[%s2286 + $0x1a8] sm:$0xff]
        %v2341 = vld [vmem:[%s2286 + $0x1b0] sm:$0xff]
        %v2342 = vld [vmem:[%s2286 + $0x1b8] sm:$0xff]
        %v2343 = vld [vmem:[%s2286 + $0x1c0] sm:$0xff]
        %v2344 = vld [vmem:[%s2286 + $0x1c8] sm:$0xff]
        %v2345 = vld [vmem:[%s2286 + $0x1d0] sm:$0xff]
        %v2346 = vld [vmem:[%s2286 + $0x1d8] sm:$0xff]
        %v2347 = vld [vmem:[%s2286 + $0x1e0] sm:$0xff]
        %v2348 = vld [vmem:[%s2286 + $0x1e8] sm:$0xff]
        %v2349 = vld [vmem:[%s2286 + $0x1f0] sm:$0xff]
        %v2350 = vld [vmem:[%s2286 + $0x1f8] sm:$0xff]
        %2352 = vset.pattern.permute.xlu0 0
        %2353 = vperm.xlu0 %2352, %v2287
        %v2354 = vpop.permute.xlu0 %2353
        %2357 = vset.pattern.permute.xlu0 0
        %2358 = vperm.xlu0 %2357, %v2288
        %v2359 = vpop.permute.xlu0 %2358
        %2362 = vset.pattern.permute.xlu0 0
        %2363 = vperm.xlu0 %2362, %v2289
        %v2364 = vpop.permute.xlu0 %2363
        %2367 = vset.pattern.permute.xlu0 0
        %2368 = vperm.xlu0 %2367, %v2290
        %v2369 = vpop.permute.xlu0 %2368
        %2372 = vset.pattern.permute.xlu0 0
        %2373 = vperm.xlu0 %2372, %v2291
        %v2374 = vpop.permute.xlu0 %2373
        %2377 = vset.pattern.permute.xlu0 0
        %2378 = vperm.xlu0 %2377, %v2292
        %v2379 = vpop.permute.xlu0 %2378
        %2382 = vset.pattern.permute.xlu0 0
        %2383 = vperm.xlu0 %2382, %v2293
        %v2384 = vpop.permute.xlu0 %2383
        %2387 = vset.pattern.permute.xlu0 0
        %2388 = vperm.xlu0 %2387, %v2294
        %v2389 = vpop.permute.xlu0 %2388
        %2392 = vset.pattern.permute.xlu0 0
        %2393 = vperm.xlu0 %2392, %v2295
        %v2394 = vpop.permute.xlu0 %2393
        %2397 = vset.pattern.permute.xlu0 0
        %2398 = vperm.xlu0 %2397, %v2296
        %v2399 = vpop.permute.xlu0 %2398
        %2402 = vset.pattern.permute.xlu0 0
        %2403 = vperm.xlu0 %2402, %v2297
        %v2404 = vpop.permute.xlu0 %2403
        %2407 = vset.pattern.permute.xlu0 0
        %2408 = vperm.xlu0 %2407, %v2298
        %v2409 = vpop.permute.xlu0 %2408
        %2412 = vset.pattern.permute.xlu0 0
        %2413 = vperm.xlu0 %2412, %v2299
        %v2414 = vpop.permute.xlu0 %2413
        %2417 = vset.pattern.permute.xlu0 0
        %2418 = vperm.xlu0 %2417, %v2300
        %v2419 = vpop.permute.xlu0 %2418
        %2422 = vset.pattern.permute.xlu0 0
        %2423 = vperm.xlu0 %2422, %v2301
        %v2424 = vpop.permute.xlu0 %2423
        %2427 = vset.pattern.permute.xlu0 0
        %2428 = vperm.xlu0 %2427, %v2302
        %v2429 = vpop.permute.xlu0 %2428
        %2432 = vset.pattern.permute.xlu0 0
        %2433 = vperm.xlu0 %2432, %v2303
        %v2434 = vpop.permute.xlu0 %2433
        %2437 = vset.pattern.permute.xlu0 0
        %2438 = vperm.xlu0 %2437, %v2304
        %v2439 = vpop.permute.xlu0 %2438
        %2442 = vset.pattern.permute.xlu0 0
        %2443 = vperm.xlu0 %2442, %v2305
        %v2444 = vpop.permute.xlu0 %2443
        %2447 = vset.pattern.permute.xlu0 0
        %2448 = vperm.xlu0 %2447, %v2306
        %v2449 = vpop.permute.xlu0 %2448
        %2452 = vset.pattern.permute.xlu0 0
        %2453 = vperm.xlu0 %2452, %v2307
        %v2454 = vpop.permute.xlu0 %2453
        %2457 = vset.pattern.permute.xlu0 0
        %2458 = vperm.xlu0 %2457, %v2308
        %v2459 = vpop.permute.xlu0 %2458
        %2462 = vset.pattern.permute.xlu0 0
        %2463 = vperm.xlu0 %2462, %v2309
        %v2464 = vpop.permute.xlu0 %2463
        %2467 = vset.pattern.permute.xlu0 0
        %2468 = vperm.xlu0 %2467, %v2310
        %v2469 = vpop.permute.xlu0 %2468
        %2472 = vset.pattern.permute.xlu0 0
        %2473 = vperm.xlu0 %2472, %v2311
        %v2474 = vpop.permute.xlu0 %2473
        %2477 = vset.pattern.permute.xlu0 0
        %2478 = vperm.xlu0 %2477, %v2312
        %v2479 = vpop.permute.xlu0 %2478
        %2482 = vset.pattern.permute.xlu0 0
        %2483 = vperm.xlu0 %2482, %v2313
        %v2484 = vpop.permute.xlu0 %2483
        %2487 = vset.pattern.permute.xlu0 0
        %2488 = vperm.xlu0 %2487, %v2314
        %v2489 = vpop.permute.xlu0 %2488
        %2492 = vset.pattern.permute.xlu0 0
        %2493 = vperm.xlu0 %2492, %v2315
        %v2494 = vpop.permute.xlu0 %2493
        %2497 = vset.pattern.permute.xlu0 0
        %2498 = vperm.xlu0 %2497, %v2316
        %v2499 = vpop.permute.xlu0 %2498
        %2502 = vset.pattern.permute.xlu0 0
        %2503 = vperm.xlu0 %2502, %v2317
        %v2504 = vpop.permute.xlu0 %2503
        %2507 = vset.pattern.permute.xlu0 0
        %2508 = vperm.xlu0 %2507, %v2318
        %v2509 = vpop.permute.xlu0 %2508
        %2512 = vset.pattern.permute.xlu0 0
        %2513 = vperm.xlu0 %2512, %v2319
        %v2514 = vpop.permute.xlu0 %2513
        %2517 = vset.pattern.permute.xlu0 0
        %2518 = vperm.xlu0 %2517, %v2320
        %v2519 = vpop.permute.xlu0 %2518
        %2522 = vset.pattern.permute.xlu0 0
        %2523 = vperm.xlu0 %2522, %v2321
        %v2524 = vpop.permute.xlu0 %2523
        %2527 = vset.pattern.permute.xlu0 0
        %2528 = vperm.xlu0 %2527, %v2322
        %v2529 = vpop.permute.xlu0 %2528
        %2532 = vset.pattern.permute.xlu0 0
        %2533 = vperm.xlu0 %2532, %v2323
        %v2534 = vpop.permute.xlu0 %2533
        %2537 = vset.pattern.permute.xlu0 0
        %2538 = vperm.xlu0 %2537, %v2324
        %v2539 = vpop.permute.xlu0 %2538
        %2542 = vset.pattern.permute.xlu0 0
        %2543 = vperm.xlu0 %2542, %v2325
        %v2544 = vpop.permute.xlu0 %2543
        %2547 = vset.pattern.permute.xlu0 0
        %2548 = vperm.xlu0 %2547, %v2326
        %v2549 = vpop.permute.xlu0 %2548
        %2552 = vset.pattern.permute.xlu0 0
        %2553 = vperm.xlu0 %2552, %v2327
        %v2554 = vpop.permute.xlu0 %2553
        %2557 = vset.pattern.permute.xlu0 0
        %2558 = vperm.xlu0 %2557, %v2328
        %v2559 = vpop.permute.xlu0 %2558
        %2562 = vset.pattern.permute.xlu0 0
        %2563 = vperm.xlu0 %2562, %v2329
        %v2564 = vpop.permute.xlu0 %2563
        %2567 = vset.pattern.permute.xlu0 0
        %2568 = vperm.xlu0 %2567, %v2330
        %v2569 = vpop.permute.xlu0 %2568
        %2572 = vset.pattern.permute.xlu0 0
        %2573 = vperm.xlu0 %2572, %v2331
        %v2574 = vpop.permute.xlu0 %2573
        %2577 = vset.pattern.permute.xlu0 0
        %2578 = vperm.xlu0 %2577, %v2332
        %v2579 = vpop.permute.xlu0 %2578
        %2582 = vset.pattern.permute.xlu0 0
        %2583 = vperm.xlu0 %2582, %v2333
        %v2584 = vpop.permute.xlu0 %2583
        %2587 = vset.pattern.permute.xlu0 0
        %2588 = vperm.xlu0 %2587, %v2334
        %v2589 = vpop.permute.xlu0 %2588
        %2592 = vset.pattern.permute.xlu0 0
        %2593 = vperm.xlu0 %2592, %v2335
        %v2594 = vpop.permute.xlu0 %2593
        %2597 = vset.pattern.permute.xlu0 0
        %2598 = vperm.xlu0 %2597, %v2336
        %v2599 = vpop.permute.xlu0 %2598
        %2602 = vset.pattern.permute.xlu0 0
        %2603 = vperm.xlu0 %2602, %v2337
        %v2604 = vpop.permute.xlu0 %2603
        %2607 = vset.pattern.permute.xlu0 0
        %2608 = vperm.xlu0 %2607, %v2338
        %v2609 = vpop.permute.xlu0 %2608
        %2612 = vset.pattern.permute.xlu0 0
        %2613 = vperm.xlu0 %2612, %v2339
        %v2614 = vpop.permute.xlu0 %2613
        %2617 = vset.pattern.permute.xlu0 0
        %2618 = vperm.xlu0 %2617, %v2340
        %v2619 = vpop.permute.xlu0 %2618
        %2622 = vset.pattern.permute.xlu0 0
        %2623 = vperm.xlu0 %2622, %v2341
        %v2624 = vpop.permute.xlu0 %2623
        %2627 = vset.pattern.permute.xlu0 0
        %2628 = vperm.xlu0 %2627, %v2342
        %v2629 = vpop.permute.xlu0 %2628
        %2632 = vset.pattern.permute.xlu0 0
        %2633 = vperm.xlu0 %2632, %v2343
        %v2634 = vpop.permute.xlu0 %2633
        %2637 = vset.pattern.permute.xlu0 0
        %2638 = vperm.xlu0 %2637, %v2344
        %v2639 = vpop.permute.xlu0 %2638
        %2642 = vset.pattern.permute.xlu0 0
        %2643 = vperm.xlu0 %2642, %v2345
        %v2644 = vpop.permute.xlu0 %2643
        %2647 = vset.pattern.permute.xlu0 0
        %2648 = vperm.xlu0 %2647, %v2346
        %v2649 = vpop.permute.xlu0 %2648
        %2652 = vset.pattern.permute.xlu0 0
        %2653 = vperm.xlu0 %2652, %v2347
        %v2654 = vpop.permute.xlu0 %2653
        %2657 = vset.pattern.permute.xlu0 0
        %2658 = vperm.xlu0 %2657, %v2348
        %v2659 = vpop.permute.xlu0 %2658
        %2662 = vset.pattern.permute.xlu0 0
        %2663 = vperm.xlu0 %2662, %v2349
        %v2664 = vpop.permute.xlu0 %2663
        %2667 = vset.pattern.permute.xlu0 0
        %2668 = vperm.xlu0 %2667, %v2350
        %v2669 = vpop.permute.xlu0 %2668
        %v2671 = vmul.f32 %v780, %v2354
        %v2672 = vmul.f32 %v781, %v2359
        %v2673 = vmul.f32 %v782, %v2364
        %v2674 = vmul.f32 %v783, %v2369
        %v2675 = vmul.f32 %v784, %v2374
        %v2676 = vmul.f32 %v785, %v2379
        %v2677 = vmul.f32 %v786, %v2384
        %v2678 = vmul.f32 %v787, %v2389
        %v2679 = vmul.f32 %v788, %v2394
        %v2680 = vmul.f32 %v789, %v2399
        %v2681 = vmul.f32 %v790, %v2404
        %v2682 = vmul.f32 %v791, %v2409
        %v2683 = vmul.f32 %v792, %v2414
        %v2684 = vmul.f32 %v793, %v2419
        %v2685 = vmul.f32 %v794, %v2424
        %v2686 = vmul.f32 %v795, %v2429
        %v2687 = vmul.f32 %v796, %v2434
        %v2688 = vmul.f32 %v797, %v2439
        %v2689 = vmul.f32 %v798, %v2444
        %v2690 = vmul.f32 %v799, %v2449
        %v2691 = vmul.f32 %v800, %v2454
        %v2692 = vmul.f32 %v801, %v2459
        %v2693 = vmul.f32 %v802, %v2464
        %v2694 = vmul.f32 %v803, %v2469
        %v2695 = vmul.f32 %v804, %v2474
        %v2696 = vmul.f32 %v805, %v2479
        %v2697 = vmul.f32 %v806, %v2484
        %v2698 = vmul.f32 %v807, %v2489
        %v2699 = vmul.f32 %v808, %v2494
        %v2700 = vmul.f32 %v809, %v2499
        %v2701 = vmul.f32 %v810, %v2504
        %v2702 = vmul.f32 %v811, %v2509
        %v2703 = vmul.f32 %v812, %v2514
        %v2704 = vmul.f32 %v813, %v2519
        %v2705 = vmul.f32 %v814, %v2524
        %v2706 = vmul.f32 %v815, %v2529
        %v2707 = vmul.f32 %v816, %v2534
        %v2708 = vmul.f32 %v817, %v2539
        %v2709 = vmul.f32 %v818, %v2544
        %v2710 = vmul.f32 %v819, %v2549
        %v2711 = vmul.f32 %v820, %v2554
        %v2712 = vmul.f32 %v821, %v2559
        %v2713 = vmul.f32 %v822, %v2564
        %v2714 = vmul.f32 %v823, %v2569
        %v2715 = vmul.f32 %v824, %v2574
        %v2716 = vmul.f32 %v825, %v2579
        %v2717 = vmul.f32 %v826, %v2584
        %v2718 = vmul.f32 %v827, %v2589
        %v2719 = vmul.f32 %v828, %v2594
        %v2720 = vmul.f32 %v829, %v2599
        %v2721 = vmul.f32 %v830, %v2604
        %v2722 = vmul.f32 %v831, %v2609
        %v2723 = vmul.f32 %v832, %v2614
        %v2724 = vmul.f32 %v833, %v2619
        %v2725 = vmul.f32 %v834, %v2624
        %v2726 = vmul.f32 %v835, %v2629
        %v2727 = vmul.f32 %v836, %v2634
        %v2728 = vmul.f32 %v837, %v2639
        %v2729 = vmul.f32 %v838, %v2644
        %v2730 = vmul.f32 %v839, %v2649
        %v2731 = vmul.f32 %v840, %v2654
        %v2732 = vmul.f32 %v841, %v2659
        %v2733 = vmul.f32 %v842, %v2664
        %v2734 = vmul.f32 %v843, %v2669
        %v2735 = vadd.f32 %v2222, %v2671
        %v2736 = vadd.f32 %v2223, %v2672
        %v2737 = vadd.f32 %v2224, %v2673
        %v2738 = vadd.f32 %v2225, %v2674
        %v2739 = vadd.f32 %v2226, %v2675
        %v2740 = vadd.f32 %v2227, %v2676
        %v2741 = vadd.f32 %v2228, %v2677
        %v2742 = vadd.f32 %v2229, %v2678
        %v2743 = vadd.f32 %v2230, %v2679
        %v2744 = vadd.f32 %v2231, %v2680
        %v2745 = vadd.f32 %v2232, %v2681
        %v2746 = vadd.f32 %v2233, %v2682
        %v2747 = vadd.f32 %v2234, %v2683
        %v2748 = vadd.f32 %v2235, %v2684
        %v2749 = vadd.f32 %v2236, %v2685
        %v2750 = vadd.f32 %v2237, %v2686
        %v2751 = vadd.f32 %v2238, %v2687
        %v2752 = vadd.f32 %v2239, %v2688
        %v2753 = vadd.f32 %v2240, %v2689
        %v2754 = vadd.f32 %v2241, %v2690
        %v2755 = vadd.f32 %v2242, %v2691
        %v2756 = vadd.f32 %v2243, %v2692
        %v2757 = vadd.f32 %v2244, %v2693
        %v2758 = vadd.f32 %v2245, %v2694
        %v2759 = vadd.f32 %v2246, %v2695
        %v2760 = vadd.f32 %v2247, %v2696
        %v2761 = vadd.f32 %v2248, %v2697
        %v2762 = vadd.f32 %v2249, %v2698
        %v2763 = vadd.f32 %v2250, %v2699
        %v2764 = vadd.f32 %v2251, %v2700
        %v2765 = vadd.f32 %v2252, %v2701
        %v2766 = vadd.f32 %v2253, %v2702
        %v2767 = vadd.f32 %v2254, %v2703
        %v2768 = vadd.f32 %v2255, %v2704
        %v2769 = vadd.f32 %v2256, %v2705
        %v2770 = vadd.f32 %v2257, %v2706
        %v2771 = vadd.f32 %v2258, %v2707
        %v2772 = vadd.f32 %v2259, %v2708
        %v2773 = vadd.f32 %v2260, %v2709
        %v2774 = vadd.f32 %v2261, %v2710
        %v2775 = vadd.f32 %v2262, %v2711
        %v2776 = vadd.f32 %v2263, %v2712
        %v2777 = vadd.f32 %v2264, %v2713
        %v2778 = vadd.f32 %v2265, %v2714
        %v2779 = vadd.f32 %v2266, %v2715
        %v2780 = vadd.f32 %v2267, %v2716
        %v2781 = vadd.f32 %v2268, %v2717
        %v2782 = vadd.f32 %v2269, %v2718
        %v2783 = vadd.f32 %v2270, %v2719
        %v2784 = vadd.f32 %v2271, %v2720
        %v2785 = vadd.f32 %v2272, %v2721
        %v2786 = vadd.f32 %v2273, %v2722
        %v2787 = vadd.f32 %v2274, %v2723
        %v2788 = vadd.f32 %v2275, %v2724
        %v2789 = vadd.f32 %v2276, %v2725
        %v2790 = vadd.f32 %v2277, %v2726
        %v2791 = vadd.f32 %v2278, %v2727
        %v2792 = vadd.f32 %v2279, %v2728
        %v2793 = vadd.f32 %v2280, %v2729
        %v2794 = vadd.f32 %v2281, %v2730
        %v2795 = vadd.f32 %v2282, %v2731
        %v2796 = vadd.f32 %v2283, %v2732
        %v2797 = vadd.f32 %v2284, %v2733
        %v2798 = vadd.f32 %v2285, %v2734
        %v2799 = vpack.c.bf16 %v2736, %v2735
        %v2800 = vpack.c.bf16 %v2738, %v2737
        %v2801 = vpack.c.bf16 %v2740, %v2739
        %v2802 = vpack.c.bf16 %v2742, %v2741
        %v2803 = vpack.c.bf16 %v2744, %v2743
        %v2804 = vpack.c.bf16 %v2746, %v2745
        %v2805 = vpack.c.bf16 %v2748, %v2747
        %v2806 = vpack.c.bf16 %v2750, %v2749
        %v2807 = vpack.c.bf16 %v2752, %v2751
        %v2808 = vpack.c.bf16 %v2754, %v2753
        %v2809 = vpack.c.bf16 %v2756, %v2755
        %v2810 = vpack.c.bf16 %v2758, %v2757
        %v2811 = vpack.c.bf16 %v2760, %v2759
        %v2812 = vpack.c.bf16 %v2762, %v2761
        %v2813 = vpack.c.bf16 %v2764, %v2763
        %v2814 = vpack.c.bf16 %v2766, %v2765
        %v2815 = vpack.c.bf16 %v2768, %v2767
        %v2816 = vpack.c.bf16 %v2770, %v2769
        %v2817 = vpack.c.bf16 %v2772, %v2771
        %v2818 = vpack.c.bf16 %v2774, %v2773
        %v2819 = vpack.c.bf16 %v2776, %v2775
        %v2820 = vpack.c.bf16 %v2778, %v2777
        %v2821 = vpack.c.bf16 %v2780, %v2779
        %v2822 = vpack.c.bf16 %v2782, %v2781
        %v2823 = vpack.c.bf16 %v2784, %v2783
        %v2824 = vpack.c.bf16 %v2786, %v2785
        %v2825 = vpack.c.bf16 %v2788, %v2787
        %v2826 = vpack.c.bf16 %v2790, %v2789
        %v2827 = vpack.c.bf16 %v2792, %v2791
        %v2828 = vpack.c.bf16 %v2794, %v2793
        %v2829 = vpack.c.bf16 %v2796, %v2795
        %v2830 = vpack.c.bf16 %v2798, %v2797
        %s2831 = scalar_lea.vmem %s0, 2048
        %v2832 = vld [vmem:[%s2831] sm:$0xff]
        %v2833 = vld [vmem:[%s2831 + $0x8] sm:$0xff]
        %v2834 = vld [vmem:[%s2831 + $0x10] sm:$0xff]
        %v2835 = vld [vmem:[%s2831 + $0x18] sm:$0xff]
        %v2836 = vld [vmem:[%s2831 + $0x20] sm:$0xff]
        %v2837 = vld [vmem:[%s2831 + $0x28] sm:$0xff]
        %v2838 = vld [vmem:[%s2831 + $0x30] sm:$0xff]
        %v2839 = vld [vmem:[%s2831 + $0x38] sm:$0xff]
        %v2840 = vld [vmem:[%s2831 + $0x40] sm:$0xff]
        %v2841 = vld [vmem:[%s2831 + $0x48] sm:$0xff]
        %v2842 = vld [vmem:[%s2831 + $0x50] sm:$0xff]
        %v2843 = vld [vmem:[%s2831 + $0x58] sm:$0xff]
        %v2844 = vld [vmem:[%s2831 + $0x60] sm:$0xff]
        %v2845 = vld [vmem:[%s2831 + $0x68] sm:$0xff]
        %v2846 = vld [vmem:[%s2831 + $0x70] sm:$0xff]
        %v2847 = vld [vmem:[%s2831 + $0x78] sm:$0xff]
        %v2848 = vld [vmem:[%s2831 + $0x80] sm:$0xff]
        %v2849 = vld [vmem:[%s2831 + $0x88] sm:$0xff]
        %v2850 = vld [vmem:[%s2831 + $0x90] sm:$0xff]
        %v2851 = vld [vmem:[%s2831 + $0x98] sm:$0xff]
        %v2852 = vld [vmem:[%s2831 + $0xa0] sm:$0xff]
        %v2853 = vld [vmem:[%s2831 + $0xa8] sm:$0xff]
        %v2854 = vld [vmem:[%s2831 + $0xb0] sm:$0xff]
        %v2855 = vld [vmem:[%s2831 + $0xb8] sm:$0xff]
        %v2856 = vld [vmem:[%s2831 + $0xc0] sm:$0xff]
        %v2857 = vld [vmem:[%s2831 + $0xc8] sm:$0xff]
        %v2858 = vld [vmem:[%s2831 + $0xd0] sm:$0xff]
        %v2859 = vld [vmem:[%s2831 + $0xd8] sm:$0xff]
        %v2860 = vld [vmem:[%s2831 + $0xe0] sm:$0xff]
        %v2861 = vld [vmem:[%s2831 + $0xe8] sm:$0xff]
        %v2862 = vld [vmem:[%s2831 + $0xf0] sm:$0xff]
        %v2863 = vld [vmem:[%s2831 + $0xf8] sm:$0xff]
        %v2864 = vld [vmem:[%s2831 + $0x100] sm:$0xff]
        %v2865 = vld [vmem:[%s2831 + $0x108] sm:$0xff]
        %v2866 = vld [vmem:[%s2831 + $0x110] sm:$0xff]
        %v2867 = vld [vmem:[%s2831 + $0x118] sm:$0xff]
        %v2868 = vld [vmem:[%s2831 + $0x120] sm:$0xff]
        %v2869 = vld [vmem:[%s2831 + $0x128] sm:$0xff]
        %v2870 = vld [vmem:[%s2831 + $0x130] sm:$0xff]
        %v2871 = vld [vmem:[%s2831 + $0x138] sm:$0xff]
        %v2872 = vld [vmem:[%s2831 + $0x140] sm:$0xff]
        %v2873 = vld [vmem:[%s2831 + $0x148] sm:$0xff]
        %v2874 = vld [vmem:[%s2831 + $0x150] sm:$0xff]
        %v2875 = vld [vmem:[%s2831 + $0x158] sm:$0xff]
        %v2876 = vld [vmem:[%s2831 + $0x160] sm:$0xff]
        %v2877 = vld [vmem:[%s2831 + $0x168] sm:$0xff]
        %v2878 = vld [vmem:[%s2831 + $0x170] sm:$0xff]
        %v2879 = vld [vmem:[%s2831 + $0x178] sm:$0xff]
        %v2880 = vld [vmem:[%s2831 + $0x180] sm:$0xff]
        %v2881 = vld [vmem:[%s2831 + $0x188] sm:$0xff]
        %v2882 = vld [vmem:[%s2831 + $0x190] sm:$0xff]
        %v2883 = vld [vmem:[%s2831 + $0x198] sm:$0xff]
        %v2884 = vld [vmem:[%s2831 + $0x1a0] sm:$0xff]
        %v2885 = vld [vmem:[%s2831 + $0x1a8] sm:$0xff]
        %v2886 = vld [vmem:[%s2831 + $0x1b0] sm:$0xff]
        %v2887 = vld [vmem:[%s2831 + $0x1b8] sm:$0xff]
        %v2888 = vld [vmem:[%s2831 + $0x1c0] sm:$0xff]
        %v2889 = vld [vmem:[%s2831 + $0x1c8] sm:$0xff]
        %v2890 = vld [vmem:[%s2831 + $0x1d0] sm:$0xff]
        %v2891 = vld [vmem:[%s2831 + $0x1d8] sm:$0xff]
        %v2892 = vld [vmem:[%s2831 + $0x1e0] sm:$0xff]
        %v2893 = vld [vmem:[%s2831 + $0x1e8] sm:$0xff]
        %v2894 = vld [vmem:[%s2831 + $0x1f0] sm:$0xff]
        %v2895 = vld [vmem:[%s2831 + $0x1f8] sm:$0xff]
        %2897 = vset.pattern.permute.xlu0 0
        %2898 = vperm.xlu0 %2897, %v2832
        %v2899 = vpop.permute.xlu0 %2898
        %2902 = vset.pattern.permute.xlu0 0
        %2903 = vperm.xlu0 %2902, %v2833
        %v2904 = vpop.permute.xlu0 %2903
        %2907 = vset.pattern.permute.xlu0 0
        %2908 = vperm.xlu0 %2907, %v2834
        %v2909 = vpop.permute.xlu0 %2908
        %2912 = vset.pattern.permute.xlu0 0
        %2913 = vperm.xlu0 %2912, %v2835
        %v2914 = vpop.permute.xlu0 %2913
        %2917 = vset.pattern.permute.xlu0 0
        %2918 = vperm.xlu0 %2917, %v2836
        %v2919 = vpop.permute.xlu0 %2918
        %2922 = vset.pattern.permute.xlu0 0
        %2923 = vperm.xlu0 %2922, %v2837
        %v2924 = vpop.permute.xlu0 %2923
        %2927 = vset.pattern.permute.xlu0 0
        %2928 = vperm.xlu0 %2927, %v2838
        %v2929 = vpop.permute.xlu0 %2928
        %2932 = vset.pattern.permute.xlu0 0
        %2933 = vperm.xlu0 %2932, %v2839
        %v2934 = vpop.permute.xlu0 %2933
        %2937 = vset.pattern.permute.xlu0 0
        %2938 = vperm.xlu0 %2937, %v2840
        %v2939 = vpop.permute.xlu0 %2938
        %2942 = vset.pattern.permute.xlu0 0
        %2943 = vperm.xlu0 %2942, %v2841
        %v2944 = vpop.permute.xlu0 %2943
        %2947 = vset.pattern.permute.xlu0 0
        %2948 = vperm.xlu0 %2947, %v2842
        %v2949 = vpop.permute.xlu0 %2948
        %2952 = vset.pattern.permute.xlu0 0
        %2953 = vperm.xlu0 %2952, %v2843
        %v2954 = vpop.permute.xlu0 %2953
        %2957 = vset.pattern.permute.xlu0 0
        %2958 = vperm.xlu0 %2957, %v2844
        %v2959 = vpop.permute.xlu0 %2958
        %2962 = vset.pattern.permute.xlu0 0
        %2963 = vperm.xlu0 %2962, %v2845
        %v2964 = vpop.permute.xlu0 %2963
        %2967 = vset.pattern.permute.xlu0 0
        %2968 = vperm.xlu0 %2967, %v2846
        %v2969 = vpop.permute.xlu0 %2968
        %2972 = vset.pattern.permute.xlu0 0
        %2973 = vperm.xlu0 %2972, %v2847
        %v2974 = vpop.permute.xlu0 %2973
        %2977 = vset.pattern.permute.xlu0 0
        %2978 = vperm.xlu0 %2977, %v2848
        %v2979 = vpop.permute.xlu0 %2978
        %2982 = vset.pattern.permute.xlu0 0
        %2983 = vperm.xlu0 %2982, %v2849
        %v2984 = vpop.permute.xlu0 %2983
        %2987 = vset.pattern.permute.xlu0 0
        %2988 = vperm.xlu0 %2987, %v2850
        %v2989 = vpop.permute.xlu0 %2988
        %2992 = vset.pattern.permute.xlu0 0
        %2993 = vperm.xlu0 %2992, %v2851
        %v2994 = vpop.permute.xlu0 %2993
        %2997 = vset.pattern.permute.xlu0 0
        %2998 = vperm.xlu0 %2997, %v2852
        %v2999 = vpop.permute.xlu0 %2998
        %3002 = vset.pattern.permute.xlu0 0
        %3003 = vperm.xlu0 %3002, %v2853
        %v3004 = vpop.permute.xlu0 %3003
        %3007 = vset.pattern.permute.xlu0 0
        %3008 = vperm.xlu0 %3007, %v2854
        %v3009 = vpop.permute.xlu0 %3008
        %3012 = vset.pattern.permute.xlu0 0
        %3013 = vperm.xlu0 %3012, %v2855
        %v3014 = vpop.permute.xlu0 %3013
        %3017 = vset.pattern.permute.xlu0 0
        %3018 = vperm.xlu0 %3017, %v2856
        %v3019 = vpop.permute.xlu0 %3018
        %3022 = vset.pattern.permute.xlu0 0
        %3023 = vperm.xlu0 %3022, %v2857
        %v3024 = vpop.permute.xlu0 %3023
        %3027 = vset.pattern.permute.xlu0 0
        %3028 = vperm.xlu0 %3027, %v2858
        %v3029 = vpop.permute.xlu0 %3028
        %3032 = vset.pattern.permute.xlu0 0
        %3033 = vperm.xlu0 %3032, %v2859
        %v3034 = vpop.permute.xlu0 %3033
        %3037 = vset.pattern.permute.xlu0 0
        %3038 = vperm.xlu0 %3037, %v2860
        %v3039 = vpop.permute.xlu0 %3038
        %3042 = vset.pattern.permute.xlu0 0
        %3043 = vperm.xlu0 %3042, %v2861
        %v3044 = vpop.permute.xlu0 %3043
        %3047 = vset.pattern.permute.xlu0 0
        %3048 = vperm.xlu0 %3047, %v2862
        %v3049 = vpop.permute.xlu0 %3048
        %3052 = vset.pattern.permute.xlu0 0
        %3053 = vperm.xlu0 %3052, %v2863
        %v3054 = vpop.permute.xlu0 %3053
        %3057 = vset.pattern.permute.xlu0 0
        %3058 = vperm.xlu0 %3057, %v2864
        %v3059 = vpop.permute.xlu0 %3058
        %3062 = vset.pattern.permute.xlu0 0
        %3063 = vperm.xlu0 %3062, %v2865
        %v3064 = vpop.permute.xlu0 %3063
        %3067 = vset.pattern.permute.xlu0 0
        %3068 = vperm.xlu0 %3067, %v2866
        %v3069 = vpop.permute.xlu0 %3068
        %3072 = vset.pattern.permute.xlu0 0
        %3073 = vperm.xlu0 %3072, %v2867
        %v3074 = vpop.permute.xlu0 %3073
        %3077 = vset.pattern.permute.xlu0 0
        %3078 = vperm.xlu0 %3077, %v2868
        %v3079 = vpop.permute.xlu0 %3078
        %3082 = vset.pattern.permute.xlu0 0
        %3083 = vperm.xlu0 %3082, %v2869
        %v3084 = vpop.permute.xlu0 %3083
        %3087 = vset.pattern.permute.xlu0 0
        %3088 = vperm.xlu0 %3087, %v2870
        %v3089 = vpop.permute.xlu0 %3088
        %3092 = vset.pattern.permute.xlu0 0
        %3093 = vperm.xlu0 %3092, %v2871
        %v3094 = vpop.permute.xlu0 %3093
        %3097 = vset.pattern.permute.xlu0 0
        %3098 = vperm.xlu0 %3097, %v2872
        %v3099 = vpop.permute.xlu0 %3098
        %3102 = vset.pattern.permute.xlu0 0
        %3103 = vperm.xlu0 %3102, %v2873
        %v3104 = vpop.permute.xlu0 %3103
        %3107 = vset.pattern.permute.xlu0 0
        %3108 = vperm.xlu0 %3107, %v2874
        %v3109 = vpop.permute.xlu0 %3108
        %3112 = vset.pattern.permute.xlu0 0
        %3113 = vperm.xlu0 %3112, %v2875
        %v3114 = vpop.permute.xlu0 %3113
        %3117 = vset.pattern.permute.xlu0 0
        %3118 = vperm.xlu0 %3117, %v2876
        %v3119 = vpop.permute.xlu0 %3118
        %3122 = vset.pattern.permute.xlu0 0
        %3123 = vperm.xlu0 %3122, %v2877
        %v3124 = vpop.permute.xlu0 %3123
        %3127 = vset.pattern.permute.xlu0 0
        %3128 = vperm.xlu0 %3127, %v2878
        %v3129 = vpop.permute.xlu0 %3128
        %3132 = vset.pattern.permute.xlu0 0
        %3133 = vperm.xlu0 %3132, %v2879
        %v3134 = vpop.permute.xlu0 %3133
        %3137 = vset.pattern.permute.xlu0 0
        %3138 = vperm.xlu0 %3137, %v2880
        %v3139 = vpop.permute.xlu0 %3138
        %3142 = vset.pattern.permute.xlu0 0
        %3143 = vperm.xlu0 %3142, %v2881
        %v3144 = vpop.permute.xlu0 %3143
        %3147 = vset.pattern.permute.xlu0 0
        %3148 = vperm.xlu0 %3147, %v2882
        %v3149 = vpop.permute.xlu0 %3148
        %3152 = vset.pattern.permute.xlu0 0
        %3153 = vperm.xlu0 %3152, %v2883
        %v3154 = vpop.permute.xlu0 %3153
        %3157 = vset.pattern.permute.xlu0 0
        %3158 = vperm.xlu0 %3157, %v2884
        %v3159 = vpop.permute.xlu0 %3158
        %3162 = vset.pattern.permute.xlu0 0
        %3163 = vperm.xlu0 %3162, %v2885
        %v3164 = vpop.permute.xlu0 %3163
        %3167 = vset.pattern.permute.xlu0 0
        %3168 = vperm.xlu0 %3167, %v2886
        %v3169 = vpop.permute.xlu0 %3168
        %3172 = vset.pattern.permute.xlu0 0
        %3173 = vperm.xlu0 %3172, %v2887
        %v3174 = vpop.permute.xlu0 %3173
        %3177 = vset.pattern.permute.xlu0 0
        %3178 = vperm.xlu0 %3177, %v2888
        %v3179 = vpop.permute.xlu0 %3178
        %3182 = vset.pattern.permute.xlu0 0
        %3183 = vperm.xlu0 %3182, %v2889
        %v3184 = vpop.permute.xlu0 %3183
        %3187 = vset.pattern.permute.xlu0 0
        %3188 = vperm.xlu0 %3187, %v2890
        %v3189 = vpop.permute.xlu0 %3188
        %3192 = vset.pattern.permute.xlu0 0
        %3193 = vperm.xlu0 %3192, %v2891
        %v3194 = vpop.permute.xlu0 %3193
        %3197 = vset.pattern.permute.xlu0 0
        %3198 = vperm.xlu0 %3197, %v2892
        %v3199 = vpop.permute.xlu0 %3198
        %3202 = vset.pattern.permute.xlu0 0
        %3203 = vperm.xlu0 %3202, %v2893
        %v3204 = vpop.permute.xlu0 %3203
        %3207 = vset.pattern.permute.xlu0 0
        %3208 = vperm.xlu0 %3207, %v2894
        %v3209 = vpop.permute.xlu0 %3208
        %3212 = vset.pattern.permute.xlu0 0
        %3213 = vperm.xlu0 %3212, %v2895
        %v3214 = vpop.permute.xlu0 %3213
        %v3216 = vmul.f32 %v715, %v2899
        %v3217 = vmul.f32 %v716, %v2904
        %v3218 = vmul.f32 %v717, %v2909
        %v3219 = vmul.f32 %v718, %v2914
        %v3220 = vmul.f32 %v719, %v2919
        %v3221 = vmul.f32 %v720, %v2924
        %v3222 = vmul.f32 %v721, %v2929
        %v3223 = vmul.f32 %v722, %v2934
        %v3224 = vmul.f32 %v723, %v2939
        %v3225 = vmul.f32 %v724, %v2944
        %v3226 = vmul.f32 %v725, %v2949
        %v3227 = vmul.f32 %v726, %v2954
        %v3228 = vmul.f32 %v727, %v2959
        %v3229 = vmul.f32 %v728, %v2964
        %v3230 = vmul.f32 %v729, %v2969
        %v3231 = vmul.f32 %v730, %v2974
        %v3232 = vmul.f32 %v731, %v2979
        %v3233 = vmul.f32 %v732, %v2984
        %v3234 = vmul.f32 %v733, %v2989
        %v3235 = vmul.f32 %v734, %v2994
        %v3236 = vmul.f32 %v735, %v2999
        %v3237 = vmul.f32 %v736, %v3004
        %v3238 = vmul.f32 %v737, %v3009
        %v3239 = vmul.f32 %v738, %v3014
        %v3240 = vmul.f32 %v739, %v3019
        %v3241 = vmul.f32 %v740, %v3024
        %v3242 = vmul.f32 %v741, %v3029
        %v3243 = vmul.f32 %v742, %v3034
        %v3244 = vmul.f32 %v743, %v3039
        %v3245 = vmul.f32 %v744, %v3044
        %v3246 = vmul.f32 %v745, %v3049
        %v3247 = vmul.f32 %v746, %v3054
        %v3248 = vmul.f32 %v747, %v3059
        %v3249 = vmul.f32 %v748, %v3064
        %v3250 = vmul.f32 %v749, %v3069
        %v3251 = vmul.f32 %v750, %v3074
        %v3252 = vmul.f32 %v751, %v3079
        %v3253 = vmul.f32 %v752, %v3084
        %v3254 = vmul.f32 %v753, %v3089
        %v3255 = vmul.f32 %v754, %v3094
        %v3256 = vmul.f32 %v755, %v3099
        %v3257 = vmul.f32 %v756, %v3104
        %v3258 = vmul.f32 %v757, %v3109
        %v3259 = vmul.f32 %v758, %v3114
        %v3260 = vmul.f32 %v759, %v3119
        %v3261 = vmul.f32 %v760, %v3124
        %v3262 = vmul.f32 %v761, %v3129
        %v3263 = vmul.f32 %v762, %v3134
        %v3264 = vmul.f32 %v763, %v3139
        %v3265 = vmul.f32 %v764, %v3144
        %v3266 = vmul.f32 %v765, %v3149
        %v3267 = vmul.f32 %v766, %v3154
        %v3268 = vmul.f32 %v767, %v3159
        %v3269 = vmul.f32 %v768, %v3164
        %v3270 = vmul.f32 %v769, %v3169
        %v3271 = vmul.f32 %v770, %v3174
        %v3272 = vmul.f32 %v771, %v3179
        %v3273 = vmul.f32 %v772, %v3184
        %v3274 = vmul.f32 %v773, %v3189
        %v3275 = vmul.f32 %v774, %v3194
        %v3276 = vmul.f32 %v775, %v3199
        %v3277 = vmul.f32 %v776, %v3204
        %v3278 = vmul.f32 %v777, %v3209
        %v3279 = vmul.f32 %v778, %v3214
        %s3280 = scalar_lea.vmem %s0, 2560
        %v3281 = vld [vmem:[%s3280] sm:$0xff]
        %v3282 = vld [vmem:[%s3280 + $0x8] sm:$0xff]
        %v3283 = vld [vmem:[%s3280 + $0x10] sm:$0xff]
        %v3284 = vld [vmem:[%s3280 + $0x18] sm:$0xff]
        %v3285 = vld [vmem:[%s3280 + $0x20] sm:$0xff]
        %v3286 = vld [vmem:[%s3280 + $0x28] sm:$0xff]
        %v3287 = vld [vmem:[%s3280 + $0x30] sm:$0xff]
        %v3288 = vld [vmem:[%s3280 + $0x38] sm:$0xff]
        %v3289 = vld [vmem:[%s3280 + $0x40] sm:$0xff]
        %v3290 = vld [vmem:[%s3280 + $0x48] sm:$0xff]
        %v3291 = vld [vmem:[%s3280 + $0x50] sm:$0xff]
        %v3292 = vld [vmem:[%s3280 + $0x58] sm:$0xff]
        %v3293 = vld [vmem:[%s3280 + $0x60] sm:$0xff]
        %v3294 = vld [vmem:[%s3280 + $0x68] sm:$0xff]
        %v3295 = vld [vmem:[%s3280 + $0x70] sm:$0xff]
        %v3296 = vld [vmem:[%s3280 + $0x78] sm:$0xff]
        %v3297 = vld [vmem:[%s3280 + $0x80] sm:$0xff]
        %v3298 = vld [vmem:[%s3280 + $0x88] sm:$0xff]
        %v3299 = vld [vmem:[%s3280 + $0x90] sm:$0xff]
        %v3300 = vld [vmem:[%s3280 + $0x98] sm:$0xff]
        %v3301 = vld [vmem:[%s3280 + $0xa0] sm:$0xff]
        %v3302 = vld [vmem:[%s3280 + $0xa8] sm:$0xff]
        %v3303 = vld [vmem:[%s3280 + $0xb0] sm:$0xff]
        %v3304 = vld [vmem:[%s3280 + $0xb8] sm:$0xff]
        %v3305 = vld [vmem:[%s3280 + $0xc0] sm:$0xff]
        %v3306 = vld [vmem:[%s3280 + $0xc8] sm:$0xff]
        %v3307 = vld [vmem:[%s3280 + $0xd0] sm:$0xff]
        %v3308 = vld [vmem:[%s3280 + $0xd8] sm:$0xff]
        %v3309 = vld [vmem:[%s3280 + $0xe0] sm:$0xff]
        %v3310 = vld [vmem:[%s3280 + $0xe8] sm:$0xff]
        %v3311 = vld [vmem:[%s3280 + $0xf0] sm:$0xff]
        %v3312 = vld [vmem:[%s3280 + $0xf8] sm:$0xff]
        %v3313 = vld [vmem:[%s3280 + $0x100] sm:$0xff]
        %v3314 = vld [vmem:[%s3280 + $0x108] sm:$0xff]
        %v3315 = vld [vmem:[%s3280 + $0x110] sm:$0xff]
        %v3316 = vld [vmem:[%s3280 + $0x118] sm:$0xff]
        %v3317 = vld [vmem:[%s3280 + $0x120] sm:$0xff]
        %v3318 = vld [vmem:[%s3280 + $0x128] sm:$0xff]
        %v3319 = vld [vmem:[%s3280 + $0x130] sm:$0xff]
        %v3320 = vld [vmem:[%s3280 + $0x138] sm:$0xff]
        %v3321 = vld [vmem:[%s3280 + $0x140] sm:$0xff]
        %v3322 = vld [vmem:[%s3280 + $0x148] sm:$0xff]
        %v3323 = vld [vmem:[%s3280 + $0x150] sm:$0xff]
        %v3324 = vld [vmem:[%s3280 + $0x158] sm:$0xff]
        %v3325 = vld [vmem:[%s3280 + $0x160] sm:$0xff]
        %v3326 = vld [vmem:[%s3280 + $0x168] sm:$0xff]
        %v3327 = vld [vmem:[%s3280 + $0x170] sm:$0xff]
        %v3328 = vld [vmem:[%s3280 + $0x178] sm:$0xff]
        %v3329 = vld [vmem:[%s3280 + $0x180] sm:$0xff]
        %v3330 = vld [vmem:[%s3280 + $0x188] sm:$0xff]
        %v3331 = vld [vmem:[%s3280 + $0x190] sm:$0xff]
        %v3332 = vld [vmem:[%s3280 + $0x198] sm:$0xff]
        %v3333 = vld [vmem:[%s3280 + $0x1a0] sm:$0xff]
        %v3334 = vld [vmem:[%s3280 + $0x1a8] sm:$0xff]
        %v3335 = vld [vmem:[%s3280 + $0x1b0] sm:$0xff]
        %v3336 = vld [vmem:[%s3280 + $0x1b8] sm:$0xff]
        %v3337 = vld [vmem:[%s3280 + $0x1c0] sm:$0xff]
        %v3338 = vld [vmem:[%s3280 + $0x1c8] sm:$0xff]
        %v3339 = vld [vmem:[%s3280 + $0x1d0] sm:$0xff]
        %v3340 = vld [vmem:[%s3280 + $0x1d8] sm:$0xff]
        %v3341 = vld [vmem:[%s3280 + $0x1e0] sm:$0xff]
        %v3342 = vld [vmem:[%s3280 + $0x1e8] sm:$0xff]
        %v3343 = vld [vmem:[%s3280 + $0x1f0] sm:$0xff]
        %v3344 = vld [vmem:[%s3280 + $0x1f8] sm:$0xff]
        %3346 = vset.pattern.permute.xlu0 0
        %3347 = vperm.xlu0 %3346, %v3281
        %v3348 = vpop.permute.xlu0 %3347
        %3351 = vset.pattern.permute.xlu0 0
        %3352 = vperm.xlu0 %3351, %v3282
        %v3353 = vpop.permute.xlu0 %3352
        %3356 = vset.pattern.permute.xlu0 0
        %3357 = vperm.xlu0 %3356, %v3283
        %v3358 = vpop.permute.xlu0 %3357
        %3361 = vset.pattern.permute.xlu0 0
        %3362 = vperm.xlu0 %3361, %v3284
        %v3363 = vpop.permute.xlu0 %3362
        %3366 = vset.pattern.permute.xlu0 0
        %3367 = vperm.xlu0 %3366, %v3285
        %v3368 = vpop.permute.xlu0 %3367
        %3371 = vset.pattern.permute.xlu0 0
        %3372 = vperm.xlu0 %3371, %v3286
        %v3373 = vpop.permute.xlu0 %3372
        %3376 = vset.pattern.permute.xlu0 0
        %3377 = vperm.xlu0 %3376, %v3287
        %v3378 = vpop.permute.xlu0 %3377
        %3381 = vset.pattern.permute.xlu0 0
        %3382 = vperm.xlu0 %3381, %v3288
        %v3383 = vpop.permute.xlu0 %3382
        %3386 = vset.pattern.permute.xlu0 0
        %3387 = vperm.xlu0 %3386, %v3289
        %v3388 = vpop.permute.xlu0 %3387
        %3391 = vset.pattern.permute.xlu0 0
        %3392 = vperm.xlu0 %3391, %v3290
        %v3393 = vpop.permute.xlu0 %3392
        %3396 = vset.pattern.permute.xlu0 0
        %3397 = vperm.xlu0 %3396, %v3291
        %v3398 = vpop.permute.xlu0 %3397
        %3401 = vset.pattern.permute.xlu0 0
        %3402 = vperm.xlu0 %3401, %v3292
        %v3403 = vpop.permute.xlu0 %3402
        %3406 = vset.pattern.permute.xlu0 0
        %3407 = vperm.xlu0 %3406, %v3293
        %v3408 = vpop.permute.xlu0 %3407
        %3411 = vset.pattern.permute.xlu0 0
        %3412 = vperm.xlu0 %3411, %v3294
        %v3413 = vpop.permute.xlu0 %3412
        %3416 = vset.pattern.permute.xlu0 0
        %3417 = vperm.xlu0 %3416, %v3295
        %v3418 = vpop.permute.xlu0 %3417
        %3421 = vset.pattern.permute.xlu0 0
        %3422 = vperm.xlu0 %3421, %v3296
        %v3423 = vpop.permute.xlu0 %3422
        %3426 = vset.pattern.permute.xlu0 0
        %3427 = vperm.xlu0 %3426, %v3297
        %v3428 = vpop.permute.xlu0 %3427
        %3431 = vset.pattern.permute.xlu0 0
        %3432 = vperm.xlu0 %3431, %v3298
        %v3433 = vpop.permute.xlu0 %3432
        %3436 = vset.pattern.permute.xlu0 0
        %3437 = vperm.xlu0 %3436, %v3299
        %v3438 = vpop.permute.xlu0 %3437
        %3441 = vset.pattern.permute.xlu0 0
        %3442 = vperm.xlu0 %3441, %v3300
        %v3443 = vpop.permute.xlu0 %3442
        %3446 = vset.pattern.permute.xlu0 0
        %3447 = vperm.xlu0 %3446, %v3301
        %v3448 = vpop.permute.xlu0 %3447
        %3451 = vset.pattern.permute.xlu0 0
        %3452 = vperm.xlu0 %3451, %v3302
        %v3453 = vpop.permute.xlu0 %3452
        %3456 = vset.pattern.permute.xlu0 0
        %3457 = vperm.xlu0 %3456, %v3303
        %v3458 = vpop.permute.xlu0 %3457
        %3461 = vset.pattern.permute.xlu0 0
        %3462 = vperm.xlu0 %3461, %v3304
        %v3463 = vpop.permute.xlu0 %3462
        %3466 = vset.pattern.permute.xlu0 0
        %3467 = vperm.xlu0 %3466, %v3305
        %v3468 = vpop.permute.xlu0 %3467
        %3471 = vset.pattern.permute.xlu0 0
        %3472 = vperm.xlu0 %3471, %v3306
        %v3473 = vpop.permute.xlu0 %3472
        %3476 = vset.pattern.permute.xlu0 0
        %3477 = vperm.xlu0 %3476, %v3307
        %v3478 = vpop.permute.xlu0 %3477
        %3481 = vset.pattern.permute.xlu0 0
        %3482 = vperm.xlu0 %3481, %v3308
        %v3483 = vpop.permute.xlu0 %3482
        %3486 = vset.pattern.permute.xlu0 0
        %3487 = vperm.xlu0 %3486, %v3309
        %v3488 = vpop.permute.xlu0 %3487
        %3491 = vset.pattern.permute.xlu0 0
        %3492 = vperm.xlu0 %3491, %v3310
        %v3493 = vpop.permute.xlu0 %3492
        %3496 = vset.pattern.permute.xlu0 0
        %3497 = vperm.xlu0 %3496, %v3311
        %v3498 = vpop.permute.xlu0 %3497
        %3501 = vset.pattern.permute.xlu0 0
        %3502 = vperm.xlu0 %3501, %v3312
        %v3503 = vpop.permute.xlu0 %3502
        %3506 = vset.pattern.permute.xlu0 0
        %3507 = vperm.xlu0 %3506, %v3313
        %v3508 = vpop.permute.xlu0 %3507
        %3511 = vset.pattern.permute.xlu0 0
        %3512 = vperm.xlu0 %3511, %v3314
        %v3513 = vpop.permute.xlu0 %3512
        %3516 = vset.pattern.permute.xlu0 0
        %3517 = vperm.xlu0 %3516, %v3315
        %v3518 = vpop.permute.xlu0 %3517
        %3521 = vset.pattern.permute.xlu0 0
        %3522 = vperm.xlu0 %3521, %v3316
        %v3523 = vpop.permute.xlu0 %3522
        %3526 = vset.pattern.permute.xlu0 0
        %3527 = vperm.xlu0 %3526, %v3317
        %v3528 = vpop.permute.xlu0 %3527
        %3531 = vset.pattern.permute.xlu0 0
        %3532 = vperm.xlu0 %3531, %v3318
        %v3533 = vpop.permute.xlu0 %3532
        %3536 = vset.pattern.permute.xlu0 0
        %3537 = vperm.xlu0 %3536, %v3319
        %v3538 = vpop.permute.xlu0 %3537
        %3541 = vset.pattern.permute.xlu0 0
        %3542 = vperm.xlu0 %3541, %v3320
        %v3543 = vpop.permute.xlu0 %3542
        %3546 = vset.pattern.permute.xlu0 0
        %3547 = vperm.xlu0 %3546, %v3321
        %v3548 = vpop.permute.xlu0 %3547
        %3551 = vset.pattern.permute.xlu0 0
        %3552 = vperm.xlu0 %3551, %v3322
        %v3553 = vpop.permute.xlu0 %3552
        %3556 = vset.pattern.permute.xlu0 0
        %3557 = vperm.xlu0 %3556, %v3323
        %v3558 = vpop.permute.xlu0 %3557
        %3561 = vset.pattern.permute.xlu0 0
        %3562 = vperm.xlu0 %3561, %v3324
        %v3563 = vpop.permute.xlu0 %3562
        %3566 = vset.pattern.permute.xlu0 0
        %3567 = vperm.xlu0 %3566, %v3325
        %v3568 = vpop.permute.xlu0 %3567
        %3571 = vset.pattern.permute.xlu0 0
        %3572 = vperm.xlu0 %3571, %v3326
        %v3573 = vpop.permute.xlu0 %3572
        %3576 = vset.pattern.permute.xlu0 0
        %3577 = vperm.xlu0 %3576, %v3327
        %v3578 = vpop.permute.xlu0 %3577
        %3581 = vset.pattern.permute.xlu0 0
        %3582 = vperm.xlu0 %3581, %v3328
        %v3583 = vpop.permute.xlu0 %3582
        %3586 = vset.pattern.permute.xlu0 0
        %3587 = vperm.xlu0 %3586, %v3329
        %v3588 = vpop.permute.xlu0 %3587
        %3591 = vset.pattern.permute.xlu0 0
        %3592 = vperm.xlu0 %3591, %v3330
        %v3593 = vpop.permute.xlu0 %3592
        %3596 = vset.pattern.permute.xlu0 0
        %3597 = vperm.xlu0 %3596, %v3331
        %v3598 = vpop.permute.xlu0 %3597
        %3601 = vset.pattern.permute.xlu0 0
        %3602 = vperm.xlu0 %3601, %v3332
        %v3603 = vpop.permute.xlu0 %3602
        %3606 = vset.pattern.permute.xlu0 0
        %3607 = vperm.xlu0 %3606, %v3333
        %v3608 = vpop.permute.xlu0 %3607
        %3611 = vset.pattern.permute.xlu0 0
        %3612 = vperm.xlu0 %3611, %v3334
        %v3613 = vpop.permute.xlu0 %3612
        %3616 = vset.pattern.permute.xlu0 0
        %3617 = vperm.xlu0 %3616, %v3335
        %v3618 = vpop.permute.xlu0 %3617
        %3621 = vset.pattern.permute.xlu0 0
        %3622 = vperm.xlu0 %3621, %v3336
        %v3623 = vpop.permute.xlu0 %3622
        %3626 = vset.pattern.permute.xlu0 0
        %3627 = vperm.xlu0 %3626, %v3337
        %v3628 = vpop.permute.xlu0 %3627
        %3631 = vset.pattern.permute.xlu0 0
        %3632 = vperm.xlu0 %3631, %v3338
        %v3633 = vpop.permute.xlu0 %3632
        %3636 = vset.pattern.permute.xlu0 0
        %3637 = vperm.xlu0 %3636, %v3339
        %v3638 = vpop.permute.xlu0 %3637
        %3641 = vset.pattern.permute.xlu0 0
        %3642 = vperm.xlu0 %3641, %v3340
        %v3643 = vpop.permute.xlu0 %3642
        %3646 = vset.pattern.permute.xlu0 0
        %3647 = vperm.xlu0 %3646, %v3341
        %v3648 = vpop.permute.xlu0 %3647
        %3651 = vset.pattern.permute.xlu0 0
        %3652 = vperm.xlu0 %3651, %v3342
        %v3653 = vpop.permute.xlu0 %3652
        %3656 = vset.pattern.permute.xlu0 0
        %3657 = vperm.xlu0 %3656, %v3343
        %v3658 = vpop.permute.xlu0 %3657
        %3661 = vset.pattern.permute.xlu0 0
        %3662 = vperm.xlu0 %3661, %v3344
        %v3663 = vpop.permute.xlu0 %3662
        %v3665 = vmul.f32 %v780, %v3348
        %v3666 = vmul.f32 %v781, %v3353
        %v3667 = vmul.f32 %v782, %v3358
        %v3668 = vmul.f32 %v783, %v3363
        %v3669 = vmul.f32 %v784, %v3368
        %v3670 = vmul.f32 %v785, %v3373
        %v3671 = vmul.f32 %v786, %v3378
        %v3672 = vmul.f32 %v787, %v3383
        %v3673 = vmul.f32 %v788, %v3388
        %v3674 = vmul.f32 %v789, %v3393
        %v3675 = vmul.f32 %v790, %v3398
        %v3676 = vmul.f32 %v791, %v3403
        %v3677 = vmul.f32 %v792, %v3408
        %v3678 = vmul.f32 %v793, %v3413
        %v3679 = vmul.f32 %v794, %v3418
        %v3680 = vmul.f32 %v795, %v3423
        %v3681 = vmul.f32 %v796, %v3428
        %v3682 = vmul.f32 %v797, %v3433
        %v3683 = vmul.f32 %v798, %v3438
        %v3684 = vmul.f32 %v799, %v3443
        %v3685 = vmul.f32 %v800, %v3448
        %v3686 = vmul.f32 %v801, %v3453
        %v3687 = vmul.f32 %v802, %v3458
        %v3688 = vmul.f32 %v803, %v3463
        %v3689 = vmul.f32 %v804, %v3468
        %v3690 = vmul.f32 %v805, %v3473
        %v3691 = vmul.f32 %v806, %v3478
        %v3692 = vmul.f32 %v807, %v3483
        %v3693 = vmul.f32 %v808, %v3488
        %v3694 = vmul.f32 %v809, %v3493
        %v3695 = vmul.f32 %v810, %v3498
        %v3696 = vmul.f32 %v811, %v3503
        %v3697 = vmul.f32 %v812, %v3508
        %v3698 = vmul.f32 %v813, %v3513
        %v3699 = vmul.f32 %v814, %v3518
        %v3700 = vmul.f32 %v815, %v3523
        %v3701 = vmul.f32 %v816, %v3528
        %v3702 = vmul.f32 %v817, %v3533
        %v3703 = vmul.f32 %v818, %v3538
        %v3704 = vmul.f32 %v819, %v3543
        %v3705 = vmul.f32 %v820, %v3548
        %v3706 = vmul.f32 %v821, %v3553
        %v3707 = vmul.f32 %v822, %v3558
        %v3708 = vmul.f32 %v823, %v3563
        %v3709 = vmul.f32 %v824, %v3568
        %v3710 = vmul.f32 %v825, %v3573
        %v3711 = vmul.f32 %v826, %v3578
        %v3712 = vmul.f32 %v827, %v3583
        %v3713 = vmul.f32 %v828, %v3588
        %v3714 = vmul.f32 %v829, %v3593
        %v3715 = vmul.f32 %v830, %v3598
        %v3716 = vmul.f32 %v831, %v3603
        %v3717 = vmul.f32 %v832, %v3608
        %v3718 = vmul.f32 %v833, %v3613
        %v3719 = vmul.f32 %v834, %v3618
        %v3720 = vmul.f32 %v835, %v3623
        %v3721 = vmul.f32 %v836, %v3628
        %v3722 = vmul.f32 %v837, %v3633
        %v3723 = vmul.f32 %v838, %v3638
        %v3724 = vmul.f32 %v839, %v3643
        %v3725 = vmul.f32 %v840, %v3648
        %v3726 = vmul.f32 %v841, %v3653
        %v3727 = vmul.f32 %v842, %v3658
        %v3728 = vmul.f32 %v843, %v3663
        %v3729 = vadd.f32 %v3216, %v3665
        %v3730 = vadd.f32 %v3217, %v3666
        %v3731 = vadd.f32 %v3218, %v3667
        %v3732 = vadd.f32 %v3219, %v3668
        %v3733 = vadd.f32 %v3220, %v3669
        %v3734 = vadd.f32 %v3221, %v3670
        %v3735 = vadd.f32 %v3222, %v3671
        %v3736 = vadd.f32 %v3223, %v3672
        %v3737 = vadd.f32 %v3224, %v3673
        %v3738 = vadd.f32 %v3225, %v3674
        %v3739 = vadd.f32 %v3226, %v3675
        %v3740 = vadd.f32 %v3227, %v3676
        %v3741 = vadd.f32 %v3228, %v3677
        %v3742 = vadd.f32 %v3229, %v3678
        %v3743 = vadd.f32 %v3230, %v3679
        %v3744 = vadd.f32 %v3231, %v3680
        %v3745 = vadd.f32 %v3232, %v3681
        %v3746 = vadd.f32 %v3233, %v3682
        %v3747 = vadd.f32 %v3234, %v3683
        %v3748 = vadd.f32 %v3235, %v3684
        %v3749 = vadd.f32 %v3236, %v3685
        %v3750 = vadd.f32 %v3237, %v3686
        %v3751 = vadd.f32 %v3238, %v3687
        %v3752 = vadd.f32 %v3239, %v3688
        %v3753 = vadd.f32 %v3240, %v3689
        %v3754 = vadd.f32 %v3241, %v3690
        %v3755 = vadd.f32 %v3242, %v3691
        %v3756 = vadd.f32 %v3243, %v3692
        %v3757 = vadd.f32 %v3244, %v3693
        %v3758 = vadd.f32 %v3245, %v3694
        %v3759 = vadd.f32 %v3246, %v3695
        %v3760 = vadd.f32 %v3247, %v3696
        %v3761 = vadd.f32 %v3248, %v3697
        %v3762 = vadd.f32 %v3249, %v3698
        %v3763 = vadd.f32 %v3250, %v3699
        %v3764 = vadd.f32 %v3251, %v3700
        %v3765 = vadd.f32 %v3252, %v3701
        %v3766 = vadd.f32 %v3253, %v3702
        %v3767 = vadd.f32 %v3254, %v3703
        %v3768 = vadd.f32 %v3255, %v3704
        %v3769 = vadd.f32 %v3256, %v3705
        %v3770 = vadd.f32 %v3257, %v3706
        %v3771 = vadd.f32 %v3258, %v3707
        %v3772 = vadd.f32 %v3259, %v3708
        %v3773 = vadd.f32 %v3260, %v3709
        %v3774 = vadd.f32 %v3261, %v3710
        %v3775 = vadd.f32 %v3262, %v3711
        %v3776 = vadd.f32 %v3263, %v3712
        %v3777 = vadd.f32 %v3264, %v3713
        %v3778 = vadd.f32 %v3265, %v3714
        %v3779 = vadd.f32 %v3266, %v3715
        %v3780 = vadd.f32 %v3267, %v3716
        %v3781 = vadd.f32 %v3268, %v3717
        %v3782 = vadd.f32 %v3269, %v3718
        %v3783 = vadd.f32 %v3270, %v3719
        %v3784 = vadd.f32 %v3271, %v3720
        %v3785 = vadd.f32 %v3272, %v3721
        %v3786 = vadd.f32 %v3273, %v3722
        %v3787 = vadd.f32 %v3274, %v3723
        %v3788 = vadd.f32 %v3275, %v3724
        %v3789 = vadd.f32 %v3276, %v3725
        %v3790 = vadd.f32 %v3277, %v3726
        %v3791 = vadd.f32 %v3278, %v3727
        %v3792 = vadd.f32 %v3279, %v3728
        %v3793 = vpack.c.bf16 %v3730, %v3729
        %v3794 = vpack.c.bf16 %v3732, %v3731
        %v3795 = vpack.c.bf16 %v3734, %v3733
        %v3796 = vpack.c.bf16 %v3736, %v3735
        %v3797 = vpack.c.bf16 %v3738, %v3737
        %v3798 = vpack.c.bf16 %v3740, %v3739
        %v3799 = vpack.c.bf16 %v3742, %v3741
        %v3800 = vpack.c.bf16 %v3744, %v3743
        %v3801 = vpack.c.bf16 %v3746, %v3745
        %v3802 = vpack.c.bf16 %v3748, %v3747
        %v3803 = vpack.c.bf16 %v3750, %v3749
        %v3804 = vpack.c.bf16 %v3752, %v3751
        %v3805 = vpack.c.bf16 %v3754, %v3753
        %v3806 = vpack.c.bf16 %v3756, %v3755
        %v3807 = vpack.c.bf16 %v3758, %v3757
        %v3808 = vpack.c.bf16 %v3760, %v3759
        %v3809 = vpack.c.bf16 %v3762, %v3761
        %v3810 = vpack.c.bf16 %v3764, %v3763
        %v3811 = vpack.c.bf16 %v3766, %v3765
        %v3812 = vpack.c.bf16 %v3768, %v3767
        %v3813 = vpack.c.bf16 %v3770, %v3769
        %v3814 = vpack.c.bf16 %v3772, %v3771
        %v3815 = vpack.c.bf16 %v3774, %v3773
        %v3816 = vpack.c.bf16 %v3776, %v3775
        %v3817 = vpack.c.bf16 %v3778, %v3777
        %v3818 = vpack.c.bf16 %v3780, %v3779
        %v3819 = vpack.c.bf16 %v3782, %v3781
        %v3820 = vpack.c.bf16 %v3784, %v3783
        %v3821 = vpack.c.bf16 %v3786, %v3785
        %v3822 = vpack.c.bf16 %v3788, %v3787
        %v3823 = vpack.c.bf16 %v3790, %v3789
        %v3824 = vpack.c.bf16 %v3792, %v3791
        %v3825 = vld [vmem:[%s2] sm:$0xf]
        %v3826 = vld [vmem:[%s2 + $0x4] sm:$0xf]
        %v3827 = vld [vmem:[%s2 + $0x8] sm:$0xf]
        %v3828 = vld [vmem:[%s2 + $0xc] sm:$0xf]
        %v3829 = vld [vmem:[%s2 + $0x10] sm:$0xf]
        %v3830 = vld [vmem:[%s2 + $0x14] sm:$0xf]
        %v3831 = vld [vmem:[%s2 + $0x18] sm:$0xf]
        %v3832 = vld [vmem:[%s2 + $0x1c] sm:$0xf]
        %v3833 = vld [vmem:[%s2 + $0x20] sm:$0xf]
        %v3834 = vld [vmem:[%s2 + $0x24] sm:$0xf]
        %v3835 = vld [vmem:[%s2 + $0x28] sm:$0xf]
        %v3836 = vld [vmem:[%s2 + $0x2c] sm:$0xf]
        %v3837 = vld [vmem:[%s2 + $0x30] sm:$0xf]
        %v3838 = vld [vmem:[%s2 + $0x34] sm:$0xf]
        %v3839 = vld [vmem:[%s2 + $0x38] sm:$0xf]
        %v3840 = vld [vmem:[%s2 + $0x3c] sm:$0xf]
        %v3841 = vld [vmem:[%s2 + $0x40] sm:$0xf]
        %v3842 = vld [vmem:[%s2 + $0x44] sm:$0xf]
        %v3843 = vld [vmem:[%s2 + $0x48] sm:$0xf]
        %v3844 = vld [vmem:[%s2 + $0x4c] sm:$0xf]
        %v3845 = vld [vmem:[%s2 + $0x50] sm:$0xf]
        %v3846 = vld [vmem:[%s2 + $0x54] sm:$0xf]
        %v3847 = vld [vmem:[%s2 + $0x58] sm:$0xf]
        %v3848 = vld [vmem:[%s2 + $0x5c] sm:$0xf]
        %v3849 = vld [vmem:[%s2 + $0x60] sm:$0xf]
        %v3850 = vld [vmem:[%s2 + $0x64] sm:$0xf]
        %v3851 = vld [vmem:[%s2 + $0x68] sm:$0xf]
        %v3852 = vld [vmem:[%s2 + $0x6c] sm:$0xf]
        %v3853 = vld [vmem:[%s2 + $0x70] sm:$0xf]
        %v3854 = vld [vmem:[%s2 + $0x74] sm:$0xf]
        %v3855 = vld [vmem:[%s2 + $0x78] sm:$0xf]
        %v3856 = vld [vmem:[%s2 + $0x7c] sm:$0xf]
        %v3857 = vld [vmem:[%s2 + $0x80] sm:$0xf]
        %v3858 = vld [vmem:[%s2 + $0x84] sm:$0xf]
        %v3859 = vld [vmem:[%s2 + $0x88] sm:$0xf]
        %v3860 = vld [vmem:[%s2 + $0x8c] sm:$0xf]
        %v3861 = vld [vmem:[%s2 + $0x90] sm:$0xf]
        %v3862 = vld [vmem:[%s2 + $0x94] sm:$0xf]
        %v3863 = vld [vmem:[%s2 + $0x98] sm:$0xf]
        %v3864 = vld [vmem:[%s2 + $0x9c] sm:$0xf]
        %v3865 = vld [vmem:[%s2 + $0xa0] sm:$0xf]
        %v3866 = vld [vmem:[%s2 + $0xa4] sm:$0xf]
        %v3867 = vld [vmem:[%s2 + $0xa8] sm:$0xf]
        %v3868 = vld [vmem:[%s2 + $0xac] sm:$0xf]
        %v3869 = vld [vmem:[%s2 + $0xb0] sm:$0xf]
        %v3870 = vld [vmem:[%s2 + $0xb4] sm:$0xf]
        %v3871 = vld [vmem:[%s2 + $0xb8] sm:$0xf]
        %v3872 = vld [vmem:[%s2 + $0xbc] sm:$0xf]
        %v3921 = vunpack.c.l.b16 %v3825
        %v3922 = vunpack.c.l.b16 %v3826
        %v3923 = vunpack.c.l.b16 %v3827
        %v3924 = vunpack.c.l.b16 %v3828
        %v3925 = vunpack.c.l.b16 %v3829
        %v3926 = vunpack.c.l.b16 %v3830
        %v3927 = vunpack.c.l.b16 %v3831
        %v3928 = vunpack.c.l.b16 %v3832
        %v3929 = vunpack.c.l.b16 %v3833
        %v3930 = vunpack.c.l.b16 %v3834
        %v3931 = vunpack.c.l.b16 %v3835
        %v3932 = vunpack.c.l.b16 %v3836
        %v3933 = vunpack.c.l.b16 %v3837
        %v3934 = vunpack.c.l.b16 %v3838
        %v3935 = vunpack.c.l.b16 %v3839
        %v3936 = vunpack.c.l.b16 %v3840
        %v3937 = vunpack.c.l.b16 %v3841
        %v3938 = vunpack.c.l.b16 %v3842
        %v3939 = vunpack.c.l.b16 %v3843
        %v3940 = vunpack.c.l.b16 %v3844
        %v3941 = vunpack.c.l.b16 %v3845
        %v3942 = vunpack.c.l.b16 %v3846
        %v3943 = vunpack.c.l.b16 %v3847
        %v3944 = vunpack.c.l.b16 %v3848
        %v3945 = vunpack.c.l.b16 %v3849
        %v3946 = vunpack.c.l.b16 %v3850
        %v3947 = vunpack.c.l.b16 %v3851
        %v3948 = vunpack.c.l.b16 %v3852
        %v3949 = vunpack.c.l.b16 %v3853
        %v3950 = vunpack.c.l.b16 %v3854
        %v3951 = vunpack.c.l.b16 %v3855
        %v3952 = vunpack.c.l.b16 %v3856
        %v3953 = vunpack.c.l.b16 %v3857
        %v3954 = vunpack.c.l.b16 %v3858
        %v3955 = vunpack.c.l.b16 %v3859
        %v3956 = vunpack.c.l.b16 %v3860
        %v3957 = vunpack.c.l.b16 %v3861
        %v3958 = vunpack.c.l.b16 %v3862
        %v3959 = vunpack.c.l.b16 %v3863
        %v3960 = vunpack.c.l.b16 %v3864
        %v3961 = vunpack.c.l.b16 %v3865
        %v3962 = vunpack.c.l.b16 %v3866
        %v3963 = vunpack.c.l.b16 %v3867
        %v3964 = vunpack.c.l.b16 %v3868
        %v3965 = vunpack.c.l.b16 %v3869
        %v3966 = vunpack.c.l.b16 %v3870
        %v3967 = vunpack.c.l.b16 %v3871
        %v3968 = vunpack.c.l.b16 %v3872
        %v3969 = vpack.c.b16 %v3922, %v3921
        %v3970 = vpack.c.b16 %v3924, %v3923
        %v3971 = vpack.c.b16 %v3926, %v3925
        %v3972 = vpack.c.b16 %v3928, %v3927
        %v3973 = vpack.c.b16 %v3930, %v3929
        %v3974 = vpack.c.b16 %v3932, %v3931
        %v3975 = vpack.c.b16 %v3934, %v3933
        %v3976 = vpack.c.b16 %v3936, %v3935
        %v3977 = vpack.c.b16 %v3938, %v3937
        %v3978 = vpack.c.b16 %v3940, %v3939
        %v3979 = vpack.c.b16 %v3942, %v3941
        %v3980 = vpack.c.b16 %v3944, %v3943
        %v3981 = vpack.c.b16 %v3946, %v3945
        %v3982 = vpack.c.b16 %v3948, %v3947
        %v3983 = vpack.c.b16 %v3950, %v3949
        %v3984 = vpack.c.b16 %v3952, %v3951
        %v3985 = vpack.c.b16 %v3954, %v3953
        %v3986 = vpack.c.b16 %v3956, %v3955
        %v3987 = vpack.c.b16 %v3958, %v3957
        %v3988 = vpack.c.b16 %v3960, %v3959
        %v3989 = vpack.c.b16 %v3962, %v3961
        %v3990 = vpack.c.b16 %v3964, %v3963
        %v3991 = vpack.c.b16 %v3966, %v3965
        %v3992 = vpack.c.b16 %v3968, %v3967
        %4017 = vmatprep.subr.bf16.mxu0 0
        %4018 = vmatpush1.bf16.msra.mxu0 %v3969
        %4019 = vmatprep.subr.bf16.mxu0 0
        %4020 = vmatpush1.bf16.msra.mxu0 %v3970
        %4021 = vmatprep.subr.bf16.mxu0 0
        %4022 = vmatpush1.bf16.msra.mxu0 %v3971
        %4023 = vmatprep.subr.bf16.mxu0 0
        %4024 = vmatpush1.bf16.msra.mxu0 %v3972
        %4025 = vmatprep.subr.bf16.mxu0 0
        %4026 = vmatpush1.bf16.msra.mxu0 %v3973
        %4027 = vmatprep.subr.bf16.mxu0 0
        %4028 = vmatpush1.bf16.msra.mxu0 %v3974
        %4029 = vmatprep.subr.bf16.mxu0 0
        %4030 = vmatpush1.bf16.msra.mxu0 %v3975
        %4031 = vmatprep.subr.bf16.mxu0 0
        %4032 = vmatpush1.bf16.msra.mxu0 %v3976
        %4033 = vmatprep.subr.bf16.mxu0 0
        %4034 = vmatpush1.bf16.msra.mxu0 %v3977
        %4035 = vmatprep.subr.bf16.mxu0 0
        %4036 = vmatpush1.bf16.msra.mxu0 %v3978
        %4037 = vmatprep.subr.bf16.mxu0 0
        %4038 = vmatpush1.bf16.msra.mxu0 %v3979
        %4039 = vmatprep.subr.bf16.mxu0 0
        %4040 = vmatpush1.bf16.msra.mxu0 %v3980
        %4041 = vmatprep.subr.bf16.mxu0 0
        %4042 = vmatpush1.bf16.msra.mxu0 %v3981
        %4043 = vmatprep.subr.bf16.mxu0 0
        %4044 = vmatpush1.bf16.msra.mxu0 %v3982
        %4045 = vmatprep.subr.bf16.mxu0 0
        %4046 = vmatpush1.bf16.msra.mxu0 %v3983
        %4047 = vmatprep.subr.bf16.mxu0 0
        %4048 = vmatpush1.bf16.msra.mxu0 %v3984
        %4049 = vmatprep.mubr.bf16.mxu0 %v2799
        %4050 = vmatmul.mubr.bf16.gmra.mrb[0].mxu0 %v1805
        %v4051 = vpop.f32.mrb[0].mxu0
        %v4052 = vadd.f32 0.0, %v4051
        %v4053 = vpop.f32.mrb[0].mxu0
        %v4054 = vpop.f32.mrb[0].mxu0
        %v4055 = vadd.f32 0.0, %v4054
        %v4056 = vpop.f32.mrb[0].mxu0
        %4057 = vmatprep.mubr.bf16.mxu0 %v2800
        %4058 = vmatmul.mubr.bf16.gmra.mrb[0].mxu0 %v1806
        %v4059 = vpop.f32.mrb[0].mxu0
        %v4060 = vadd.f32 0.0, %v4059
        %v4061 = vpop.f32.mrb[0].mxu0
        %v4062 = vpop.f32.mrb[0].mxu0
        %v4063 = vadd.f32 0.0, %v4062
        %v4064 = vpop.f32.mrb[0].mxu0
        %4065 = vmatprep.mubr.bf16.mxu0 %v2801
        %4066 = vmatmul.mubr.bf16.gmra.mrb[0].mxu0 %v1807
        %v4067 = vpop.f32.mrb[0].mxu0
        %v4068 = vadd.f32 0.0, %v4067
        %v4069 = vpop.f32.mrb[0].mxu0
        %v4070 = vpop.f32.mrb[0].mxu0
        %v4071 = vadd.f32 0.0, %v4070
        %v4072 = vpop.f32.mrb[0].mxu0
        %4073 = vmatprep.mubr.bf16.mxu0 %v2802
        %4074 = vmatmul.mubr.bf16.gmra.mrb[0].mxu0 %v1808
        %v4075 = vpop.f32.mrb[0].mxu0
        %v4076 = vadd.f32 0.0, %v4075
        %v4077 = vpop.f32.mrb[0].mxu0
        %v4078 = vpop.f32.mrb[0].mxu0
        %v4079 = vadd.f32 0.0, %v4078
        %v4080 = vpop.f32.mrb[0].mxu0
        %4081 = vmatprep.mubr.bf16.mxu0 %v2803
        %4082 = vmatmul.mubr.bf16.gmra.mrb[0].mxu0 %v1809
        %v4083 = vpop.f32.mrb[0].mxu0
        %v4084 = vadd.f32 0.0, %v4083
        %v4085 = vpop.f32.mrb[0].mxu0
        %v4086 = vpop.f32.mrb[0].mxu0
        %v4087 = vadd.f32 0.0, %v4086
        %v4088 = vpop.f32.mrb[0].mxu0
        %4089 = vmatprep.mubr.bf16.mxu0 %v2804
        %4090 = vmatmul.mubr.bf16.gmra.mrb[0].mxu0 %v1810
        %v4091 = vpop.f32.mrb[0].mxu0
        %v4092 = vadd.f32 0.0, %v4091
        %v4093 = vpop.f32.mrb[0].mxu0
        %v4094 = vpop.f32.mrb[0].mxu0
        %v4095 = vadd.f32 0.0, %v4094
        %v4096 = vpop.f32.mrb[0].mxu0
        %4097 = vmatprep.mubr.bf16.mxu0 %v2805
        %4098 = vmatmul.mubr.bf16.gmra.mrb[0].mxu0 %v1811
        %v4099 = vpop.f32.mrb[0].mxu0
        %v4100 = vadd.f32 0.0, %v4099
        %v4101 = vpop.f32.mrb[0].mxu0
        %v4102 = vpop.f32.mrb[0].mxu0
        %v4103 = vadd.f32 0.0, %v4102
        %v4104 = vpop.f32.mrb[0].mxu0
        %4105 = vmatprep.mubr.bf16.mxu0 %v2806
        %4106 = vmatmul.mubr.bf16.gmra.mrb[0].mxu0 %v1812
        %v4107 = vpop.f32.mrb[0].mxu0
        %v4108 = vadd.f32 0.0, %v4107
        %v4109 = vpop.f32.mrb[0].mxu0
        %v4110 = vpop.f32.mrb[0].mxu0
        %v4111 = vadd.f32 0.0, %v4110
        %v4112 = vpop.f32.mrb[0].mxu0
        %4113 = vmatprep.mubr.bf16.mxu0 %v2807
        %4114 = vmatmul.mubr.bf16.gmra.mrb[0].mxu0 %v1813
        %v4115 = vpop.f32.mrb[0].mxu0
        %v4116 = vadd.f32 0.0, %v4115
        %v4117 = vpop.f32.mrb[0].mxu0
        %v4118 = vpop.f32.mrb[0].mxu0
        %v4119 = vadd.f32 0.0, %v4118
        %v4120 = vpop.f32.mrb[0].mxu0
        %4121 = vmatprep.mubr.bf16.mxu0 %v2808
        %4122 = vmatmul.mubr.bf16.gmra.mrb[0].mxu0 %v1814
        %v4123 = vpop.f32.mrb[0].mxu0
        %v4124 = vadd.f32 0.0, %v4123
        %v4125 = vpop.f32.mrb[0].mxu0
        %v4126 = vpop.f32.mrb[0].mxu0
        %v4127 = vadd.f32 0.0, %v4126
        %v4128 = vpop.f32.mrb[0].mxu0
        %4129 = vmatprep.mubr.bf16.mxu0 %v2809
        %4130 = vmatmul.mubr.bf16.gmra.mrb[0].mxu0 %v1815
        %v4131 = vpop.f32.mrb[0].mxu0
        %v4132 = vadd.f32 0.0, %v4131
        %v4133 = vpop.f32.mrb[0].mxu0
        %v4134 = vpop.f32.mrb[0].mxu0
        %v4135 = vadd.f32 0.0, %v4134
        %v4136 = vpop.f32.mrb[0].mxu0
        %4137 = vmatprep.mubr.bf16.mxu0 %v2810
        %4138 = vmatmul.mubr.bf16.gmra.mrb[0].mxu0 %v1816
        %v4139 = vpop.f32.mrb[0].mxu0
        %v4140 = vadd.f32 0.0, %v4139
        %v4141 = vpop.f32.mrb[0].mxu0
        %v4142 = vpop.f32.mrb[0].mxu0
        %v4143 = vadd.f32 0.0, %v4142
        %v4144 = vpop.f32.mrb[0].mxu0
        %4145 = vmatprep.mubr.bf16.mxu0 %v2811
        %4146 = vmatmul.mubr.bf16.gmra.mrb[0].mxu0 %v1817
        %v4147 = vpop.f32.mrb[0].mxu0
        %v4148 = vadd.f32 0.0, %v4147
        %v4149 = vpop.f32.mrb[0].mxu0
        %v4150 = vpop.f32.mrb[0].mxu0
        %v4151 = vadd.f32 0.0, %v4150
        %v4152 = vpop.f32.mrb[0].mxu0
        %4153 = vmatprep.mubr.bf16.mxu0 %v2812
        %4154 = vmatmul.mubr.bf16.gmra.mrb[0].mxu0 %v1818
        %v4155 = vpop.f32.mrb[0].mxu0
        %v4156 = vadd.f32 0.0, %v4155
        %v4157 = vpop.f32.mrb[0].mxu0
        %v4158 = vpop.f32.mrb[0].mxu0
        %v4159 = vadd.f32 0.0, %v4158
        %v4160 = vpop.f32.mrb[0].mxu0
        %4161 = vmatprep.mubr.bf16.mxu0 %v2813
        %4162 = vmatmul.mubr.bf16.gmra.mrb[0].mxu0 %v1819
        %v4163 = vpop.f32.mrb[0].mxu0
        %v4164 = vadd.f32 0.0, %v4163
        %v4165 = vpop.f32.mrb[0].mxu0
        %v4166 = vpop.f32.mrb[0].mxu0
        %v4167 = vadd.f32 0.0, %v4166
        %v4168 = vpop.f32.mrb[0].mxu0
        %4169 = vmatprep.mubr.bf16.mxu0 %v2814
        %4170 = vmatmul.mubr.bf16.gmra.mrb[0].mxu0 %v1820
        %v4171 = vpop.f32.mrb[0].mxu0
        %v4172 = vadd.f32 0.0, %v4171
        %v4173 = vpop.f32.mrb[0].mxu0
        %v4174 = vpop.f32.mrb[0].mxu0
        %v4175 = vadd.f32 0.0, %v4174
        %v4176 = vpop.f32.mrb[0].mxu0
        %4177 = vmatprep.mubr.bf16.mxu0 %v2815
        %4178 = vmatmul.mubr.bf16.gmra.mrb[0].mxu0 %v1821
        %v4179 = vpop.f32.mrb[0].mxu0
        %v4180 = vadd.f32 0.0, %v4179
        %v4181 = vpop.f32.mrb[0].mxu0
        %v4182 = vpop.f32.mrb[0].mxu0
        %v4183 = vadd.f32 0.0, %v4182
        %v4184 = vpop.f32.mrb[0].mxu0
        %4185 = vmatprep.mubr.bf16.mxu0 %v2816
        %4186 = vmatmul.mubr.bf16.gmra.mrb[0].mxu0 %v1822
        %v4187 = vpop.f32.mrb[0].mxu0
        %v4188 = vadd.f32 0.0, %v4187
        %v4189 = vpop.f32.mrb[0].mxu0
        %v4190 = vpop.f32.mrb[0].mxu0
        %v4191 = vadd.f32 0.0, %v4190
        %v4192 = vpop.f32.mrb[0].mxu0
        %4193 = vmatprep.mubr.bf16.mxu0 %v2817
        %4194 = vmatmul.mubr.bf16.gmra.mrb[0].mxu0 %v1823
        %v4195 = vpop.f32.mrb[0].mxu0
        %v4196 = vadd.f32 0.0, %v4195
        %v4197 = vpop.f32.mrb[0].mxu0
        %v4198 = vpop.f32.mrb[0].mxu0
        %v4199 = vadd.f32 0.0, %v4198
        %v4200 = vpop.f32.mrb[0].mxu0
        %4201 = vmatprep.mubr.bf16.mxu0 %v2818
        %4202 = vmatmul.mubr.bf16.gmra.mrb[0].mxu0 %v1824
        %v4203 = vpop.f32.mrb[0].mxu0
        %v4204 = vadd.f32 0.0, %v4203
        %v4205 = vpop.f32.mrb[0].mxu0
        %v4206 = vpop.f32.mrb[0].mxu0
        %v4207 = vadd.f32 0.0, %v4206
        %v4208 = vpop.f32.mrb[0].mxu0
        %4209 = vmatprep.mubr.bf16.mxu0 %v2819
        %4210 = vmatmul.mubr.bf16.gmra.mrb[0].mxu0 %v1825
        %v4211 = vpop.f32.mrb[0].mxu0
        %v4212 = vadd.f32 0.0, %v4211
        %v4213 = vpop.f32.mrb[0].mxu0
        %v4214 = vpop.f32.mrb[0].mxu0
        %v4215 = vadd.f32 0.0, %v4214
        %v4216 = vpop.f32.mrb[0].mxu0
        %4217 = vmatprep.mubr.bf16.mxu0 %v2820
        %4218 = vmatmul.mubr.bf16.gmra.mrb[0].mxu0 %v1826
        %v4219 = vpop.f32.mrb[0].mxu0
        %v4220 = vadd.f32 0.0, %v4219
        %v4221 = vpop.f32.mrb[0].mxu0
        %v4222 = vpop.f32.mrb[0].mxu0
        %v4223 = vadd.f32 0.0, %v4222
        %v4224 = vpop.f32.mrb[0].mxu0
        %4225 = vmatprep.mubr.bf16.mxu0 %v2821
        %4226 = vmatmul.mubr.bf16.gmra.mrb[0].mxu0 %v1827
        %v4227 = vpop.f32.mrb[0].mxu0
        %v4228 = vadd.f32 0.0, %v4227
        %v4229 = vpop.f32.mrb[0].mxu0
        %v4230 = vpop.f32.mrb[0].mxu0
        %v4231 = vadd.f32 0.0, %v4230
        %v4232 = vpop.f32.mrb[0].mxu0
        %4233 = vmatprep.mubr.bf16.mxu0 %v2822
        %4234 = vmatmul.mubr.bf16.gmra.mrb[0].mxu0 %v1828
        %v4235 = vpop.f32.mrb[0].mxu0
        %v4236 = vadd.f32 0.0, %v4235
        %v4237 = vpop.f32.mrb[0].mxu0
        %v4238 = vpop.f32.mrb[0].mxu0
        %v4239 = vadd.f32 0.0, %v4238
        %v4240 = vpop.f32.mrb[0].mxu0
        %4241 = vmatprep.mubr.bf16.mxu0 %v2823
        %4242 = vmatmul.mubr.bf16.gmra.mrb[0].mxu0 %v1829
        %v4243 = vpop.f32.mrb[0].mxu0
        %v4244 = vadd.f32 0.0, %v4243
        %v4245 = vpop.f32.mrb[0].mxu0
        %v4246 = vpop.f32.mrb[0].mxu0
        %v4247 = vadd.f32 0.0, %v4246
        %v4248 = vpop.f32.mrb[0].mxu0
        %4249 = vmatprep.mubr.bf16.mxu0 %v2824
        %4250 = vmatmul.mubr.bf16.gmra.mrb[0].mxu0 %v1830
        %v4251 = vpop.f32.mrb[0].mxu0
        %v4252 = vadd.f32 0.0, %v4251
        %v4253 = vpop.f32.mrb[0].mxu0
        %v4254 = vpop.f32.mrb[0].mxu0
        %v4255 = vadd.f32 0.0, %v4254
        %v4256 = vpop.f32.mrb[0].mxu0
        %4257 = vmatprep.mubr.bf16.mxu0 %v2825
        %4258 = vmatmul.mubr.bf16.gmra.mrb[0].mxu0 %v1831
        %v4259 = vpop.f32.mrb[0].mxu0
        %v4260 = vadd.f32 0.0, %v4259
        %v4261 = vpop.f32.mrb[0].mxu0
        %v4262 = vpop.f32.mrb[0].mxu0
        %v4263 = vadd.f32 0.0, %v4262
        %v4264 = vpop.f32.mrb[0].mxu0
        %4265 = vmatprep.mubr.bf16.mxu0 %v2826
        %4266 = vmatmul.mubr.bf16.gmra.mrb[0].mxu0 %v1832
        %v4267 = vpop.f32.mrb[0].mxu0
        %v4268 = vadd.f32 0.0, %v4267
        %v4269 = vpop.f32.mrb[0].mxu0
        %v4270 = vpop.f32.mrb[0].mxu0
        %v4271 = vadd.f32 0.0, %v4270
        %v4272 = vpop.f32.mrb[0].mxu0
        %4273 = vmatprep.mubr.bf16.mxu0 %v2827
        %4274 = vmatmul.mubr.bf16.gmra.mrb[0].mxu0 %v1833
        %v4275 = vpop.f32.mrb[0].mxu0
        %v4276 = vadd.f32 0.0, %v4275
        %v4277 = vpop.f32.mrb[0].mxu0
        %v4278 = vpop.f32.mrb[0].mxu0
        %v4279 = vadd.f32 0.0, %v4278
        %v4280 = vpop.f32.mrb[0].mxu0
        %4281 = vmatprep.mubr.bf16.mxu0 %v2828
        %4282 = vmatmul.mubr.bf16.gmra.mrb[0].mxu0 %v1834
        %v4283 = vpop.f32.mrb[0].mxu0
        %v4284 = vadd.f32 0.0, %v4283
        %v4285 = vpop.f32.mrb[0].mxu0
        %v4286 = vpop.f32.mrb[0].mxu0
        %v4287 = vadd.f32 0.0, %v4286
        %v4288 = vpop.f32.mrb[0].mxu0
        %4289 = vmatprep.mubr.bf16.mxu0 %v2829
        %4290 = vmatmul.mubr.bf16.gmra.mrb[0].mxu0 %v1835
        %v4291 = vpop.f32.mrb[0].mxu0
        %v4292 = vadd.f32 0.0, %v4291
        %v4293 = vpop.f32.mrb[0].mxu0
        %v4294 = vpop.f32.mrb[0].mxu0
        %v4295 = vadd.f32 0.0, %v4294
        %v4296 = vpop.f32.mrb[0].mxu0
        %4297 = vmatprep.mubr.bf16.mxu0 %v2830
        %4298 = vmatmul.mubr.bf16.gmra.mrb[0].mxu0 %v1836
        %v4299 = vpop.f32.mrb[0].mxu0
        %v4300 = vadd.f32 0.0, %v4299
        %v4301 = vpop.f32.mrb[0].mxu0
        %v4302 = vpop.f32.mrb[0].mxu0
        %v4303 = vadd.f32 0.0, %v4302
        %v4304 = vpop.f32.mrb[0].mxu0
        %4305 = vdwg.mxu0
        %4306 = vmatprep.subr.bf16.mxu0 0
        %4307 = vmatpush1.bf16.msra.mxu0 %v3985
        %4308 = vmatprep.subr.bf16.mxu0 0
        %4309 = vmatpush1.bf16.msra.mxu0 %v3986
        %4310 = vmatprep.subr.bf16.mxu0 0
        %4311 = vmatpush1.bf16.msra.mxu0 %v3987
        %4312 = vmatprep.subr.bf16.mxu0 0
        %4313 = vmatpush1.bf16.msra.mxu0 %v3988
        %4314 = vmatprep.subr.bf16.mxu0 0
        %4315 = vmatpush1.bf16.msra.mxu0 %v3989
        %4316 = vmatprep.subr.bf16.mxu0 0
        %4317 = vmatpush1.bf16.msra.mxu0 %v3990
        %4318 = vmatprep.subr.bf16.mxu0 0
        %4319 = vmatpush1.bf16.msra.mxu0 %v3991
        %4320 = vmatprep.subr.bf16.mxu0 0
        %4321 = vmatpush1.bf16.msra.mxu0 %v3992
        %4322 = vmatprep.subr.bf16.mxu0 0
        %4323 = vmatpush1.bf16.msra.mxu0 0
        %4324 = vmatprep.subr.bf16.mxu0 0
        %4325 = vmatpush1.bf16.msra.mxu0 0
        %4326 = vmatprep.subr.bf16.mxu0 0
        %4327 = vmatpush1.bf16.msra.mxu0 0
        %4328 = vmatprep.subr.bf16.mxu0 0
        %4329 = vmatpush1.bf16.msra.mxu0 0
        %4330 = vmatprep.subr.bf16.mxu0 0
        %4331 = vmatpush1.bf16.msra.mxu0 0
        %4332 = vmatprep.subr.bf16.mxu0 0
        %4333 = vmatpush1.bf16.msra.mxu0 0
        %4334 = vmatprep.subr.bf16.mxu0 0
        %4335 = vmatpush1.bf16.msra.mxu0 0
        %4336 = vmatprep.subr.bf16.mxu0 0
        %4337 = vmatpush1.bf16.msra.mxu0 0
        %4338 = vmatprep.mubr.bf16.mxu0 0
        %4339 = vmatmul.mubr.bf16.gmra.mrb[0].mxu0 %v3793
        %v4340 = vpop.f32.mrb[0].mxu0
        %v4341 = vadd.f32 %v4052, %v4340
        %v4342 = vpop.f32.mrb[0].mxu0
        %v4343 = vpop.f32.mrb[0].mxu0
        %v4344 = vadd.f32 %v4055, %v4343
        %v4345 = vpop.f32.mrb[0].mxu0
        %4346 = vmatprep.mubr.bf16.mxu0 0
        %4347 = vmatmul.mubr.bf16.gmra.mrb[0].mxu0 %v3794
        %v4348 = vpop.f32.mrb[0].mxu0
        %v4349 = vadd.f32 %v4060, %v4348
        %v4350 = vpop.f32.mrb[0].mxu0
        %v4351 = vpop.f32.mrb[0].mxu0
        %v4352 = vadd.f32 %v4063, %v4351
        %v4353 = vpop.f32.mrb[0].mxu0
        %4354 = vmatprep.mubr.bf16.mxu0 0
        %4355 = vmatmul.mubr.bf16.gmra.mrb[0].mxu0 %v3795
        %v4356 = vpop.f32.mrb[0].mxu0
        %v4357 = vadd.f32 %v4068, %v4356
        %v4358 = vpop.f32.mrb[0].mxu0
        %v4359 = vpop.f32.mrb[0].mxu0
        %v4360 = vadd.f32 %v4071, %v4359
        %v4361 = vpop.f32.mrb[0].mxu0
        %4362 = vmatprep.mubr.bf16.mxu0 0
        %4363 = vmatmul.mubr.bf16.gmra.mrb[0].mxu0 %v3796
        %v4364 = vpop.f32.mrb[0].mxu0
        %v4365 = vadd.f32 %v4076, %v4364
        %v4366 = vpop.f32.mrb[0].mxu0
        %v4367 = vpop.f32.mrb[0].mxu0
        %v4368 = vadd.f32 %v4079, %v4367
        %v4369 = vpop.f32.mrb[0].mxu0
        %4370 = vmatprep.mubr.bf16.mxu0 0
        %4371 = vmatmul.mubr.bf16.gmra.mrb[0].mxu0 %v3797
        %v4372 = vpop.f32.mrb[0].mxu0
        %v4373 = vadd.f32 %v4084, %v4372
        %v4374 = vpop.f32.mrb[0].mxu0
        %v4375 = vpop.f32.mrb[0].mxu0
        %v4376 = vadd.f32 %v4087, %v4375
        %v4377 = vpop.f32.mrb[0].mxu0
        %4378 = vmatprep.mubr.bf16.mxu0 0
        %4379 = vmatmul.mubr.bf16.gmra.mrb[0].mxu0 %v3798
        %v4380 = vpop.f32.mrb[0].mxu0
        %v4381 = vadd.f32 %v4092, %v4380
        %v4382 = vpop.f32.mrb[0].mxu0
        %v4383 = vpop.f32.mrb[0].mxu0
        %v4384 = vadd.f32 %v4095, %v4383
        %v4385 = vpop.f32.mrb[0].mxu0
        %4386 = vmatprep.mubr.bf16.mxu0 0
        %4387 = vmatmul.mubr.bf16.gmra.mrb[0].mxu0 %v3799
        %v4388 = vpop.f32.mrb[0].mxu0
        %v4389 = vadd.f32 %v4100, %v4388
        %v4390 = vpop.f32.mrb[0].mxu0
        %v4391 = vpop.f32.mrb[0].mxu0
        %v4392 = vadd.f32 %v4103, %v4391
        %v4393 = vpop.f32.mrb[0].mxu0
        %4394 = vmatprep.mubr.bf16.mxu0 0
        %4395 = vmatmul.mubr.bf16.gmra.mrb[0].mxu0 %v3800
        %v4396 = vpop.f32.mrb[0].mxu0
        %v4397 = vadd.f32 %v4108, %v4396
        %v4398 = vpop.f32.mrb[0].mxu0
        %v4399 = vpop.f32.mrb[0].mxu0
        %v4400 = vadd.f32 %v4111, %v4399
        %v4401 = vpop.f32.mrb[0].mxu0
        %4402 = vmatprep.mubr.bf16.mxu0 0
        %4403 = vmatmul.mubr.bf16.gmra.mrb[0].mxu0 %v3801
        %v4404 = vpop.f32.mrb[0].mxu0
        %v4405 = vadd.f32 %v4116, %v4404
        %v4406 = vpop.f32.mrb[0].mxu0
        %v4407 = vpop.f32.mrb[0].mxu0
        %v4408 = vadd.f32 %v4119, %v4407
        %v4409 = vpop.f32.mrb[0].mxu0
        %4410 = vmatprep.mubr.bf16.mxu0 0
        %4411 = vmatmul.mubr.bf16.gmra.mrb[0].mxu0 %v3802
        %v4412 = vpop.f32.mrb[0].mxu0
        %v4413 = vadd.f32 %v4124, %v4412
        %v4414 = vpop.f32.mrb[0].mxu0
        %v4415 = vpop.f32.mrb[0].mxu0
        %v4416 = vadd.f32 %v4127, %v4415
        %v4417 = vpop.f32.mrb[0].mxu0
        %4418 = vmatprep.mubr.bf16.mxu0 0
        %4419 = vmatmul.mubr.bf16.gmra.mrb[0].mxu0 %v3803
        %v4420 = vpop.f32.mrb[0].mxu0
        %v4421 = vadd.f32 %v4132, %v4420
        %v4422 = vpop.f32.mrb[0].mxu0
        %v4423 = vpop.f32.mrb[0].mxu0
        %v4424 = vadd.f32 %v4135, %v4423
        %v4425 = vpop.f32.mrb[0].mxu0
        %4426 = vmatprep.mubr.bf16.mxu0 0
        %4427 = vmatmul.mubr.bf16.gmra.mrb[0].mxu0 %v3804
        %v4428 = vpop.f32.mrb[0].mxu0
        %v4429 = vadd.f32 %v4140, %v4428
        %v4430 = vpop.f32.mrb[0].mxu0
        %v4431 = vpop.f32.mrb[0].mxu0
        %v4432 = vadd.f32 %v4143, %v4431
        %v4433 = vpop.f32.mrb[0].mxu0
        %4434 = vmatprep.mubr.bf16.mxu0 0
        %4435 = vmatmul.mubr.bf16.gmra.mrb[0].mxu0 %v3805
        %v4436 = vpop.f32.mrb[0].mxu0
        %v4437 = vadd.f32 %v4148, %v4436
        %v4438 = vpop.f32.mrb[0].mxu0
        %v4439 = vpop.f32.mrb[0].mxu0
        %v4440 = vadd.f32 %v4151, %v4439
        %v4441 = vpop.f32.mrb[0].mxu0
        %4442 = vmatprep.mubr.bf16.mxu0 0
        %4443 = vmatmul.mubr.bf16.gmra.mrb[0].mxu0 %v3806
        %v4444 = vpop.f32.mrb[0].mxu0
        %v4445 = vadd.f32 %v4156, %v4444
        %v4446 = vpop.f32.mrb[0].mxu0
        %v4447 = vpop.f32.mrb[0].mxu0
        %v4448 = vadd.f32 %v4159, %v4447
        %v4449 = vpop.f32.mrb[0].mxu0
        %4450 = vmatprep.mubr.bf16.mxu0 0
        %4451 = vmatmul.mubr.bf16.gmra.mrb[0].mxu0 %v3807
        %v4452 = vpop.f32.mrb[0].mxu0
        %v4453 = vadd.f32 %v4164, %v4452
        %v4454 = vpop.f32.mrb[0].mxu0
        %v4455 = vpop.f32.mrb[0].mxu0
        %v4456 = vadd.f32 %v4167, %v4455
        %v4457 = vpop.f32.mrb[0].mxu0
        %4458 = vmatprep.mubr.bf16.mxu0 0
        %4459 = vmatmul.mubr.bf16.gmra.mrb[0].mxu0 %v3808
        %v4460 = vpop.f32.mrb[0].mxu0
        %v4461 = vadd.f32 %v4172, %v4460
        %v4462 = vpop.f32.mrb[0].mxu0
        %v4463 = vpop.f32.mrb[0].mxu0
        %v4464 = vadd.f32 %v4175, %v4463
        %v4465 = vpop.f32.mrb[0].mxu0
        %4466 = vmatprep.mubr.bf16.mxu0 0
        %4467 = vmatmul.mubr.bf16.gmra.mrb[0].mxu0 %v3809
        %v4468 = vpop.f32.mrb[0].mxu0
        %v4469 = vadd.f32 %v4180, %v4468
        %v4470 = vpop.f32.mrb[0].mxu0
        %v4471 = vpop.f32.mrb[0].mxu0
        %v4472 = vadd.f32 %v4183, %v4471
        %v4473 = vpop.f32.mrb[0].mxu0
        %4474 = vmatprep.mubr.bf16.mxu0 0
        %4475 = vmatmul.mubr.bf16.gmra.mrb[0].mxu0 %v3810
        %v4476 = vpop.f32.mrb[0].mxu0
        %v4477 = vadd.f32 %v4188, %v4476
        %v4478 = vpop.f32.mrb[0].mxu0
        %v4479 = vpop.f32.mrb[0].mxu0
        %v4480 = vadd.f32 %v4191, %v4479
        %v4481 = vpop.f32.mrb[0].mxu0
        %4482 = vmatprep.mubr.bf16.mxu0 0
        %4483 = vmatmul.mubr.bf16.gmra.mrb[0].mxu0 %v3811
        %v4484 = vpop.f32.mrb[0].mxu0
        %v4485 = vadd.f32 %v4196, %v4484
        %v4486 = vpop.f32.mrb[0].mxu0
        %v4487 = vpop.f32.mrb[0].mxu0
        %v4488 = vadd.f32 %v4199, %v4487
        %v4489 = vpop.f32.mrb[0].mxu0
        %4490 = vmatprep.mubr.bf16.mxu0 0
        %4491 = vmatmul.mubr.bf16.gmra.mrb[0].mxu0 %v3812
        %v4492 = vpop.f32.mrb[0].mxu0
        %v4493 = vadd.f32 %v4204, %v4492
        %v4494 = vpop.f32.mrb[0].mxu0
        %v4495 = vpop.f32.mrb[0].mxu0
        %v4496 = vadd.f32 %v4207, %v4495
        %v4497 = vpop.f32.mrb[0].mxu0
        %4498 = vmatprep.mubr.bf16.mxu0 0
        %4499 = vmatmul.mubr.bf16.gmra.mrb[0].mxu0 %v3813
        %v4500 = vpop.f32.mrb[0].mxu0
        %v4501 = vadd.f32 %v4212, %v4500
        %v4502 = vpop.f32.mrb[0].mxu0
        %v4503 = vpop.f32.mrb[0].mxu0
        %v4504 = vadd.f32 %v4215, %v4503
        %v4505 = vpop.f32.mrb[0].mxu0
        %4506 = vmatprep.mubr.bf16.mxu0 0
        %4507 = vmatmul.mubr.bf16.gmra.mrb[0].mxu0 %v3814
        %v4508 = vpop.f32.mrb[0].mxu0
        %v4509 = vadd.f32 %v4220, %v4508
        %v4510 = vpop.f32.mrb[0].mxu0
        %v4511 = vpop.f32.mrb[0].mxu0
        %v4512 = vadd.f32 %v4223, %v4511
        %v4513 = vpop.f32.mrb[0].mxu0
        %4514 = vmatprep.mubr.bf16.mxu0 0
        %4515 = vmatmul.mubr.bf16.gmra.mrb[0].mxu0 %v3815
        %v4516 = vpop.f32.mrb[0].mxu0
        %v4517 = vadd.f32 %v4228, %v4516
        %v4518 = vpop.f32.mrb[0].mxu0
        %v4519 = vpop.f32.mrb[0].mxu0
        %v4520 = vadd.f32 %v4231, %v4519
        %v4521 = vpop.f32.mrb[0].mxu0
        %4522 = vmatprep.mubr.bf16.mxu0 0
        %4523 = vmatmul.mubr.bf16.gmra.mrb[0].mxu0 %v3816
        %v4524 = vpop.f32.mrb[0].mxu0
        %v4525 = vadd.f32 %v4236, %v4524
        %v4526 = vpop.f32.mrb[0].mxu0
        %v4527 = vpop.f32.mrb[0].mxu0
        %v4528 = vadd.f32 %v4239, %v4527
        %v4529 = vpop.f32.mrb[0].mxu0
        %4530 = vmatprep.mubr.bf16.mxu0 0
        %4531 = vmatmul.mubr.bf16.gmra.mrb[0].mxu0 %v3817
        %v4532 = vpop.f32.mrb[0].mxu0
        %v4533 = vadd.f32 %v4244, %v4532
        %v4534 = vpop.f32.mrb[0].mxu0
        %v4535 = vpop.f32.mrb[0].mxu0
        %v4536 = vadd.f32 %v4247, %v4535
        %v4537 = vpop.f32.mrb[0].mxu0
        %4538 = vmatprep.mubr.bf16.mxu0 0
        %4539 = vmatmul.mubr.bf16.gmra.mrb[0].mxu0 %v3818
        %v4540 = vpop.f32.mrb[0].mxu0
        %v4541 = vadd.f32 %v4252, %v4540
        %v4542 = vpop.f32.mrb[0].mxu0
        %v4543 = vpop.f32.mrb[0].mxu0
        %v4544 = vadd.f32 %v4255, %v4543
        %v4545 = vpop.f32.mrb[0].mxu0
        %4546 = vmatprep.mubr.bf16.mxu0 0
        %4547 = vmatmul.mubr.bf16.gmra.mrb[0].mxu0 %v3819
        %v4548 = vpop.f32.mrb[0].mxu0
        %v4549 = vadd.f32 %v4260, %v4548
        %v4550 = vpop.f32.mrb[0].mxu0
        %v4551 = vpop.f32.mrb[0].mxu0
        %v4552 = vadd.f32 %v4263, %v4551
        %v4553 = vpop.f32.mrb[0].mxu0
        %4554 = vmatprep.mubr.bf16.mxu0 0
        %4555 = vmatmul.mubr.bf16.gmra.mrb[0].mxu0 %v3820
        %v4556 = vpop.f32.mrb[0].mxu0
        %v4557 = vadd.f32 %v4268, %v4556
        %v4558 = vpop.f32.mrb[0].mxu0
        %v4559 = vpop.f32.mrb[0].mxu0
        %v4560 = vadd.f32 %v4271, %v4559
        %v4561 = vpop.f32.mrb[0].mxu0
        %4562 = vmatprep.mubr.bf16.mxu0 0
        %4563 = vmatmul.mubr.bf16.gmra.mrb[0].mxu0 %v3821
        %v4564 = vpop.f32.mrb[0].mxu0
        %v4565 = vadd.f32 %v4276, %v4564
        %v4566 = vpop.f32.mrb[0].mxu0
        %v4567 = vpop.f32.mrb[0].mxu0
        %v4568 = vadd.f32 %v4279, %v4567
        %v4569 = vpop.f32.mrb[0].mxu0
        %4570 = vmatprep.mubr.bf16.mxu0 0
        %4571 = vmatmul.mubr.bf16.gmra.mrb[0].mxu0 %v3822
        %v4572 = vpop.f32.mrb[0].mxu0
        %v4573 = vadd.f32 %v4284, %v4572
        %v4574 = vpop.f32.mrb[0].mxu0
        %v4575 = vpop.f32.mrb[0].mxu0
        %v4576 = vadd.f32 %v4287, %v4575
        %v4577 = vpop.f32.mrb[0].mxu0
        %4578 = vmatprep.mubr.bf16.mxu0 0
        %4579 = vmatmul.mubr.bf16.gmra.mrb[0].mxu0 %v3823
        %v4580 = vpop.f32.mrb[0].mxu0
        %v4581 = vadd.f32 %v4292, %v4580
        %v4582 = vpop.f32.mrb[0].mxu0
        %v4583 = vpop.f32.mrb[0].mxu0
        %v4584 = vadd.f32 %v4295, %v4583
        %v4585 = vpop.f32.mrb[0].mxu0
        %4586 = vmatprep.mubr.bf16.mxu0 0
        %4587 = vmatmul.mubr.bf16.gmra.mrb[0].mxu0 %v3824
        %v4588 = vpop.f32.mrb[0].mxu0
        %v4589 = vadd.f32 %v4300, %v4588
        %v4590 = vpop.f32.mrb[0].mxu0
        %v4591 = vpop.f32.mrb[0].mxu0
        %v4592 = vadd.f32 %v4303, %v4591
        %v4593 = vpop.f32.mrb[0].mxu0
        %4594 = vdwg.mxu0
        %4595 = vst [vmem:[%s711] sm:$0xff] %v4341
        %4596 = vst [vmem:[%s711 + $0x8] sm:$0xff] %v4344
        %4597 = vst [vmem:[%s711 + $0x10] sm:$0xff] %v4349
        %4598 = vst [vmem:[%s711 + $0x18] sm:$0xff] %v4352
        %4599 = vst [vmem:[%s711 + $0x20] sm:$0xff] %v4357
        %4600 = vst [vmem:[%s711 + $0x28] sm:$0xff] %v4360
        %4601 = vst [vmem:[%s711 + $0x30] sm:$0xff] %v4365
        %4602 = vst [vmem:[%s711 + $0x38] sm:$0xff] %v4368
        %4603 = vst [vmem:[%s711 + $0x40] sm:$0xff] %v4373
        %4604 = vst [vmem:[%s711 + $0x48] sm:$0xff] %v4376
        %4605 = vst [vmem:[%s711 + $0x50] sm:$0xff] %v4381
        %4606 = vst [vmem:[%s711 + $0x58] sm:$0xff] %v4384
        %4607 = vst [vmem:[%s711 + $0x60] sm:$0xff] %v4389
        %4608 = vst [vmem:[%s711 + $0x68] sm:$0xff] %v4392
        %4609 = vst [vmem:[%s711 + $0x70] sm:$0xff] %v4397
        %4610 = vst [vmem:[%s711 + $0x78] sm:$0xff] %v4400
        %4611 = vst [vmem:[%s711 + $0x80] sm:$0xff] %v4405
        %4612 = vst [vmem:[%s711 + $0x88] sm:$0xff] %v4408
        %4613 = vst [vmem:[%s711 + $0x90] sm:$0xff] %v4413
        %4614 = vst [vmem:[%s711 + $0x98] sm:$0xff] %v4416
        %4615 = vst [vmem:[%s711 + $0xa0] sm:$0xff] %v4421
        %4616 = vst [vmem:[%s711 + $0xa8] sm:$0xff] %v4424
        %4617 = vst [vmem:[%s711 + $0xb0] sm:$0xff] %v4429
        %4618 = vst [vmem:[%s711 + $0xb8] sm:$0xff] %v4432
        %4619 = vst [vmem:[%s711 + $0xc0] sm:$0xff] %v4437
        %4620 = vst [vmem:[%s711 + $0xc8] sm:$0xff] %v4440
        %4621 = vst [vmem:[%s711 + $0xd0] sm:$0xff] %v4445
        %4622 = vst [vmem:[%s711 + $0xd8] sm:$0xff] %v4448
        %4623 = vst [vmem:[%s711 + $0xe0] sm:$0xff] %v4453
        %4624 = vst [vmem:[%s711 + $0xe8] sm:$0xff] %v4456
        %4625 = vst [vmem:[%s711 + $0xf0] sm:$0xff] %v4461
        %4626 = vst [vmem:[%s711 + $0xf8] sm:$0xff] %v4464
        %4627 = vst [vmem:[%s711 + $0x100] sm:$0xff] %v4469
        %4628 = vst [vmem:[%s711 + $0x108] sm:$0xff] %v4472
        %4629 = vst [vmem:[%s711 + $0x110] sm:$0xff] %v4477
        %4630 = vst [vmem:[%s711 + $0x118] sm:$0xff] %v4480
        %4631 = vst [vmem:[%s711 + $0x120] sm:$0xff] %v4485
        %4632 = vst [vmem:[%s711 + $0x128] sm:$0xff] %v4488
        %4633 = vst [vmem:[%s711 + $0x130] sm:$0xff] %v4493
        %4634 = vst [vmem:[%s711 + $0x138] sm:$0xff] %v4496
        %4635 = vst [vmem:[%s711 + $0x140] sm:$0xff] %v4501
        %4636 = vst [vmem:[%s711 + $0x148] sm:$0xff] %v4504
        %4637 = vst [vmem:[%s711 + $0x150] sm:$0xff] %v4509
        %4638 = vst [vmem:[%s711 + $0x158] sm:$0xff] %v4512
        %4639 = vst [vmem:[%s711 + $0x160] sm:$0xff] %v4517
        %4640 = vst [vmem:[%s711 + $0x168] sm:$0xff] %v4520
        %4641 = vst [vmem:[%s711 + $0x170] sm:$0xff] %v4525
        %4642 = vst [vmem:[%s711 + $0x178] sm:$0xff] %v4528
        %4643 = vst [vmem:[%s711 + $0x180] sm:$0xff] %v4533
        %4644 = vst [vmem:[%s711 + $0x188] sm:$0xff] %v4536
        %4645 = vst [vmem:[%s711 + $0x190] sm:$0xff] %v4541
        %4646 = vst [vmem:[%s711 + $0x198] sm:$0xff] %v4544
        %4647 = vst [vmem:[%s711 + $0x1a0] sm:$0xff] %v4549
        %4648 = vst [vmem:[%s711 + $0x1a8] sm:$0xff] %v4552
        %4649 = vst [vmem:[%s711 + $0x1b0] sm:$0xff] %v4557
        %4650 = vst [vmem:[%s711 + $0x1b8] sm:$0xff] %v4560
        %4651 = vst [vmem:[%s711 + $0x1c0] sm:$0xff] %v4565
        %4652 = vst [vmem:[%s711 + $0x1c8] sm:$0xff] %v4568
        %4653 = vst [vmem:[%s711 + $0x1d0] sm:$0xff] %v4573
        %4654 = vst [vmem:[%s711 + $0x1d8] sm:$0xff] %v4576
        %4655 = vst [vmem:[%s711 + $0x1e0] sm:$0xff] %v4581
        %4656 = vst [vmem:[%s711 + $0x1e8] sm:$0xff] %v4584
        %4657 = vst [vmem:[%s711 + $0x1f0] sm:$0xff] %v4589
        %4658 = vst [vmem:[%s711 + $0x1f8] sm:$0xff] %v4592
        %s4659 = sand.u32 %s93, 1
        %s4660 = scalar_lea.sflag [#allocation4], %s4659
        %s4661 = sand.u32 %s93, 1
        %s4662 = smul.addr %s4661, 512
        %s4663 = scalar_lea.vmem [#allocation3], %s4662
        // Predicated region
        $region71: #{graph_filter_down.1} parent=65 // pred_check
          %p4664 = pneg %p103
        $region72: #{graph_filter_down.1} parent=65 // pred_check_branch
          %4666 = sbr.rel (%p4664) target = $region74
        $region73: #{graph_filter_down.1} parent=65 // pred_region
          %s4667 = smul.u32 64, %s17
          %s4669 = ssub.s32 8192, 8192
          %4670 = vsyncadd %s4660, %s4669
          %s4671 = smul.addr %s4667, 128
          %s4672 = scalar_lea.hbm %s3, %s4671
          %s4673 = sshll.u32 %s4663, 4
          %s4674 = int_to_ptr.vmem [resolvable:$true] %s4673
          %4679 = dma.vmem_to_hbm [thread:$0]  %s4674, 8192, %s4672, %s4660, 128, 128, 8
        $region74: #{graph_filter_down.1} parent=65 // pred_fallthru
          _
      $region66: #{graph_filter_down.1} parent=5 // pred_fallthru
        _
      %p4680 = scmp.le.s32.totalorder 2, %s12
      // Predicated region
      $region75: #{graph_filter_down.1} parent=5 // pred_check
        %p4681 = pneg %p4680
      $region76: #{graph_filter_down.1} parent=5 // pred_check_branch
        %4683 = sbr.rel (%p4681) target = $region78
      $region77: #{graph_filter_down.1} parent=5 // pred_region
        %s4684 = ssub.s32 %s12, 2
        // Predicated region
        $region79: #{graph_filter_down.1} parent=77 // pred_check
          %p4685 = pneg %p109
        $region80: #{graph_filter_down.1} parent=77 // pred_check_branch
          %4687 = sbr.rel (%p4685) target = $region82
        $region81: #{graph_filter_down.1} parent=77 // pred_region
          %s4688 = sand.u32 %s94, 1
          %s4689 = scalar_lea.sflag [#allocation4], %s4688
          %s4690 = sand.u32 %s94, 1
          %s4691 = smul.addr %s4690, 512
          %s4692 = scalar_lea.vmem [#allocation3], %s4691
          %4693 = dma.done %s4689, 8192
        $region82: #{graph_filter_down.1} parent=77 // pred_fallthru
          _
      $region78: #{graph_filter_down.1} parent=5 // pred_fallthru
        _
    $region6: #{graph_filter_down.1} parent=1 // loop_footer
      %s16 = sadd.s32 1, %s12
    $region7: #{graph_filter_down.1} parent=1 // loop_footer_branch
      %11 = sbr.rel target = $region3
    $region8: #{graph_filter_down.1} parent=1 // loop_exit
      _
    %4694 = vsyncpa [#allocation4], 1
    %s4695 = scalar_lea.sflag [#allocation4], 1
    %4696 = vsyncpa %s4695, 1

</llo_original>
